<compile_context>
chip_gen: v5e
topology: v5e:2x2
jax: 0.10.0
libtpu: 0.0.40
codegen_flags: <defaults>
</compile_context>

<pallas_src>
import jax
import jax.numpy as jnp
import numpy as np
from jax.experimental import pallas as pl
from jax.experimental.pallas import tpu as pltpu

_LANE = 128
_BN_EPS = 1e-5


# ---------------------------------------------------------------------------
# helpers
# ---------------------------------------------------------------------------
def _round_up(n, m):
    return (n + m - 1) // m * m


def _pad_last(a, target):
    pad = target - a.shape[-1]
    if pad == 0:
        return a
    return jnp.pad(a, [(0, 0)] * (a.ndim - 1) + [(0, pad)])


def _pad_2d(w, rows, cols):
    if w.shape == (rows, cols):
        return w
    return jnp.pad(w, ((0, rows - w.shape[0]), (0, cols - w.shape[1])))


def _pick_tile(n, preferred):
    """Largest divisor of n that is <= preferred and sublane-aligned (mult of
    8).  Falls back to the full extent n (always a legal block) instead of
    collapsing to tiny tiles for awkward sizes."""
    for t in range(min(preferred, n), 7, -1):
        if n % t == 0 and t % 8 == 0:
            return t
    return n


# ---------------------------------------------------------------------------
# Kernel 0: fused theta/phi/g 1x1-conv projections (computed once per pixel).
# Reads unpadded f32 x; writes lane-dense bf16 projections.
# ---------------------------------------------------------------------------
def _proj_kernel(x_ref, wth_ref, wphi_ref, wg_ref, bth_ref, bphi_ref, bg_ref,
                 th_ref, phi_ref, g_ref):
    x = x_ref[...].astype(wth_ref.dtype)                       # (rp, C)
    th = jnp.dot(x, wth_ref[...],
                 preferred_element_type=jnp.float32) + bth_ref[...]
    ph = jnp.dot(x, wphi_ref[...],
                 preferred_element_type=jnp.float32) + bphi_ref[...]
    gg = jnp.dot(x, wg_ref[...],
                 preferred_element_type=jnp.float32) + bg_ref[...]
    th_ref[...] = th.astype(th_ref.dtype)
    phi_ref[...] = ph.astype(phi_ref.dtype)
    g_ref[...] = gg.astype(g_ref.dtype)


# ---------------------------------------------------------------------------
# Kernel 1: flash-tiled non-local attention + final w 1x1 conv.
# Grid = (B, HW//tq, HW//tk); k (reduction) axis last, "arbitrary".
# Also emits per-(b, q-tile) partial BN statistics (sum, sum of squares, f32).
# ---------------------------------------------------------------------------
def _nl_flash_kernel(th_ref, phi_ref, g_ref, ww_ref, bw_ref,
                     wy_ref, stats_ref,
                     m_sc, l_sc, acc_sc):
    ki = pl.program_id(2)

    @pl.when(ki == 0)
    def _init():
        m_sc[...] = jnp.full_like(m_sc, -jnp.inf)
        l_sc[...] = jnp.zeros_like(l_sc)
        acc_sc[...] = jnp.zeros_like(acc_sc)

    th = th_ref[0]                                              # (tq, Chp)
    phi = phi_ref[0]                                            # (tk, Chp)
    g = g_ref[0]                                                # (tk, Chp)

    # scores: contract the channel axis directly -> no transpose of phi.
    s = jax.lax.dot_general(th, phi,
                            dimension_numbers=(((1,), (1,)), ((), ())),
                            preferred_element_type=jnp.float32)  # (tq, tk)

    # online softmax update (f32 statistics, deferred normalization).
    m_prev = m_sc[...]
    m_new = jnp.maximum(m_prev, jnp.max(s, axis=-1, keepdims=True))
    alpha = jnp.exp(m_prev - m_new)
    p = jnp.exp(s - m_new)
    l_sc[...] = alpha * l_sc[...] + jnp.sum(p, axis=-1, keepdims=True)
    acc_sc[...] = alpha * acc_sc[...] + jnp.dot(
        p.astype(g.dtype), g, preferred_element_type=jnp.float32)
    m_sc[...] = m_new

    @pl.when(ki == pl.num_programs(2) - 1)
    def _finish():
        # Exact normalization (once per q-tile -> effectively free), then the
        # final 1x1 conv back to out_ch.
        y = acc_sc[...] / l_sc[...]                              # (tq, Chp) f32
        wy = jnp.dot(y.astype(ww_ref.dtype), ww_ref[...],
                     preferred_element_type=jnp.float32) + bw_ref[...]
        wy_ref[0] = wy.astype(wy_ref.dtype)                      # bf16 store

        # partial BatchNorm statistics for this (b, q-tile), computed in f32
        # *before* the bf16 cast: row 0 = sum, row 1 = sum^2, rows 2..7 = pad.
        cop = wy.shape[-1]
        ssum = jnp.sum(wy, axis=0, keepdims=True)                # (1, Cop)
        ssq = jnp.sum(wy * wy, axis=0, keepdims=True)            # (1, Cop)
        pad = jnp.zeros((6, cop), jnp.float32)
        stats_ref[...] = jnp.concatenate([ssum, ssq, pad],
                                         axis=0).reshape(stats_ref.shape)


# ---------------------------------------------------------------------------
# Kernel 2: tiled BatchNorm (pre-reduced to per-channel scale/shift) + residual
# ---------------------------------------------------------------------------
def _bn_residual_kernel(x_ref, wy_ref, scale_ref, shift_ref, out_ref):
    out_ref[...] = (x_ref[...]
                    + wy_ref[...].astype(jnp.float32) * scale_ref[...]
                    + shift_ref[...])


# ---------------------------------------------------------------------------
# Channels-last entry point: x_flat is (B, HW, C) float32.
# ---------------------------------------------------------------------------
def nonlocal_block_channels_last(x_flat, params, *,
                                 compute_dtype=jnp.bfloat16,
                                 tq=512, tk=256,
                                 proj_row_tile=1024, bn_row_tile=2048):
    B, HW, C = x_flat.shape
    Ch = params["w_theta"].shape[1]
    Co = params["w_w"].shape[1]
    if Co != C:
        raise ValueError("residual x + w_y requires out_ch == ch")

    # lane-dense padded channel dims (multiple of 128).
    Cp = _round_up(C, _LANE)
    Chp = _round_up(Ch, _LANE)
    Cop = _round_up(Co, _LANE)
    assert Cp == Cop  # follows from out_ch == ch; the epilogue relies on it.

    tq = _pick_tile(HW, tq)
    tk = _pick_tile(HW, tk)
    nq, nk = HW // tq, HW // tk
    rows = B * HW
    # TODO(synk): masked tails for HW with no sublane-aligned divisor would let
    # us keep large tiles instead of falling back to a single full-extent tile.

    x2d = x_flat.reshape(rows, C).astype(jnp.float32)   # view; no copy for f32

    # Weights padded only on the *output*-channel dim; the projection kernel
    # reads x with its original (unpadded) channel count.
    w_th = _pad_last(params["w_theta"], Chp).astype(compute_dtype)   # (C, Chp)
    w_ph = _pad_last(params["w_phi"], Chp).astype(compute_dtype)
    w_g = _pad_last(params["w_g"], Chp).astype(compute_dtype)
    w_w = _pad_2d(params["w_w"], Chp, Cop).astype(compute_dtype)     # (Chp,Cop)
    b_th = _pad_last(params["b_theta"], Chp).astype(jnp.float32)
    b_ph = _pad_last(params["b_phi"], Chp).astype(jnp.float32)
    b_g = _pad_last(params["b_g"], Chp).astype(jnp.float32)
    b_w = _pad_last(params["b_w"], Cop).astype(jnp.float32)

    # --- Kernel 0: projections, computed once ------------------------------
    rp = _pick_tile(rows, proj_row_tile)
    theta2d, phi2d, g2d = pl.pallas_call(
        _proj_kernel,
        out_shape=(jax.ShapeDtypeStruct((rows, Chp), compute_dtype),) * 3,
        grid=(rows // rp,),
        in_specs=[
            pl.BlockSpec((rp, C), lambda i: (i, 0)),        # x (unpadded f32)
            pl.BlockSpec((C, Chp), lambda i: (0, 0)),       # w_theta
            pl.BlockSpec((C, Chp), lambda i: (0, 0)),       # w_phi
            pl.BlockSpec((C, Chp), lambda i: (0, 0)),       # w_g
            pl.BlockSpec((1, Chp), lambda i: (0, 0)),       # b_theta
            pl.BlockSpec((1, Chp), lambda i: (0, 0)),       # b_phi
            pl.BlockSpec((1, Chp), lambda i: (0, 0)),       # b_g
        ],
        out_specs=(pl.BlockSpec((rp, Chp), lambda i: (i, 0)),) * 3,
        compiler_params=pltpu.CompilerParams(
            dimension_semantics=("parallel",)),
    )(x2d, w_th, w_ph, w_g, b_th, b_ph, b_g)

    theta = theta2d.reshape(B, HW, Chp)   # free reshapes (row-major preserved)
    phi = phi2d.reshape(B, HW, Chp)
    g = g2d.reshape(B, HW, Chp)

    # --- Kernel 1: flash attention + w conv + BN partial stats --------------
    cbytes = jnp.dtype(compute_dtype).itemsize
    cost = pl.CostEstimate(
        flops=4 * B * HW * HW * Chp + 2 * B * HW * Chp * Cop,
        transcendentals=B * HW * (HW + 2 * nk),
        bytes_accessed=(B * HW * Chp * cbytes * (1 + 2 * nq)   # theta + phi/g
                        + B * HW * Cop * cbytes                # wy writeback
                        + B * nq * 8 * Cop * 4                 # stats
                        + Chp * Cop * cbytes + Cop * 4),       # w_w, b_w
    )

    # Note for v7x (2 TCs): B*nq forms the ("parallel","parallel") prefix that
    # gets sharded across cores; B=2 here keeps it balanced.
    wy, stats = pl.pallas_call(
        _nl_flash_kernel,
        out_shape=(jax.ShapeDtypeStruct((B, HW, Cop), compute_dtype),
                   jax.ShapeDtypeStruct((B, nq, 8, Cop), jnp.float32)),
        grid_spec=pltpu.PrefetchScalarGridSpec(
            num_scalar_prefetch=0,
            grid=(B, nq, nk),
            in_specs=[
                pl.BlockSpec((1, tq, Chp), lambda b, qi, ki: (b, qi, 0)),  # theta
                pl.BlockSpec((1, tk, Chp), lambda b, qi, ki: (b, ki, 0)),  # phi
                pl.BlockSpec((1, tk, Chp), lambda b, qi, ki: (b, ki, 0)),  # g
                pl.BlockSpec((Chp, Cop), lambda b, qi, ki: (0, 0)),        # w_w
                pl.BlockSpec((1, Cop), lambda b, qi, ki: (0, 0)),          # b_w
            ],
            out_specs=[
                pl.BlockSpec((1, tq, Cop), lambda b, qi, ki: (b, qi, 0)),
                pl.BlockSpec((1, 1, 8, Cop), lambda b, qi, ki: (b, qi, 0, 0)),
            ],
            scratch_shapes=[
                pltpu.VMEM((tq, 1), jnp.float32),     # running max
                pltpu.VMEM((tq, 1), jnp.float32),     # running denom
                pltpu.VMEM((tq, Chp), jnp.float32),   # un-normalized acc
            ]),
        compiler_params=pltpu.CompilerParams(
            dimension_semantics=("parallel", "parallel", "arbitrary")),
        cost_estimate=cost,
    )(theta, phi, g, w_w, b_w)

    # --- tiny BN statistics combine (training-mode batch stats, biased var) --
    count = B * HW
    s = jnp.sum(stats, axis=(0, 1))                 # (8, Cop)
    mean = s[0] / count
    var = jnp.maximum(s[1] / count - mean * mean, 0.0)
    rstd = jax.lax.rsqrt(var + _BN_EPS)
    # Pad lanes have mean=var=0 -> rstd=1/sqrt(eps); harmless ONLY because
    # gamma/beta are ZERO-padded below (scale=shift=0 on pad lanes), and those
    # lanes are sliced off at the end.  Do not change the padding value.
    gamma = _pad_last(params["bn_gamma"], Cop).astype(jnp.float32)  # (1, Cop)
    beta = _pad_last(params["bn_beta"], Cop).astype(jnp.float32)    # (1, Cop)
    scale = gamma * rstd                                            # (1, Cop)
    shift = beta - gamma * mean * rstd                              # (1, Cop)

    # --- Kernel 2: tiled BN + residual epilogue (lane-dense last dim) -------
    # Residual x is kept f32; the pad below is a no-op whenever C % 128 == 0.
    x_pad = _pad_last(x2d, Cp)                                      # (rows, Cp)
    rt = _pick_tile(rows, bn_row_tile)
    z_rows = pl.pallas_call(
        _bn_residual_kernel,
        out_shape=jax.ShapeDtypeStruct((rows, Cop), jnp.float32),
        grid=(rows // rt,),
        in_specs=[
            pl.BlockSpec((rt, Cp), lambda i: (i, 0)),    # x (f32)
            pl.BlockSpec((rt, Cop), lambda i: (i, 0)),   # wy (bf16)
            pl.BlockSpec((1, Cop), lambda i: (0, 0)),    # scale
            pl.BlockSpec((1, Cop), lambda i: (0, 0)),    # shift
        ],
        out_specs=pl.BlockSpec((rt, Cop), lambda i: (i, 0)),
        compiler_params=pltpu.CompilerParams(
            dimension_semantics=("parallel",)),
    )(x_pad, wy.reshape(rows, Cop), scale, shift)

    return z_rows.reshape(B, HW, Cop)[:, :, :Co]


# ---------------------------------------------------------------------------
# NCHW wrapper (keeps the PyTorch module's interface).  The two transposes are
# full HBM relayouts; channels-last callers should call
# nonlocal_block_channels_last directly.
# ---------------------------------------------------------------------------
def nonlocal_block(x_nchw, params, *, compute_dtype=jnp.bfloat16,
                   tq=512, tk=256):
    B, C, H, W = x_nchw.shape
    x_flat = jnp.transpose(x_nchw.reshape(B, C, H * W), (0, 2, 1))
    z_flat = nonlocal_block_channels_last(
        x_flat, params, compute_dtype=compute_dtype, tq=tq, tk=tk)
    Co = z_flat.shape[-1]
    return jnp.transpose(z_flat, (0, 2, 1)).reshape(B, Co, H, W)


# ---------------------------------------------------------------------------
# Pure-JAX f32 reference (mirrors the PyTorch forward) for validation
# ---------------------------------------------------------------------------
def nonlocal_block_reference(x_nchw, p):
    with jax.default_matmul_precision("highest"):
        B, C, H, W = x_nchw.shape
        HW = H * W
        xf = jnp.transpose(x_nchw.reshape(B, C, HW), (0, 2, 1)).astype(jnp.float32)
        g = xf @ p["w_g"] + p["b_g"]
        phi = xf @ p["w_phi"] + p["b_phi"]
        theta = xf @ p["w_theta"] + p["b_theta"]
        f = jnp.einsum("bqc,bkc->bqk", theta, phi)
        fs = jax.nn.softmax(f, axis=-1)
        y = jnp.einsum("bqk,bkc->bqc", fs, g)
        wy = y @ p["w_w"] + p["b_w"]
        mean = wy.mean(axis=(0, 1), keepdims=True)
        var = ((wy - mean) ** 2).mean(axis=(0, 1), keepdims=True)
        wy = (wy - mean) / jnp.sqrt(var + _BN_EPS) * p["bn_gamma"] + p["bn_beta"]
        z = xf + wy
        return jnp.transpose(z, (0, 2, 1)).reshape(B, -1, H, W)


def init_params(key, ch, out_ch, w_scale=0.1, b_scale=0.1):
    ch_half = ch // 2
    ks = jax.random.split(key, 8)
    # weights stored as (C_in, C_out) so the kernels compute x @ W + b
    return {
        "w_g":     w_scale * jax.random.normal(ks[0], (ch, ch_half), jnp.float32),
        "w_phi":   w_scale * jax.random.normal(ks[1], (ch, ch_half), jnp.float32),
        "w_theta": w_scale * jax.random.normal(ks[2], (ch, ch_half), jnp.float32),
        "w_w":     w_scale * jax.random.normal(ks[3], (ch_half, out_ch), jnp.float32),
        "b_g":     b_scale * jax.random.normal(ks[4], (1, ch_half), jnp.float32),
        "b_phi":   b_scale * jax.random.normal(ks[5], (1, ch_half), jnp.float32),
        "b_theta": b_scale * jax.random.normal(ks[6], (1, ch_half), jnp.float32),
        "b_w":     b_scale * jax.random.normal(ks[7], (1, out_ch), jnp.float32),
        # BatchNorm2d default init: gamma=1, beta=0
        "bn_gamma": jnp.ones((1, out_ch), jnp.float32),
        "bn_beta":  jnp.zeros((1, out_ch), jnp.float32),
    }


if __name__ == "__main__":
    # NonLocalBlock(ch=32) -- the module's default channel count; out_ch = ch.
    B, C, H, W = 2, 32, 16, 16
    key = jax.random.PRNGKey(0)
    kx, kp = jax.random.split(key)
    x = jax.random.normal(kx, (B, C, H, W), jnp.float32)
    params = init_params(kp, C, C)

    fwd = jax.jit(nonlocal_block)
    z = jax.block_until_ready(fwd(x, params))
    assert z.shape == x.shape

    z_ref = jax.block_until_ready(nonlocal_block_reference(x, params))

    # Tolerance note: matmuls run on the MXU in bf16 (f32 accumulation / f32
    # softmax stats), wy is stored in bf16, and training-mode BatchNorm divides
    # by the batch std of the non-local branch, which amplifies bf16-level
    # noise by ~1/std(w_y); at this toy scale the worst element lands around
    # 3-5e-2, hence the 1e-1 bound.  compute_dtype=jnp.float32 reproduces the
    # f32 reference far more tightly; genuine tiling/softmax/BN bugs produce
    # O(1) errors and are still caught.
    np.testing.assert_allclose(np.asarray(z), np.asarray(z_ref),
                               rtol=1e-1, atol=1e-1)
    print("KERNEL_OK")
</pallas_src>

<mosaic_0001>
module attributes {stable_mosaic.version = 11 : i64} {
  func.func @_proj_kernel(%arg0: i32, %arg1: memref<512x32xf32, #tpu.memory_space<vmem>>, %arg2: memref<32x128xbf16, #tpu.memory_space<vmem>>, %arg3: memref<32x128xbf16, #tpu.memory_space<vmem>>, %arg4: memref<32x128xbf16, #tpu.memory_space<vmem>>, %arg5: memref<1x128xf32, #tpu.memory_space<vmem>>, %arg6: memref<1x128xf32, #tpu.memory_space<vmem>>, %arg7: memref<1x128xf32, #tpu.memory_space<vmem>>, %arg8: memref<512x128xbf16, #tpu.memory_space<vmem>>, %arg9: memref<512x128xbf16, #tpu.memory_space<vmem>>, %arg10: memref<512x128xbf16, #tpu.memory_space<vmem>>) attributes {dimension_semantics = [#tpu.dimension_semantics<parallel>], iteration_bounds = array<i64: 1>, scalar_prefetch = 0 : i64, scratch_operands = 0 : i64, tpu.core_type = #tpu.core_type<tc>, window_params = [{transform_indices = @transform_0, window_bounds = array<i64: 512, 32>}, {pipeline_mode = #tpu.pipeline_mode<synchronous>, transform_indices = @transform_1, window_bounds = array<i64: 32, 128>}, {pipeline_mode = #tpu.pipeline_mode<synchronous>, transform_indices = @transform_2, window_bounds = array<i64: 32, 128>}, {pipeline_mode = #tpu.pipeline_mode<synchronous>, transform_indices = @transform_3, window_bounds = array<i64: 32, 128>}, {pipeline_mode = #tpu.pipeline_mode<synchronous>, transform_indices = @transform_4, window_bounds = array<i64: 1, 128>}, {pipeline_mode = #tpu.pipeline_mode<synchronous>, transform_indices = @transform_5, window_bounds = array<i64: 1, 128>}, {pipeline_mode = #tpu.pipeline_mode<synchronous>, transform_indices = @transform_6, window_bounds = array<i64: 1, 128>}, {transform_indices = @transform_7, window_bounds = array<i64: 512, 128>}, {transform_indices = @transform_8, window_bounds = array<i64: 512, 128>}, {transform_indices = @transform_9, window_bounds = array<i64: 512, 128>}]} {
    %c0 = arith.constant 0 : index
    %c0_0 = arith.constant 0 : index
    %0 = vector.load %arg1[%c0, %c0_0] : memref<512x32xf32, #tpu.memory_space<vmem>>, vector<512x32xf32>
    %1 = arith.truncf %0 : vector<512x32xf32> to vector<512x32xbf16>
    %c0_1 = arith.constant 0 : index
    %c0_2 = arith.constant 0 : index
    %2 = vector.load %arg2[%c0_1, %c0_2] : memref<32x128xbf16, #tpu.memory_space<vmem>>, vector<32x128xbf16>
    %cst = arith.constant dense<0.000000e+00> : vector<512x128xf32>
    %3 = tpu.matmul %1, %2, %cst {dimension_numbers = #tpu.dot_dimension_numbers<[1], [0], [0], [1], [0, 0, 1, 1], [], []>} : vector<512x32xbf16>, vector<32x128xbf16>, vector<512x128xf32> -> vector<512x128xf32>
    %c0_3 = arith.constant 0 : index
    %c0_4 = arith.constant 0 : index
    %4 = vector.load %arg5[%c0_3, %c0_4] : memref<1x128xf32, #tpu.memory_space<vmem>>, vector<1x128xf32>
    %5 = vector.broadcast %4 : vector<1x128xf32> to vector<512x128xf32>
    %6 = arith.addf %3, %5 : vector<512x128xf32>
    %c0_5 = arith.constant 0 : index
    %c0_6 = arith.constant 0 : index
    %7 = vector.load %arg3[%c0_5, %c0_6] : memref<32x128xbf16, #tpu.memory_space<vmem>>, vector<32x128xbf16>
    %cst_7 = arith.constant dense<0.000000e+00> : vector<512x128xf32>
    %8 = tpu.matmul %1, %7, %cst_7 {dimension_numbers = #tpu.dot_dimension_numbers<[1], [0], [0], [1], [0, 0, 1, 1], [], []>} : vector<512x32xbf16>, vector<32x128xbf16>, vector<512x128xf32> -> vector<512x128xf32>
    %c0_8 = arith.constant 0 : index
    %c0_9 = arith.constant 0 : index
    %9 = vector.load %arg6[%c0_8, %c0_9] : memref<1x128xf32, #tpu.memory_space<vmem>>, vector<1x128xf32>
    %10 = vector.broadcast %9 : vector<1x128xf32> to vector<512x128xf32>
    %11 = arith.addf %8, %10 : vector<512x128xf32>
    %c0_10 = arith.constant 0 : index
    %c0_11 = arith.constant 0 : index
    %12 = vector.load %arg4[%c0_10, %c0_11] : memref<32x128xbf16, #tpu.memory_space<vmem>>, vector<32x128xbf16>
    %cst_12 = arith.constant dense<0.000000e+00> : vector<512x128xf32>
    %13 = tpu.matmul %1, %12, %cst_12 {dimension_numbers = #tpu.dot_dimension_numbers<[1], [0], [0], [1], [0, 0, 1, 1], [], []>} : vector<512x32xbf16>, vector<32x128xbf16>, vector<512x128xf32> -> vector<512x128xf32>
    %c0_13 = arith.constant 0 : index
    %c0_14 = arith.constant 0 : index
    %14 = vector.load %arg7[%c0_13, %c0_14] : memref<1x128xf32, #tpu.memory_space<vmem>>, vector<1x128xf32>
    %15 = vector.broadcast %14 : vector<1x128xf32> to vector<512x128xf32>
    %16 = arith.addf %13, %15 : vector<512x128xf32>
    %17 = arith.truncf %6 : vector<512x128xf32> to vector<512x128xbf16>
    %c0_15 = arith.constant 0 : index
    %c0_16 = arith.constant 0 : index
    %18 = vector.load %arg8[%c0_15, %c0_16] : memref<512x128xbf16, #tpu.memory_space<vmem>>, vector<512x128xbf16>
    tpu.vector_store %arg8[%c0_15, %c0_16], %17 {strides = array<i32>} : memref<512x128xbf16, #tpu.memory_space<vmem>>, vector<512x128xbf16>,
    %19 = arith.truncf %11 : vector<512x128xf32> to vector<512x128xbf16>
    %c0_17 = arith.constant 0 : index
    %c0_18 = arith.constant 0 : index
    %20 = vector.load %arg9[%c0_17, %c0_18] : memref<512x128xbf16, #tpu.memory_space<vmem>>, vector<512x128xbf16>
    tpu.vector_store %arg9[%c0_17, %c0_18], %19 {strides = array<i32>} : memref<512x128xbf16, #tpu.memory_space<vmem>>, vector<512x128xbf16>,
    %21 = arith.truncf %16 : vector<512x128xf32> to vector<512x128xbf16>
    %c0_19 = arith.constant 0 : index
    %c0_20 = arith.constant 0 : index
    %22 = vector.load %arg10[%c0_19, %c0_20] : memref<512x128xbf16, #tpu.memory_space<vmem>>, vector<512x128xbf16>
    tpu.vector_store %arg10[%c0_19, %c0_20], %21 {strides = array<i32>} : memref<512x128xbf16, #tpu.memory_space<vmem>>, vector<512x128xbf16>,
    return
  }
  func.func @transform_0(%arg0: i32) -> (i32, i32) {
    %c0_i32 = arith.constant 0 : i32
    %c0_i32_0 = arith.constant 0 : i32
    return %arg0, %c0_i32 : i32, i32
  }
  func.func @transform_1(%arg0: i32) -> (i32, i32) {
    %c0_i32 = arith.constant 0 : i32
    %c0_i32_0 = arith.constant 0 : i32
    %c0_i32_1 = arith.constant 0 : i32
    return %c0_i32, %c0_i32_0 : i32, i32
  }
  func.func @transform_2(%arg0: i32) -> (i32, i32) {
    %c0_i32 = arith.constant 0 : i32
    %c0_i32_0 = arith.constant 0 : i32
    %c0_i32_1 = arith.constant 0 : i32
    return %c0_i32, %c0_i32_0 : i32, i32
  }
  func.func @transform_3(%arg0: i32) -> (i32, i32) {
    %c0_i32 = arith.constant 0 : i32
    %c0_i32_0 = arith.constant 0 : i32
    %c0_i32_1 = arith.constant 0 : i32
    return %c0_i32, %c0_i32_0 : i32, i32
  }
  func.func @transform_4(%arg0: i32) -> (i32, i32) {
    %c0_i32 = arith.constant 0 : i32
    %c0_i32_0 = arith.constant 0 : i32
    %c0_i32_1 = arith.constant 0 : i32
    return %c0_i32, %c0_i32_0 : i32, i32
  }
  func.func @transform_5(%arg0: i32) -> (i32, i32) {
    %c0_i32 = arith.constant 0 : i32
    %c0_i32_0 = arith.constant 0 : i32
    %c0_i32_1 = arith.constant 0 : i32
    return %c0_i32, %c0_i32_0 : i32, i32
  }
  func.func @transform_6(%arg0: i32) -> (i32, i32) {
    %c0_i32 = arith.constant 0 : i32
    %c0_i32_0 = arith.constant 0 : i32
    %c0_i32_1 = arith.constant 0 : i32
    return %c0_i32, %c0_i32_0 : i32, i32
  }
  func.func @transform_7(%arg0: i32) -> (i32, i32) {
    %c0_i32 = arith.constant 0 : i32
    %c0_i32_0 = arith.constant 0 : i32
    return %arg0, %c0_i32 : i32, i32
  }
  func.func @transform_8(%arg0: i32) -> (i32, i32) {
    %c0_i32 = arith.constant 0 : i32
    %c0_i32_0 = arith.constant 0 : i32
    return %arg0, %c0_i32 : i32, i32
  }
  func.func @transform_9(%arg0: i32) -> (i32, i32) {
    %c0_i32 = arith.constant 0 : i32
    %c0_i32_0 = arith.constant 0 : i32
    return %arg0, %c0_i32 : i32, i32
  }
}

module attributes {stable_mosaic.version = 11 : i64} {
  func.func @_bn_residual_kernel(%arg0: i32, %arg1: memref<512x128xf32, #tpu.memory_space<vmem>>, %arg2: memref<512x128xbf16, #tpu.memory_space<vmem>>, %arg3: memref<1x128xf32, #tpu.memory_space<vmem>>, %arg4: memref<1x128xf32, #tpu.memory_space<vmem>>, %arg5: memref<512x128xf32, #tpu.memory_space<vmem>>) attributes {dimension_semantics = [#tpu.dimension_semantics<parallel>], iteration_bounds = array<i64: 1>, scalar_prefetch = 0 : i64, scratch_operands = 0 : i64, tpu.core_type = #tpu.core_type<tc>, window_params = [{transform_indices = @transform_0, window_bounds = array<i64: 512, 128>}, {transform_indices = @transform_1, window_bounds = array<i64: 512, 128>}, {pipeline_mode = #tpu.pipeline_mode<synchronous>, transform_indices = @transform_2, window_bounds = array<i64: 1, 128>}, {pipeline_mode = #tpu.pipeline_mode<synchronous>, transform_indices = @transform_3, window_bounds = array<i64: 1, 128>}, {transform_indices = @transform_4, window_bounds = array<i64: 512, 128>}]} {
    %c0 = arith.constant 0 : index
    %c0_0 = arith.constant 0 : index
    %0 = vector.load %arg1[%c0, %c0_0] : memref<512x128xf32, #tpu.memory_space<vmem>>, vector<512x128xf32>
    %c0_1 = arith.constant 0 : index
    %c0_2 = arith.constant 0 : index
    %1 = vector.load %arg2[%c0_1, %c0_2] : memref<512x128xbf16, #tpu.memory_space<vmem>>, vector<512x128xbf16>
    %2 = arith.extf %1 : vector<512x128xbf16> to vector<512x128xf32>
    %c0_3 = arith.constant 0 : index
    %c0_4 = arith.constant 0 : index
    %3 = vector.load %arg3[%c0_3, %c0_4] : memref<1x128xf32, #tpu.memory_space<vmem>>, vector<1x128xf32>
    %4 = vector.broadcast %3 : vector<1x128xf32> to vector<512x128xf32>
    %5 = arith.mulf %2, %4 : vector<512x128xf32>
    %6 = arith.addf %0, %5 : vector<512x128xf32>
    %c0_5 = arith.constant 0 : index
    %c0_6 = arith.constant 0 : index
    %7 = vector.load %arg4[%c0_5, %c0_6] : memref<1x128xf32, #tpu.memory_space<vmem>>, vector<1x128xf32>
    %8 = vector.broadcast %7 : vector<1x128xf32> to vector<512x128xf32>
    %9 = arith.addf %6, %8 : vector<512x128xf32>
    %c0_7 = arith.constant 0 : index
    %c0_8 = arith.constant 0 : index
    %10 = vector.load %arg5[%c0_7, %c0_8] : memref<512x128xf32, #tpu.memory_space<vmem>>, vector<512x128xf32>
    tpu.vector_store %arg5[%c0_7, %c0_8], %9 {strides = array<i32>} : memref<512x128xf32, #tpu.memory_space<vmem>>, vector<512x128xf32>,
    return
  }
  func.func @transform_0(%arg0: i32) -> (i32, i32) {
    %c0_i32 = arith.constant 0 : i32
    %c0_i32_0 = arith.constant 0 : i32
    return %arg0, %c0_i32 : i32, i32
  }
  func.func @transform_1(%arg0: i32) -> (i32, i32) {
    %c0_i32 = arith.constant 0 : i32
    %c0_i32_0 = arith.constant 0 : i32
    return %arg0, %c0_i32 : i32, i32
  }
  func.func @transform_2(%arg0: i32) -> (i32, i32) {
    %c0_i32 = arith.constant 0 : i32
    %c0_i32_0 = arith.constant 0 : i32
    %c0_i32_1 = arith.constant 0 : i32
    return %c0_i32, %c0_i32_0 : i32, i32
  }
  func.func @transform_3(%arg0: i32) -> (i32, i32) {
    %c0_i32 = arith.constant 0 : i32
    %c0_i32_0 = arith.constant 0 : i32
    %c0_i32_1 = arith.constant 0 : i32
    return %c0_i32, %c0_i32_0 : i32, i32
  }
  func.func @transform_4(%arg0: i32) -> (i32, i32) {
    %c0_i32 = arith.constant 0 : i32
    %c0_i32_0 = arith.constant 0 : i32
    return %arg0, %c0_i32 : i32, i32
  }
}

module attributes {stable_mosaic.version = 11 : i64} {
  func.func @_nl_flash_kernel(%arg0: i32, %arg1: i32, %arg2: i32, %arg3: memref<1x256x128xbf16, #tpu.memory_space<vmem>>, %arg4: memref<1x256x128xbf16, #tpu.memory_space<vmem>>, %arg5: memref<1x256x128xbf16, #tpu.memory_space<vmem>>, %arg6: memref<128x128xbf16, #tpu.memory_space<vmem>>, %arg7: memref<1x128xf32, #tpu.memory_space<vmem>>, %arg8: memref<1x256x128xbf16, #tpu.memory_space<vmem>>, %arg9: memref<1x1x8x128xf32, #tpu.memory_space<vmem>>, %arg10: memref<256x1xf32, #tpu.memory_space<vmem>>, %arg11: memref<256x1xf32, #tpu.memory_space<vmem>>, %arg12: memref<256x128xf32, #tpu.memory_space<vmem>>) attributes {dimension_semantics = [#tpu.dimension_semantics<parallel>, #tpu.dimension_semantics<parallel>, #tpu.dimension_semantics<arbitrary>], iteration_bounds = array<i64: 2, 1, 1>, scalar_prefetch = 0 : i64, scratch_operands = 3 : i64, tpu.core_type = #tpu.core_type<tc>, window_params = [{transform_indices = @transform_0, window_bounds = array<i64: 1, 256, 128>}, {transform_indices = @transform_1, window_bounds = array<i64: 1, 256, 128>}, {transform_indices = @transform_2, window_bounds = array<i64: 1, 256, 128>}, {pipeline_mode = #tpu.pipeline_mode<synchronous>, transform_indices = @transform_3, window_bounds = array<i64: 128, 128>}, {pipeline_mode = #tpu.pipeline_mode<synchronous>, transform_indices = @transform_4, window_bounds = array<i64: 1, 128>}, {transform_indices = @transform_5, window_bounds = array<i64: 1, 256, 128>}, {transform_indices = @transform_6, window_bounds = array<i64: 1, 1, 8, 128>}]} {
    %c0_i32 = arith.constant 0 : i32
    %0 = arith.cmpi eq, %arg2, %c0_i32 : i32
    %1 = arith.extui %0 : i1 to i32
    %c0_i32_0 = arith.constant 0 : i32
    %2 = arith.cmpi ne, %1, %c0_i32_0 : i32
    scf.if %2 {
      %cst_26 = arith.constant 0xFF800000 : f32
      %36 = vector.broadcast %cst_26 : f32 to vector<256x1xf32>
      %c0_27 = arith.constant 0 : index
      %c0_28 = arith.constant 0 : index
      %37 = vector.load %arg10[%c0_27, %c0_28] : memref<256x1xf32, #tpu.memory_space<vmem>>, vector<256x1xf32>
      tpu.vector_store %arg10[%c0_27, %c0_28], %36 {strides = array<i32>} : memref<256x1xf32, #tpu.memory_space<vmem>>, vector<256x1xf32>,
      %cst_29 = arith.constant 0.000000e+00 : f32
      %38 = vector.broadcast %cst_29 : f32 to vector<256x1xf32>
      %c0_30 = arith.constant 0 : index
      %c0_31 = arith.constant 0 : index
      %39 = vector.load %arg11[%c0_30, %c0_31] : memref<256x1xf32, #tpu.memory_space<vmem>>, vector<256x1xf32>
      tpu.vector_store %arg11[%c0_30, %c0_31], %38 {strides = array<i32>} : memref<256x1xf32, #tpu.memory_space<vmem>>, vector<256x1xf32>,
      %cst_32 = arith.constant 0.000000e+00 : f32
      %40 = vector.broadcast %cst_32 : f32 to vector<256x128xf32>
      %c0_33 = arith.constant 0 : index
      %c0_34 = arith.constant 0 : index
      %41 = vector.load %arg12[%c0_33, %c0_34] : memref<256x128xf32, #tpu.memory_space<vmem>>, vector<256x128xf32>
      tpu.vector_store %arg12[%c0_33, %c0_34], %40 {strides = array<i32>} : memref<256x128xf32, #tpu.memory_space<vmem>>, vector<256x128xf32>,
    } else {
    }
    %c0 = arith.constant 0 : index
    %c0_1 = arith.constant 0 : index
    %c0_2 = arith.constant 0 : index
    %3 = vector.load %arg3[%c0, %c0_1, %c0_2] : memref<1x256x128xbf16, #tpu.memory_space<vmem>>, vector<1x256x128xbf16>
    %4 = vector.shape_cast %3 : vector<1x256x128xbf16> to vector<256x128xbf16>
    %c0_3 = arith.constant 0 : index
    %c0_4 = arith.constant 0 : index
    %c0_5 = arith.constant 0 : index
    %5 = vector.load %arg4[%c0_3, %c0_4, %c0_5] : memref<1x256x128xbf16, #tpu.memory_space<vmem>>, vector<1x256x128xbf16>
    %6 = vector.shape_cast %5 : vector<1x256x128xbf16> to vector<256x128xbf16>
    %c0_6 = arith.constant 0 : index
    %c0_7 = arith.constant 0 : index
    %c0_8 = arith.constant 0 : index
    %7 = vector.load %arg5[%c0_6, %c0_7, %c0_8] : memref<1x256x128xbf16, #tpu.memory_space<vmem>>, vector<1x256x128xbf16>
    %8 = vector.shape_cast %7 : vector<1x256x128xbf16> to vector<256x128xbf16>
    %cst = arith.constant dense<0.000000e+00> : vector<256x256xf32>
    %9 = tpu.matmul %4, %6, %cst {dimension_numbers = #tpu.dot_dimension_numbers<[1], [1], [0], [0], [0, 0, 1, 0], [], []>} : vector<256x128xbf16>, vector<256x128xbf16>, vector<256x256xf32> -> vector<256x256xf32>
    %c0_9 = arith.constant 0 : index
    %c0_10 = arith.constant 0 : index
    %10 = vector.load %arg10[%c0_9, %c0_10] : memref<256x1xf32, #tpu.memory_space<vmem>>, vector<256x1xf32>
    %cst_11 = arith.constant dense<0xFF800000> : vector<256xf32>
    %11 = vector.multi_reduction <maximumf>, %9, %cst_11 [1] : vector<256x256xf32> to vector<256xf32>
    %12 = vector.shape_cast %11 : vector<256xf32> to vector<256x1xf32>
    %13 = arith.maximumf %10, %12 : vector<256x1xf32>
    %14 = arith.subf %10, %13 : vector<256x1xf32>
    %15 = math.exp %14 : vector<256x1xf32>
    %16 = vector.broadcast %13 : vector<256x1xf32> to vector<256x256xf32>
    %17 = arith.subf %9, %16 : vector<256x256xf32>
    %18 = math.exp %17 : vector<256x256xf32>
    %c0_12 = arith.constant 0 : index
    %c0_13 = arith.constant 0 : index
    %19 = vector.load %arg11[%c0_12, %c0_13] : memref<256x1xf32, #tpu.memory_space<vmem>>, vector<256x1xf32>
    %20 = arith.mulf %15, %19 : vector<256x1xf32>
    %cst_14 = arith.constant dense<0.000000e+00> : vector<256xf32>
    %21 = vector.multi_reduction <add>, %18, %cst_14 [1] : vector<256x256xf32> to vector<256xf32>
    %22 = vector.shape_cast %21 : vector<256xf32> to vector<256x1xf32>
    %23 = arith.addf %20, %22 : vector<256x1xf32>
    %c0_15 = arith.constant 0 : index
    %c0_16 = arith.constant 0 : index
    %24 = vector.load %arg11[%c0_15, %c0_16] : memref<256x1xf32, #tpu.memory_space<vmem>>, vector<256x1xf32>
    tpu.vector_store %arg11[%c0_15, %c0_16], %23 {strides = array<i32>} : memref<256x1xf32, #tpu.memory_space<vmem>>, vector<256x1xf32>,
    %c0_17 = arith.constant 0 : index
    %c0_18 = arith.constant 0 : index
    %25 = vector.load %arg12[%c0_17, %c0_18] : memref<256x128xf32, #tpu.memory_space<vmem>>, vector<256x128xf32>
    %26 = vector.broadcast %15 : vector<256x1xf32> to vector<256x128xf32>
    %27 = arith.mulf %26, %25 : vector<256x128xf32>
    %28 = arith.truncf %18 : vector<256x256xf32> to vector<256x256xbf16>
    %cst_19 = arith.constant dense<0.000000e+00> : vector<256x128xf32>
    %29 = tpu.matmul %28, %8, %cst_19 {dimension_numbers = #tpu.dot_dimension_numbers<[1], [0], [0], [1], [0, 0, 1, 1], [], []>} : vector<256x256xbf16>, vector<256x128xbf16>, vector<256x128xf32> -> vector<256x128xf32>
    %30 = arith.addf %27, %29 : vector<256x128xf32>
    %c0_20 = arith.constant 0 : index
    %c0_21 = arith.constant 0 : index
    %31 = vector.load %arg12[%c0_20, %c0_21] : memref<256x128xf32, #tpu.memory_space<vmem>>, vector<256x128xf32>
    tpu.vector_store %arg12[%c0_20, %c0_21], %30 {strides = array<i32>} : memref<256x128xf32, #tpu.memory_space<vmem>>, vector<256x128xf32>,
    %c0_22 = arith.constant 0 : index
    %c0_23 = arith.constant 0 : index
    %32 = vector.load %arg10[%c0_22, %c0_23] : memref<256x1xf32, #tpu.memory_space<vmem>>, vector<256x1xf32>
    tpu.vector_store %arg10[%c0_22, %c0_23], %13 {strides = array<i32>} : memref<256x1xf32, #tpu.memory_space<vmem>>, vector<256x1xf32>,
    %c0_i32_24 = arith.constant 0 : i32
    %33 = arith.cmpi eq, %arg2, %c0_i32_24 : i32
    %34 = arith.extui %33 : i1 to i32
    %c0_i32_25 = arith.constant 0 : i32
    %35 = arith.cmpi ne, %34, %c0_i32_25 : i32
    scf.if %35 {
      %c0_26 = arith.constant 0 : index
      %c0_27 = arith.constant 0 : index
      %36 = vector.load %arg12[%c0_26, %c0_27] : memref<256x128xf32, #tpu.memory_space<vmem>>, vector<256x128xf32>
      %c0_28 = arith.constant 0 : index
      %c0_29 = arith.constant 0 : index
      %37 = vector.load %arg11[%c0_28, %c0_29] : memref<256x1xf32, #tpu.memory_space<vmem>>, vector<256x1xf32>
      %38 = vector.broadcast %37 : vector<256x1xf32> to vector<256x128xf32>
      %39 = arith.divf %36, %38 : vector<256x128xf32>
      %40 = arith.truncf %39 : vector<256x128xf32> to vector<256x128xbf16>
      %c0_30 = arith.constant 0 : index
      %c0_31 = arith.constant 0 : index
      %41 = vector.load %arg6[%c0_30, %c0_31] : memref<128x128xbf16, #tpu.memory_space<vmem>>, vector<128x128xbf16>
      %cst_32 = arith.constant dense<0.000000e+00> : vector<256x128xf32>
      %42 = tpu.matmul %40, %41, %cst_32 {dimension_numbers = #tpu.dot_dimension_numbers<[1], [0], [0], [1], [0, 0, 1, 1], [], []>} : vector<256x128xbf16>, vector<128x128xbf16>, vector<256x128xf32> -> vector<256x128xf32>
      %c0_33 = arith.constant 0 : index
      %c0_34 = arith.constant 0 : index
      %43 = vector.load %arg7[%c0_33, %c0_34] : memref<1x128xf32, #tpu.memory_space<vmem>>, vector<1x128xf32>
      %44 = vector.broadcast %43 : vector<1x128xf32> to vector<256x128xf32>
      %45 = arith.addf %42, %44 : vector<256x128xf32>
      %46 = arith.truncf %45 : vector<256x128xf32> to vector<256x128xbf16>
      %c0_35 = arith.constant 0 : index
      %c0_36 = arith.constant 0 : index
      %c0_37 = arith.constant 0 : index
      %47 = vector.load %arg8[%c0_35, %c0_36, %c0_37] : memref<1x256x128xbf16, #tpu.memory_space<vmem>>, vector<1x256x128xbf16>
      %48 = vector.shape_cast %47 : vector<1x256x128xbf16> to vector<256x128xbf16>
      %49 = vector.shape_cast %46 : vector<256x128xbf16> to vector<1x256x128xbf16>
      tpu.vector_store %arg8[%c0_35, %c0_36, %c0_37], %49 {strides = array<i32>} : memref<1x256x128xbf16, #tpu.memory_space<vmem>>, vector<1x256x128xbf16>,
      %cst_38 = arith.constant dense<0.000000e+00> : vector<128xf32>
      %50 = vector.multi_reduction <add>, %45, %cst_38 [0] : vector<256x128xf32> to vector<128xf32>
      %51 = vector.shape_cast %50 : vector<128xf32> to vector<1x128xf32>
      %52 = arith.mulf %45, %45 : vector<256x128xf32>
      %cst_39 = arith.constant dense<0.000000e+00> : vector<128xf32>
      %53 = vector.multi_reduction <add>, %52, %cst_39 [0] : vector<256x128xf32> to vector<128xf32>
      %54 = vector.shape_cast %53 : vector<128xf32> to vector<1x128xf32>
      %cst_40 = arith.constant 0.000000e+00 : f32
      %55 = vector.broadcast %cst_40 : f32 to vector<6x128xf32>
      %56 = tpu.concatenate %51, %54, %55 in 0 : vector<1x128xf32>, vector<1x128xf32>, vector<6x128xf32> -> vector<8x128xf32>
      %57 = vector.shape_cast %56 : vector<8x128xf32> to vector<1x1x8x128xf32>
      %c0_41 = arith.constant 0 : index
      %c0_42 = arith.constant 0 : index
      %c0_43 = arith.constant 0 : index
      %c0_44 = arith.constant 0 : index
      %58 = vector.load %arg9[%c0_41, %c0_42, %c0_43, %c0_44] : memref<1x1x8x128xf32, #tpu.memory_space<vmem>>, vector<1x1x8x128xf32>
      tpu.vector_store %arg9[%c0_41, %c0_42, %c0_43, %c0_44], %57 {strides = array<i32>} : memref<1x1x8x128xf32, #tpu.memory_space<vmem>>, vector<1x1x8x128xf32>,
    } else {
    }
    return
  }
  func.func @transform_0(%arg0: i32, %arg1: i32, %arg2: i32) -> (i32, i32, i32) {
    %c0_i32 = arith.constant 0 : i32
    %c0_i32_0 = arith.constant 0 : i32
    return %arg0, %arg1, %c0_i32 : i32, i32, i32
  }
  func.func @transform_1(%arg0: i32, %arg1: i32, %arg2: i32) -> (i32, i32, i32) {
    %c0_i32 = arith.constant 0 : i32
    %c0_i32_0 = arith.constant 0 : i32
    return %arg0, %arg2, %c0_i32 : i32, i32, i32
  }
  func.func @transform_2(%arg0: i32, %arg1: i32, %arg2: i32) -> (i32, i32, i32) {
    %c0_i32 = arith.constant 0 : i32
    %c0_i32_0 = arith.constant 0 : i32
    return %arg0, %arg2, %c0_i32 : i32, i32, i32
  }
  func.func @transform_3(%arg0: i32, %arg1: i32, %arg2: i32) -> (i32, i32) {
    %c0_i32 = arith.constant 0 : i32
    %c0_i32_0 = arith.constant 0 : i32
    %c0_i32_1 = arith.constant 0 : i32
    return %c0_i32, %c0_i32_0 : i32, i32
  }
  func.func @transform_4(%arg0: i32, %arg1: i32, %arg2: i32) -> (i32, i32) {
    %c0_i32 = arith.constant 0 : i32
    %c0_i32_0 = arith.constant 0 : i32
    %c0_i32_1 = arith.constant 0 : i32
    return %c0_i32, %c0_i32_0 : i32, i32
  }
  func.func @transform_5(%arg0: i32, %arg1: i32, %arg2: i32) -> (i32, i32, i32) {
    %c0_i32 = arith.constant 0 : i32
    %c0_i32_0 = arith.constant 0 : i32
    return %arg0, %arg1, %c0_i32 : i32, i32, i32
  }
  func.func @transform_6(%arg0: i32, %arg1: i32, %arg2: i32) -> (i32, i32, i32, i32) {
    %c0_i32 = arith.constant 0 : i32
    %c0_i32_0 = arith.constant 0 : i32
    %c0_i32_1 = arith.constant 0 : i32
    return %arg0, %arg1, %c0_i32, %c0_i32_0 : i32, i32, i32, i32
  }
}

</mosaic_0001>

<llo_original>
// kernel: nonlocal_block.5
$region0: #{nonlocal_block.5}
  #allocation0 [shape = 'u32[]', space=smem, size = 0x4, offset = 0x4, fixed_abs, tag = 'smem constant byte address 0x4 - core index']
  #allocation1 [shape = 'u32[72,128]{1,0:T(1,128)}', space=vmem, size = 0x9000, scoped, tag = 'internal scratch']
  %s0 = inlined_call_operand.vmem [shape: f32[512,128], index: 0, kind: input, shape index: {}]
  %s1 = inlined_call_operand.vmem [shape: bf16[512,128], index: 1, kind: input, shape index: {}]
  %s2 = inlined_call_operand.vmem [shape: f32[1,128], index: 2, kind: input, shape index: {}]
  %s3 = inlined_call_operand.vmem [shape: f32[1,128], index: 3, kind: input, shape index: {}]
  %s4 = inlined_call_operand.hbm [shape: f32[512,128], index: 4, kind: output, shape index: {}]
  %s5 = sld [smem:[#allocation0]]
  $region26: #{nonlocal_block.5} parent=0
    _
  %s7 = ssub.s32 1, %s5
  %s8 = scalar_select 0, %s7, %s5
  $region1: #{nonlocal_block.5} parent=0
    #allocation2 [shape = 'u8[262144]{0}', space=vmem, size = 0x40000, scoped, tag = 'output window, operand 0, single buffered']
    #allocation3 [shape = 's32[1]{0}', space=sflag, size = 0x4, scoped, tag = 'scoped memory for nonlocal_block.5']
    %9 = vsyncpa [#allocation3], 0
    // Predicated region
    $region2: #{nonlocal_block.5} parent=1 // pred_check
      _
    $region3: #{nonlocal_block.5} parent=1 // pred_check_branch
      %11 = sbr.rel (0) target = $region5
    $region4: #{nonlocal_block.5} parent=1 // pred_region
      _
    $region5: #{nonlocal_block.5} parent=1 // pred_fallthru
      _
    // Predicated region
    $region6: #{nonlocal_block.5} parent=1 // pred_check
      _
    $region7: #{nonlocal_block.5} parent=1 // pred_check_branch
      %13 = sbr.rel (0) target = $region9
    $region8: #{nonlocal_block.5} parent=1 // pred_region
      _
    $region9: #{nonlocal_block.5} parent=1 // pred_fallthru
      _
    // Predicated region
    $region10: #{nonlocal_block.5} parent=1 // pred_check
      _
    $region11: #{nonlocal_block.5} parent=1 // pred_check_branch
      %15 = sbr.rel (0) target = $region13
    $region12: #{nonlocal_block.5} parent=1 // pred_region
      _
    $region13: #{nonlocal_block.5} parent=1 // pred_fallthru
      _
    // Predicated region
    $region14: #{nonlocal_block.5} parent=1 // pred_check
      _
    $region15: #{nonlocal_block.5} parent=1 // pred_check_branch
      %17 = sbr.rel (0) target = $region17
    $region16: #{nonlocal_block.5} parent=1 // pred_region
      _
    $region17: #{nonlocal_block.5} parent=1 // pred_fallthru
      _
    %v18 = vld [vmem:[%s0] sm:$0xff]
    %v19 = vld [vmem:[%s0 + $0x8] sm:$0xff]
    %v20 = vld [vmem:[%s0 + $0x10] sm:$0xff]
    %v21 = vld [vmem:[%s0 + $0x18] sm:$0xff]
    %v22 = vld [vmem:[%s0 + $0x20] sm:$0xff]
    %v23 = vld [vmem:[%s0 + $0x28] sm:$0xff]
    %v24 = vld [vmem:[%s0 + $0x30] sm:$0xff]
    %v25 = vld [vmem:[%s0 + $0x38] sm:$0xff]
    %v26 = vld [vmem:[%s0 + $0x40] sm:$0xff]
    %v27 = vld [vmem:[%s0 + $0x48] sm:$0xff]
    %v28 = vld [vmem:[%s0 + $0x50] sm:$0xff]
    %v29 = vld [vmem:[%s0 + $0x58] sm:$0xff]
    %v30 = vld [vmem:[%s0 + $0x60] sm:$0xff]
    %v31 = vld [vmem:[%s0 + $0x68] sm:$0xff]
    %v32 = vld [vmem:[%s0 + $0x70] sm:$0xff]
    %v33 = vld [vmem:[%s0 + $0x78] sm:$0xff]
    %v34 = vld [vmem:[%s0 + $0x80] sm:$0xff]
    %v35 = vld [vmem:[%s0 + $0x88] sm:$0xff]
    %v36 = vld [vmem:[%s0 + $0x90] sm:$0xff]
    %v37 = vld [vmem:[%s0 + $0x98] sm:$0xff]
    %v38 = vld [vmem:[%s0 + $0xa0] sm:$0xff]
    %v39 = vld [vmem:[%s0 + $0xa8] sm:$0xff]
    %v40 = vld [vmem:[%s0 + $0xb0] sm:$0xff]
    %v41 = vld [vmem:[%s0 + $0xb8] sm:$0xff]
    %v42 = vld [vmem:[%s0 + $0xc0] sm:$0xff]
    %v43 = vld [vmem:[%s0 + $0xc8] sm:$0xff]
    %v44 = vld [vmem:[%s0 + $0xd0] sm:$0xff]
    %v45 = vld [vmem:[%s0 + $0xd8] sm:$0xff]
    %v46 = vld [vmem:[%s0 + $0xe0] sm:$0xff]
    %v47 = vld [vmem:[%s0 + $0xe8] sm:$0xff]
    %v48 = vld [vmem:[%s0 + $0xf0] sm:$0xff]
    %v49 = vld [vmem:[%s0 + $0xf8] sm:$0xff]
    %v50 = vld [vmem:[%s0 + $0x100] sm:$0xff]
    %v51 = vld [vmem:[%s0 + $0x108] sm:$0xff]
    %v52 = vld [vmem:[%s0 + $0x110] sm:$0xff]
    %v53 = vld [vmem:[%s0 + $0x118] sm:$0xff]
    %v54 = vld [vmem:[%s0 + $0x120] sm:$0xff]
    %v55 = vld [vmem:[%s0 + $0x128] sm:$0xff]
    %v56 = vld [vmem:[%s0 + $0x130] sm:$0xff]
    %v57 = vld [vmem:[%s0 + $0x138] sm:$0xff]
    %v58 = vld [vmem:[%s0 + $0x140] sm:$0xff]
    %v59 = vld [vmem:[%s0 + $0x148] sm:$0xff]
    %v60 = vld [vmem:[%s0 + $0x150] sm:$0xff]
    %v61 = vld [vmem:[%s0 + $0x158] sm:$0xff]
    %v62 = vld [vmem:[%s0 + $0x160] sm:$0xff]
    %v63 = vld [vmem:[%s0 + $0x168] sm:$0xff]
    %v64 = vld [vmem:[%s0 + $0x170] sm:$0xff]
    %v65 = vld [vmem:[%s0 + $0x178] sm:$0xff]
    %v66 = vld [vmem:[%s0 + $0x180] sm:$0xff]
    %v67 = vld [vmem:[%s0 + $0x188] sm:$0xff]
    %v68 = vld [vmem:[%s0 + $0x190] sm:$0xff]
    %v69 = vld [vmem:[%s0 + $0x198] sm:$0xff]
    %v70 = vld [vmem:[%s0 + $0x1a0] sm:$0xff]
    %v71 = vld [vmem:[%s0 + $0x1a8] sm:$0xff]
    %v72 = vld [vmem:[%s0 + $0x1b0] sm:$0xff]
    %v73 = vld [vmem:[%s0 + $0x1b8] sm:$0xff]
    %v74 = vld [vmem:[%s0 + $0x1c0] sm:$0xff]
    %v75 = vld [vmem:[%s0 + $0x1c8] sm:$0xff]
    %v76 = vld [vmem:[%s0 + $0x1d0] sm:$0xff]
    %v77 = vld [vmem:[%s0 + $0x1d8] sm:$0xff]
    %v78 = vld [vmem:[%s0 + $0x1e0] sm:$0xff]
    %v79 = vld [vmem:[%s0 + $0x1e8] sm:$0xff]
    %v80 = vld [vmem:[%s0 + $0x1f0] sm:$0xff]
    %v81 = vld [vmem:[%s0 + $0x1f8] sm:$0xff]
    %v82 = vld [vmem:[%s1] sm:$0xf]
    %v83 = vld [vmem:[%s1 + $0x4] sm:$0xf]
    %v84 = vld [vmem:[%s1 + $0x8] sm:$0xf]
    %v85 = vld [vmem:[%s1 + $0xc] sm:$0xf]
    %v86 = vld [vmem:[%s1 + $0x10] sm:$0xf]
    %v87 = vld [vmem:[%s1 + $0x14] sm:$0xf]
    %v88 = vld [vmem:[%s1 + $0x18] sm:$0xf]
    %v89 = vld [vmem:[%s1 + $0x1c] sm:$0xf]
    %v90 = vld [vmem:[%s1 + $0x20] sm:$0xf]
    %v91 = vld [vmem:[%s1 + $0x24] sm:$0xf]
    %v92 = vld [vmem:[%s1 + $0x28] sm:$0xf]
    %v93 = vld [vmem:[%s1 + $0x2c] sm:$0xf]
    %v94 = vld [vmem:[%s1 + $0x30] sm:$0xf]
    %v95 = vld [vmem:[%s1 + $0x34] sm:$0xf]
    %v96 = vld [vmem:[%s1 + $0x38] sm:$0xf]
    %v97 = vld [vmem:[%s1 + $0x3c] sm:$0xf]
    %v98 = vld [vmem:[%s1 + $0x40] sm:$0xf]
    %v99 = vld [vmem:[%s1 + $0x44] sm:$0xf]
    %v100 = vld [vmem:[%s1 + $0x48] sm:$0xf]
    %v101 = vld [vmem:[%s1 + $0x4c] sm:$0xf]
    %v102 = vld [vmem:[%s1 + $0x50] sm:$0xf]
    %v103 = vld [vmem:[%s1 + $0x54] sm:$0xf]
    %v104 = vld [vmem:[%s1 + $0x58] sm:$0xf]
    %v105 = vld [vmem:[%s1 + $0x5c] sm:$0xf]
    %v106 = vld [vmem:[%s1 + $0x60] sm:$0xf]
    %v107 = vld [vmem:[%s1 + $0x64] sm:$0xf]
    %v108 = vld [vmem:[%s1 + $0x68] sm:$0xf]
    %v109 = vld [vmem:[%s1 + $0x6c] sm:$0xf]
    %v110 = vld [vmem:[%s1 + $0x70] sm:$0xf]
    %v111 = vld [vmem:[%s1 + $0x74] sm:$0xf]
    %v112 = vld [vmem:[%s1 + $0x78] sm:$0xf]
    %v113 = vld [vmem:[%s1 + $0x7c] sm:$0xf]
    %v114 = vld [vmem:[%s1 + $0x80] sm:$0xf]
    %v115 = vld [vmem:[%s1 + $0x84] sm:$0xf]
    %v116 = vld [vmem:[%s1 + $0x88] sm:$0xf]
    %v117 = vld [vmem:[%s1 + $0x8c] sm:$0xf]
    %v118 = vld [vmem:[%s1 + $0x90] sm:$0xf]
    %v119 = vld [vmem:[%s1 + $0x94] sm:$0xf]
    %v120 = vld [vmem:[%s1 + $0x98] sm:$0xf]
    %v121 = vld [vmem:[%s1 + $0x9c] sm:$0xf]
    %v122 = vld [vmem:[%s1 + $0xa0] sm:$0xf]
    %v123 = vld [vmem:[%s1 + $0xa4] sm:$0xf]
    %v124 = vld [vmem:[%s1 + $0xa8] sm:$0xf]
    %v125 = vld [vmem:[%s1 + $0xac] sm:$0xf]
    %v126 = vld [vmem:[%s1 + $0xb0] sm:$0xf]
    %v127 = vld [vmem:[%s1 + $0xb4] sm:$0xf]
    %v128 = vld [vmem:[%s1 + $0xb8] sm:$0xf]
    %v129 = vld [vmem:[%s1 + $0xbc] sm:$0xf]
    %v130 = vld [vmem:[%s1 + $0xc0] sm:$0xf]
    %v131 = vld [vmem:[%s1 + $0xc4] sm:$0xf]
    %v132 = vld [vmem:[%s1 + $0xc8] sm:$0xf]
    %v133 = vld [vmem:[%s1 + $0xcc] sm:$0xf]
    %v134 = vld [vmem:[%s1 + $0xd0] sm:$0xf]
    %v135 = vld [vmem:[%s1 + $0xd4] sm:$0xf]
    %v136 = vld [vmem:[%s1 + $0xd8] sm:$0xf]
    %v137 = vld [vmem:[%s1 + $0xdc] sm:$0xf]
    %v138 = vld [vmem:[%s1 + $0xe0] sm:$0xf]
    %v139 = vld [vmem:[%s1 + $0xe4] sm:$0xf]
    %v140 = vld [vmem:[%s1 + $0xe8] sm:$0xf]
    %v141 = vld [vmem:[%s1 + $0xec] sm:$0xf]
    %v142 = vld [vmem:[%s1 + $0xf0] sm:$0xf]
    %v143 = vld [vmem:[%s1 + $0xf4] sm:$0xf]
    %v144 = vld [vmem:[%s1 + $0xf8] sm:$0xf]
    %v145 = vld [vmem:[%s1 + $0xfc] sm:$0xf]
    %v146 = vunpack.c.l.bf16 %v82
    %v147 = vunpack.c.l.bf16 %v83
    %v148 = vunpack.c.l.bf16 %v84
    %v149 = vunpack.c.l.bf16 %v85
    %v150 = vunpack.c.l.bf16 %v86
    %v151 = vunpack.c.l.bf16 %v87
    %v152 = vunpack.c.l.bf16 %v88
    %v153 = vunpack.c.l.bf16 %v89
    %v154 = vunpack.c.l.bf16 %v90
    %v155 = vunpack.c.l.bf16 %v91
    %v156 = vunpack.c.l.bf16 %v92
    %v157 = vunpack.c.l.bf16 %v93
    %v158 = vunpack.c.l.bf16 %v94
    %v159 = vunpack.c.l.bf16 %v95
    %v160 = vunpack.c.l.bf16 %v96
    %v161 = vunpack.c.l.bf16 %v97
    %v162 = vunpack.c.l.bf16 %v98
    %v163 = vunpack.c.l.bf16 %v99
    %v164 = vunpack.c.l.bf16 %v100
    %v165 = vunpack.c.l.bf16 %v101
    %v166 = vunpack.c.l.bf16 %v102
    %v167 = vunpack.c.l.bf16 %v103
    %v168 = vunpack.c.l.bf16 %v104
    %v169 = vunpack.c.l.bf16 %v105
    %v170 = vunpack.c.l.bf16 %v106
    %v171 = vunpack.c.l.bf16 %v107
    %v172 = vunpack.c.l.bf16 %v108
    %v173 = vunpack.c.l.bf16 %v109
    %v174 = vunpack.c.l.bf16 %v110
    %v175 = vunpack.c.l.bf16 %v111
    %v176 = vunpack.c.l.bf16 %v112
    %v177 = vunpack.c.l.bf16 %v113
    %v178 = vunpack.c.l.bf16 %v114
    %v179 = vunpack.c.l.bf16 %v115
    %v180 = vunpack.c.l.bf16 %v116
    %v181 = vunpack.c.l.bf16 %v117
    %v182 = vunpack.c.l.bf16 %v118
    %v183 = vunpack.c.l.bf16 %v119
    %v184 = vunpack.c.l.bf16 %v120
    %v185 = vunpack.c.l.bf16 %v121
    %v186 = vunpack.c.l.bf16 %v122
    %v187 = vunpack.c.l.bf16 %v123
    %v188 = vunpack.c.l.bf16 %v124
    %v189 = vunpack.c.l.bf16 %v125
    %v190 = vunpack.c.l.bf16 %v126
    %v191 = vunpack.c.l.bf16 %v127
    %v192 = vunpack.c.l.bf16 %v128
    %v193 = vunpack.c.l.bf16 %v129
    %v194 = vunpack.c.l.bf16 %v130
    %v195 = vunpack.c.l.bf16 %v131
    %v196 = vunpack.c.l.bf16 %v132
    %v197 = vunpack.c.l.bf16 %v133
    %v198 = vunpack.c.l.bf16 %v134
    %v199 = vunpack.c.l.bf16 %v135
    %v200 = vunpack.c.l.bf16 %v136
    %v201 = vunpack.c.l.bf16 %v137
    %v202 = vunpack.c.l.bf16 %v138
    %v203 = vunpack.c.l.bf16 %v139
    %v204 = vunpack.c.l.bf16 %v140
    %v205 = vunpack.c.l.bf16 %v141
    %v206 = vunpack.c.l.bf16 %v142
    %v207 = vunpack.c.l.bf16 %v143
    %v208 = vunpack.c.l.bf16 %v144
    %v209 = vunpack.c.l.bf16 %v145
    %v210 = vld [vmem:[%s2] sm:$0x1]
    %v212 = vperm.slane %v210, 0
    %v214 = vmul.f32 %v146, %v212
    %v215 = vmul.f32 %v147, %v212
    %v216 = vmul.f32 %v148, %v212
    %v217 = vmul.f32 %v149, %v212
    %v218 = vmul.f32 %v150, %v212
    %v219 = vmul.f32 %v151, %v212
    %v220 = vmul.f32 %v152, %v212
    %v221 = vmul.f32 %v153, %v212
    %v222 = vmul.f32 %v154, %v212
    %v223 = vmul.f32 %v155, %v212
    %v224 = vmul.f32 %v156, %v212
    %v225 = vmul.f32 %v157, %v212
    %v226 = vmul.f32 %v158, %v212
    %v227 = vmul.f32 %v159, %v212
    %v228 = vmul.f32 %v160, %v212
    %v229 = vmul.f32 %v161, %v212
    %v230 = vmul.f32 %v162, %v212
    %v231 = vmul.f32 %v163, %v212
    %v232 = vmul.f32 %v164, %v212
    %v233 = vmul.f32 %v165, %v212
    %v234 = vmul.f32 %v166, %v212
    %v235 = vmul.f32 %v167, %v212
    %v236 = vmul.f32 %v168, %v212
    %v237 = vmul.f32 %v169, %v212
    %v238 = vmul.f32 %v170, %v212
    %v239 = vmul.f32 %v171, %v212
    %v240 = vmul.f32 %v172, %v212
    %v241 = vmul.f32 %v173, %v212
    %v242 = vmul.f32 %v174, %v212
    %v243 = vmul.f32 %v175, %v212
    %v244 = vmul.f32 %v176, %v212
    %v245 = vmul.f32 %v177, %v212
    %v246 = vmul.f32 %v178, %v212
    %v247 = vmul.f32 %v179, %v212
    %v248 = vmul.f32 %v180, %v212
    %v249 = vmul.f32 %v181, %v212
    %v250 = vmul.f32 %v182, %v212
    %v251 = vmul.f32 %v183, %v212
    %v252 = vmul.f32 %v184, %v212
    %v253 = vmul.f32 %v185, %v212
    %v254 = vmul.f32 %v186, %v212
    %v255 = vmul.f32 %v187, %v212
    %v256 = vmul.f32 %v188, %v212
    %v257 = vmul.f32 %v189, %v212
    %v258 = vmul.f32 %v190, %v212
    %v259 = vmul.f32 %v191, %v212
    %v260 = vmul.f32 %v192, %v212
    %v261 = vmul.f32 %v193, %v212
    %v262 = vmul.f32 %v194, %v212
    %v263 = vmul.f32 %v195, %v212
    %v264 = vmul.f32 %v196, %v212
    %v265 = vmul.f32 %v197, %v212
    %v266 = vmul.f32 %v198, %v212
    %v267 = vmul.f32 %v199, %v212
    %v268 = vmul.f32 %v200, %v212
    %v269 = vmul.f32 %v201, %v212
    %v270 = vmul.f32 %v202, %v212
    %v271 = vmul.f32 %v203, %v212
    %v272 = vmul.f32 %v204, %v212
    %v273 = vmul.f32 %v205, %v212
    %v274 = vmul.f32 %v206, %v212
    %v275 = vmul.f32 %v207, %v212
    %v276 = vmul.f32 %v208, %v212
    %v277 = vmul.f32 %v209, %v212
    %v278 = vadd.f32 %v18, %v214
    %v279 = vadd.f32 %v19, %v215
    %v280 = vadd.f32 %v20, %v216
    %v281 = vadd.f32 %v21, %v217
    %v282 = vadd.f32 %v22, %v218
    %v283 = vadd.f32 %v23, %v219
    %v284 = vadd.f32 %v24, %v220
    %v285 = vadd.f32 %v25, %v221
    %v286 = vadd.f32 %v26, %v222
    %v287 = vadd.f32 %v27, %v223
    %v288 = vadd.f32 %v28, %v224
    %v289 = vadd.f32 %v29, %v225
    %v290 = vadd.f32 %v30, %v226
    %v291 = vadd.f32 %v31, %v227
    %v292 = vadd.f32 %v32, %v228
    %v293 = vadd.f32 %v33, %v229
    %v294 = vadd.f32 %v34, %v230
    %v295 = vadd.f32 %v35, %v231
    %v296 = vadd.f32 %v36, %v232
    %v297 = vadd.f32 %v37, %v233
    %v298 = vadd.f32 %v38, %v234
    %v299 = vadd.f32 %v39, %v235
    %v300 = vadd.f32 %v40, %v236
    %v301 = vadd.f32 %v41, %v237
    %v302 = vadd.f32 %v42, %v238
    %v303 = vadd.f32 %v43, %v239
    %v304 = vadd.f32 %v44, %v240
    %v305 = vadd.f32 %v45, %v241
    %v306 = vadd.f32 %v46, %v242
    %v307 = vadd.f32 %v47, %v243
    %v308 = vadd.f32 %v48, %v244
    %v309 = vadd.f32 %v49, %v245
    %v310 = vadd.f32 %v50, %v246
    %v311 = vadd.f32 %v51, %v247
    %v312 = vadd.f32 %v52, %v248
    %v313 = vadd.f32 %v53, %v249
    %v314 = vadd.f32 %v54, %v250
    %v315 = vadd.f32 %v55, %v251
    %v316 = vadd.f32 %v56, %v252
    %v317 = vadd.f32 %v57, %v253
    %v318 = vadd.f32 %v58, %v254
    %v319 = vadd.f32 %v59, %v255
    %v320 = vadd.f32 %v60, %v256
    %v321 = vadd.f32 %v61, %v257
    %v322 = vadd.f32 %v62, %v258
    %v323 = vadd.f32 %v63, %v259
    %v324 = vadd.f32 %v64, %v260
    %v325 = vadd.f32 %v65, %v261
    %v326 = vadd.f32 %v66, %v262
    %v327 = vadd.f32 %v67, %v263
    %v328 = vadd.f32 %v68, %v264
    %v329 = vadd.f32 %v69, %v265
    %v330 = vadd.f32 %v70, %v266
    %v331 = vadd.f32 %v71, %v267
    %v332 = vadd.f32 %v72, %v268
    %v333 = vadd.f32 %v73, %v269
    %v334 = vadd.f32 %v74, %v270
    %v335 = vadd.f32 %v75, %v271
    %v336 = vadd.f32 %v76, %v272
    %v337 = vadd.f32 %v77, %v273
    %v338 = vadd.f32 %v78, %v274
    %v339 = vadd.f32 %v79, %v275
    %v340 = vadd.f32 %v80, %v276
    %v341 = vadd.f32 %v81, %v277
    %v342 = vld [vmem:[%s3] sm:$0x1]
    %v344 = vperm.slane %v342, 0
    %v346 = vadd.f32 %v278, %v344
    %v347 = vadd.f32 %v279, %v344
    %v348 = vadd.f32 %v280, %v344
    %v349 = vadd.f32 %v281, %v344
    %v350 = vadd.f32 %v282, %v344
    %v351 = vadd.f32 %v283, %v344
    %v352 = vadd.f32 %v284, %v344
    %v353 = vadd.f32 %v285, %v344
    %v354 = vadd.f32 %v286, %v344
    %v355 = vadd.f32 %v287, %v344
    %v356 = vadd.f32 %v288, %v344
    %v357 = vadd.f32 %v289, %v344
    %v358 = vadd.f32 %v290, %v344
    %v359 = vadd.f32 %v291, %v344
    %v360 = vadd.f32 %v292, %v344
    %v361 = vadd.f32 %v293, %v344
    %v362 = vadd.f32 %v294, %v344
    %v363 = vadd.f32 %v295, %v344
    %v364 = vadd.f32 %v296, %v344
    %v365 = vadd.f32 %v297, %v344
    %v366 = vadd.f32 %v298, %v344
    %v367 = vadd.f32 %v299, %v344
    %v368 = vadd.f32 %v300, %v344
    %v369 = vadd.f32 %v301, %v344
    %v370 = vadd.f32 %v302, %v344
    %v371 = vadd.f32 %v303, %v344
    %v372 = vadd.f32 %v304, %v344
    %v373 = vadd.f32 %v305, %v344
    %v374 = vadd.f32 %v306, %v344
    %v375 = vadd.f32 %v307, %v344
    %v376 = vadd.f32 %v308, %v344
    %v377 = vadd.f32 %v309, %v344
    %v378 = vadd.f32 %v310, %v344
    %v379 = vadd.f32 %v311, %v344
    %v380 = vadd.f32 %v312, %v344
    %v381 = vadd.f32 %v313, %v344
    %v382 = vadd.f32 %v314, %v344
    %v383 = vadd.f32 %v315, %v344
    %v384 = vadd.f32 %v316, %v344
    %v385 = vadd.f32 %v317, %v344
    %v386 = vadd.f32 %v318, %v344
    %v387 = vadd.f32 %v319, %v344
    %v388 = vadd.f32 %v320, %v344
    %v389 = vadd.f32 %v321, %v344
    %v390 = vadd.f32 %v322, %v344
    %v391 = vadd.f32 %v323, %v344
    %v392 = vadd.f32 %v324, %v344
    %v393 = vadd.f32 %v325, %v344
    %v394 = vadd.f32 %v326, %v344
    %v395 = vadd.f32 %v327, %v344
    %v396 = vadd.f32 %v328, %v344
    %v397 = vadd.f32 %v329, %v344
    %v398 = vadd.f32 %v330, %v344
    %v399 = vadd.f32 %v331, %v344
    %v400 = vadd.f32 %v332, %v344
    %v401 = vadd.f32 %v333, %v344
    %v402 = vadd.f32 %v334, %v344
    %v403 = vadd.f32 %v335, %v344
    %v404 = vadd.f32 %v336, %v344
    %v405 = vadd.f32 %v337, %v344
    %v406 = vadd.f32 %v338, %v344
    %v407 = vadd.f32 %v339, %v344
    %v408 = vadd.f32 %v340, %v344
    %v409 = vadd.f32 %v341, %v344
    %410 = vst [vmem:[#allocation2] sm:$0xff] %v346
    %411 = vst [vmem:[#allocation2 + $0x8] sm:$0xff] %v347
    %412 = vst [vmem:[#allocation2 + $0x10] sm:$0xff] %v348
    %413 = vst [vmem:[#allocation2 + $0x18] sm:$0xff] %v349
    %414 = vst [vmem:[#allocation2 + $0x20] sm:$0xff] %v350
    %415 = vst [vmem:[#allocation2 + $0x28] sm:$0xff] %v351
    %416 = vst [vmem:[#allocation2 + $0x30] sm:$0xff] %v352
    %417 = vst [vmem:[#allocation2 + $0x38] sm:$0xff] %v353
    %418 = vst [vmem:[#allocation2 + $0x40] sm:$0xff] %v354
    %419 = vst [vmem:[#allocation2 + $0x48] sm:$0xff] %v355
    %420 = vst [vmem:[#allocation2 + $0x50] sm:$0xff] %v356
    %421 = vst [vmem:[#allocation2 + $0x58] sm:$0xff] %v357
    %422 = vst [vmem:[#allocation2 + $0x60] sm:$0xff] %v358
    %423 = vst [vmem:[#allocation2 + $0x68] sm:$0xff] %v359
    %424 = vst [vmem:[#allocation2 + $0x70] sm:$0xff] %v360
    %425 = vst [vmem:[#allocation2 + $0x78] sm:$0xff] %v361
    %426 = vst [vmem:[#allocation2 + $0x80] sm:$0xff] %v362
    %427 = vst [vmem:[#allocation2 + $0x88] sm:$0xff] %v363
    %428 = vst [vmem:[#allocation2 + $0x90] sm:$0xff] %v364
    %429 = vst [vmem:[#allocation2 + $0x98] sm:$0xff] %v365
    %430 = vst [vmem:[#allocation2 + $0xa0] sm:$0xff] %v366
    %431 = vst [vmem:[#allocation2 + $0xa8] sm:$0xff] %v367
    %432 = vst [vmem:[#allocation2 + $0xb0] sm:$0xff] %v368
    %433 = vst [vmem:[#allocation2 + $0xb8] sm:$0xff] %v369
    %434 = vst [vmem:[#allocation2 + $0xc0] sm:$0xff] %v370
    %435 = vst [vmem:[#allocation2 + $0xc8] sm:$0xff] %v371
    %436 = vst [vmem:[#allocation2 + $0xd0] sm:$0xff] %v372
    %437 = vst [vmem:[#allocation2 + $0xd8] sm:$0xff] %v373
    %438 = vst [vmem:[#allocation2 + $0xe0] sm:$0xff] %v374
    %439 = vst [vmem:[#allocation2 + $0xe8] sm:$0xff] %v375
    %440 = vst [vmem:[#allocation2 + $0xf0] sm:$0xff] %v376
    %441 = vst [vmem:[#allocation2 + $0xf8] sm:$0xff] %v377
    %442 = vst [vmem:[#allocation2 + $0x100] sm:$0xff] %v378
    %443 = vst [vmem:[#allocation2 + $0x108] sm:$0xff] %v379
    %444 = vst [vmem:[#allocation2 + $0x110] sm:$0xff] %v380
    %445 = vst [vmem:[#allocation2 + $0x118] sm:$0xff] %v381
    %446 = vst [vmem:[#allocation2 + $0x120] sm:$0xff] %v382
    %447 = vst [vmem:[#allocation2 + $0x128] sm:$0xff] %v383
    %448 = vst [vmem:[#allocation2 + $0x130] sm:$0xff] %v384
    %449 = vst [vmem:[#allocation2 + $0x138] sm:$0xff] %v385
    %450 = vst [vmem:[#allocation2 + $0x140] sm:$0xff] %v386
    %451 = vst [vmem:[#allocation2 + $0x148] sm:$0xff] %v387
    %452 = vst [vmem:[#allocation2 + $0x150] sm:$0xff] %v388
    %453 = vst [vmem:[#allocation2 + $0x158] sm:$0xff] %v389
    %454 = vst [vmem:[#allocation2 + $0x160] sm:$0xff] %v390
    %455 = vst [vmem:[#allocation2 + $0x168] sm:$0xff] %v391
    %456 = vst [vmem:[#allocation2 + $0x170] sm:$0xff] %v392
    %457 = vst [vmem:[#allocation2 + $0x178] sm:$0xff] %v393
    %458 = vst [vmem:[#allocation2 + $0x180] sm:$0xff] %v394
    %459 = vst [vmem:[#allocation2 + $0x188] sm:$0xff] %v395
    %460 = vst [vmem:[#allocation2 + $0x190] sm:$0xff] %v396
    %461 = vst [vmem:[#allocation2 + $0x198] sm:$0xff] %v397
    %462 = vst [vmem:[#allocation2 + $0x1a0] sm:$0xff] %v398
    %463 = vst [vmem:[#allocation2 + $0x1a8] sm:$0xff] %v399
    %464 = vst [vmem:[#allocation2 + $0x1b0] sm:$0xff] %v400
    %465 = vst [vmem:[#allocation2 + $0x1b8] sm:$0xff] %v401
    %466 = vst [vmem:[#allocation2 + $0x1c0] sm:$0xff] %v402
    %467 = vst [vmem:[#allocation2 + $0x1c8] sm:$0xff] %v403
    %468 = vst [vmem:[#allocation2 + $0x1d0] sm:$0xff] %v404
    %469 = vst [vmem:[#allocation2 + $0x1d8] sm:$0xff] %v405
    %470 = vst [vmem:[#allocation2 + $0x1e0] sm:$0xff] %v406
    %471 = vst [vmem:[#allocation2 + $0x1e8] sm:$0xff] %v407
    %472 = vst [vmem:[#allocation2 + $0x1f0] sm:$0xff] %v408
    %473 = vst [vmem:[#allocation2 + $0x1f8] sm:$0xff] %v409
    // Predicated region
    $region18: #{nonlocal_block.5} parent=1 // pred_check
      _
    $region19: #{nonlocal_block.5} parent=1 // pred_check_branch
      %475 = sbr.rel (0) target = $region21
    $region20: #{nonlocal_block.5} parent=1 // pred_region
      %477 = vsyncadd [#allocation3], 0
      %s478 = sshll.u32 [#allocation2], 4
      %s479 = int_to_ptr.vmem [resolvable:$true] %s478
      %s480 = sshll.u32 %s4, 4
      %s481 = int_to_ptr.hbm [resolvable:$true] %s480
      %486 = dma.vmem_to_hbm [thread:$0]  %s479, 8192, %s481, [#allocation3], 128, 128, 8
    $region21: #{nonlocal_block.5} parent=1 // pred_fallthru
      _
    // Predicated region
    $region22: #{nonlocal_block.5} parent=1 // pred_check
      _
    $region23: #{nonlocal_block.5} parent=1 // pred_check_branch
      %488 = sbr.rel (0) target = $region25
    $region24: #{nonlocal_block.5} parent=1 // pred_region
      %490 = dma.done [#allocation3], 8192
    $region25: #{nonlocal_block.5} parent=1 // pred_fallthru
      _
    %491 = vsyncpa [#allocation3], 1

// kernel: nonlocal_block.3
$region0: #{nonlocal_block.3}
  #allocation0 [shape = 'u32[]', space=smem, size = 0x4, offset = 0x4, fixed_abs, tag = 'smem constant byte address 0x4 - core index']
  #allocation1 [shape = 'u32[72,128]{1,0:T(1,128)}', space=vmem, size = 0x9000, scoped, tag = 'internal scratch']
  %s0 = inlined_call_operand.hbm [shape: f32[512,32], index: 0, kind: input, shape index: {}]
  %s1 = inlined_call_operand.vmem [shape: bf16[32,128], index: 1, kind: input, shape index: {}]
  %s2 = inlined_call_operand.vmem [shape: bf16[32,128], index: 2, kind: input, shape index: {}]
  %s3 = inlined_call_operand.vmem [shape: bf16[32,128], index: 3, kind: input, shape index: {}]
  %s4 = inlined_call_operand.vmem [shape: f32[1,128], index: 4, kind: input, shape index: {}]
  %s5 = inlined_call_operand.vmem [shape: f32[1,128], index: 5, kind: input, shape index: {}]
  %s6 = inlined_call_operand.vmem [shape: f32[1,128], index: 6, kind: input, shape index: {}]
  %s7 = inlined_call_operand.vmem [shape: bf16[512,128], index: 7, kind: output, shape index: {0}]
  %s8 = inlined_call_operand.vmem [shape: bf16[512,128], index: 8, kind: output, shape index: {1}]
  %s9 = inlined_call_operand.vmem [shape: bf16[512,128], index: 9, kind: output, shape index: {2}]
  %10 = xla_tuple %s7, %s8, %s9
  %s11 = sld [smem:[#allocation0]]
  $region58: #{nonlocal_block.3} parent=0
    _
  %s13 = ssub.s32 1, %s11
  %s14 = scalar_select 0, %s13, %s11
  $region1: #{nonlocal_block.3} parent=0
    #allocation2 [shape = 'u8[262144]{0}', space=vmem, size = 0x40000, scoped, tag = 'input window, operand 0, single buffered']
    #allocation3 [shape = 's32[1]{0}', space=sflag, size = 0x4, scoped, tag = 'scoped memory for nonlocal_block.3']
    %15 = vsyncpa [#allocation3], 0
    // Predicated region
    $region2: #{nonlocal_block.3} parent=1 // pred_check
      _
    $region3: #{nonlocal_block.3} parent=1 // pred_check_branch
      %17 = sbr.rel (0) target = $region5
    $region4: #{nonlocal_block.3} parent=1 // pred_region
      %19 = vsyncadd [#allocation3], 0
      %s20 = sshll.u32 %s0, 4
      %s21 = int_to_ptr.hbm [resolvable:$true] %s20
      %s22 = sshll.u32 [#allocation2], 4
      %s23 = int_to_ptr.vmem [resolvable:$true] %s22
      %28 = dma.hbm_to_vmem [thread:$0]  %s21, 8192, %s23, [#allocation3], 128, 128, 8
    $region5: #{nonlocal_block.3} parent=1 // pred_fallthru
      _
    // Predicated region
    $region6: #{nonlocal_block.3} parent=1 // pred_check
      _
    $region7: #{nonlocal_block.3} parent=1 // pred_check_branch
      %30 = sbr.rel (0) target = $region9
    $region8: #{nonlocal_block.3} parent=1 // pred_region
      _
    $region9: #{nonlocal_block.3} parent=1 // pred_fallthru
      _
    // Predicated region
    $region10: #{nonlocal_block.3} parent=1 // pred_check
      _
    $region11: #{nonlocal_block.3} parent=1 // pred_check_branch
      %32 = sbr.rel (0) target = $region13
    $region12: #{nonlocal_block.3} parent=1 // pred_region
      _
    $region13: #{nonlocal_block.3} parent=1 // pred_fallthru
      _
    // Predicated region
    $region14: #{nonlocal_block.3} parent=1 // pred_check
      _
    $region15: #{nonlocal_block.3} parent=1 // pred_check_branch
      %34 = sbr.rel (0) target = $region17
    $region16: #{nonlocal_block.3} parent=1 // pred_region
      _
    $region17: #{nonlocal_block.3} parent=1 // pred_fallthru
      _
    // Predicated region
    $region18: #{nonlocal_block.3} parent=1 // pred_check
      _
    $region19: #{nonlocal_block.3} parent=1 // pred_check_branch
      %36 = sbr.rel (0) target = $region21
    $region20: #{nonlocal_block.3} parent=1 // pred_region
      _
    $region21: #{nonlocal_block.3} parent=1 // pred_fallthru
      _
    // Predicated region
    $region22: #{nonlocal_block.3} parent=1 // pred_check
      _
    $region23: #{nonlocal_block.3} parent=1 // pred_check_branch
      %38 = sbr.rel (0) target = $region25
    $region24: #{nonlocal_block.3} parent=1 // pred_region
      _
    $region25: #{nonlocal_block.3} parent=1 // pred_fallthru
      _
    // Predicated region
    $region26: #{nonlocal_block.3} parent=1 // pred_check
      _
    $region27: #{nonlocal_block.3} parent=1 // pred_check_branch
      %40 = sbr.rel (0) target = $region29
    $region28: #{nonlocal_block.3} parent=1 // pred_region
      _
    $region29: #{nonlocal_block.3} parent=1 // pred_fallthru
      _
    // Predicated region
    $region30: #{nonlocal_block.3} parent=1 // pred_check
      _
    $region31: #{nonlocal_block.3} parent=1 // pred_check_branch
      %42 = sbr.rel (0) target = $region33
    $region32: #{nonlocal_block.3} parent=1 // pred_region
      %44 = dma.done [#allocation3], 8192
    $region33: #{nonlocal_block.3} parent=1 // pred_fallthru
      _
    %v46 = vld [vmem:[#allocation2] sm:$0xff]
    %v47 = vld [vmem:[#allocation2 + $0x8] sm:$0xff]
    %v48 = vld [vmem:[#allocation2 + $0x10] sm:$0xff]
    %v49 = vld [vmem:[#allocation2 + $0x18] sm:$0xff]
    %v50 = vld [vmem:[#allocation2 + $0x20] sm:$0xff]
    %v51 = vld [vmem:[#allocation2 + $0x28] sm:$0xff]
    %v52 = vld [vmem:[#allocation2 + $0x30] sm:$0xff]
    %v53 = vld [vmem:[#allocation2 + $0x38] sm:$0xff]
    %v54 = vld [vmem:[#allocation2 + $0x40] sm:$0xff]
    %v55 = vld [vmem:[#allocation2 + $0x48] sm:$0xff]
    %v56 = vld [vmem:[#allocation2 + $0x50] sm:$0xff]
    %v57 = vld [vmem:[#allocation2 + $0x58] sm:$0xff]
    %v58 = vld [vmem:[#allocation2 + $0x60] sm:$0xff]
    %v59 = vld [vmem:[#allocation2 + $0x68] sm:$0xff]
    %v60 = vld [vmem:[#allocation2 + $0x70] sm:$0xff]
    %v61 = vld [vmem:[#allocation2 + $0x78] sm:$0xff]
    %v62 = vld [vmem:[#allocation2 + $0x80] sm:$0xff]
    %v63 = vld [vmem:[#allocation2 + $0x88] sm:$0xff]
    %v64 = vld [vmem:[#allocation2 + $0x90] sm:$0xff]
    %v65 = vld [vmem:[#allocation2 + $0x98] sm:$0xff]
    %v66 = vld [vmem:[#allocation2 + $0xa0] sm:$0xff]
    %v67 = vld [vmem:[#allocation2 + $0xa8] sm:$0xff]
    %v68 = vld [vmem:[#allocation2 + $0xb0] sm:$0xff]
    %v69 = vld [vmem:[#allocation2 + $0xb8] sm:$0xff]
    %v70 = vld [vmem:[#allocation2 + $0xc0] sm:$0xff]
    %v71 = vld [vmem:[#allocation2 + $0xc8] sm:$0xff]
    %v72 = vld [vmem:[#allocation2 + $0xd0] sm:$0xff]
    %v73 = vld [vmem:[#allocation2 + $0xd8] sm:$0xff]
    %v74 = vld [vmem:[#allocation2 + $0xe0] sm:$0xff]
    %v75 = vld [vmem:[#allocation2 + $0xe8] sm:$0xff]
    %v76 = vld [vmem:[#allocation2 + $0xf0] sm:$0xff]
    %v77 = vld [vmem:[#allocation2 + $0xf8] sm:$0xff]
    %v78 = vld [vmem:[#allocation2 + $0x100] sm:$0xff]
    %v79 = vld [vmem:[#allocation2 + $0x108] sm:$0xff]
    %v80 = vld [vmem:[#allocation2 + $0x110] sm:$0xff]
    %v81 = vld [vmem:[#allocation2 + $0x118] sm:$0xff]
    %v82 = vld [vmem:[#allocation2 + $0x120] sm:$0xff]
    %v83 = vld [vmem:[#allocation2 + $0x128] sm:$0xff]
    %v84 = vld [vmem:[#allocation2 + $0x130] sm:$0xff]
    %v85 = vld [vmem:[#allocation2 + $0x138] sm:$0xff]
    %v86 = vld [vmem:[#allocation2 + $0x140] sm:$0xff]
    %v87 = vld [vmem:[#allocation2 + $0x148] sm:$0xff]
    %v88 = vld [vmem:[#allocation2 + $0x150] sm:$0xff]
    %v89 = vld [vmem:[#allocation2 + $0x158] sm:$0xff]
    %v90 = vld [vmem:[#allocation2 + $0x160] sm:$0xff]
    %v91 = vld [vmem:[#allocation2 + $0x168] sm:$0xff]
    %v92 = vld [vmem:[#allocation2 + $0x170] sm:$0xff]
    %v93 = vld [vmem:[#allocation2 + $0x178] sm:$0xff]
    %v94 = vld [vmem:[#allocation2 + $0x180] sm:$0xff]
    %v95 = vld [vmem:[#allocation2 + $0x188] sm:$0xff]
    %v96 = vld [vmem:[#allocation2 + $0x190] sm:$0xff]
    %v97 = vld [vmem:[#allocation2 + $0x198] sm:$0xff]
    %v98 = vld [vmem:[#allocation2 + $0x1a0] sm:$0xff]
    %v99 = vld [vmem:[#allocation2 + $0x1a8] sm:$0xff]
    %v100 = vld [vmem:[#allocation2 + $0x1b0] sm:$0xff]
    %v101 = vld [vmem:[#allocation2 + $0x1b8] sm:$0xff]
    %v102 = vld [vmem:[#allocation2 + $0x1c0] sm:$0xff]
    %v103 = vld [vmem:[#allocation2 + $0x1c8] sm:$0xff]
    %v104 = vld [vmem:[#allocation2 + $0x1d0] sm:$0xff]
    %v105 = vld [vmem:[#allocation2 + $0x1d8] sm:$0xff]
    %v106 = vld [vmem:[#allocation2 + $0x1e0] sm:$0xff]
    %v107 = vld [vmem:[#allocation2 + $0x1e8] sm:$0xff]
    %v108 = vld [vmem:[#allocation2 + $0x1f0] sm:$0xff]
    %v109 = vld [vmem:[#allocation2 + $0x1f8] sm:$0xff]
    %v110 = vpack.c.bf16 %v47, %v46
    %v111 = vpack.c.bf16 %v49, %v48
    %v112 = vpack.c.bf16 %v51, %v50
    %v113 = vpack.c.bf16 %v53, %v52
    %v114 = vpack.c.bf16 %v55, %v54
    %v115 = vpack.c.bf16 %v57, %v56
    %v116 = vpack.c.bf16 %v59, %v58
    %v117 = vpack.c.bf16 %v61, %v60
    %v118 = vpack.c.bf16 %v63, %v62
    %v119 = vpack.c.bf16 %v65, %v64
    %v120 = vpack.c.bf16 %v67, %v66
    %v121 = vpack.c.bf16 %v69, %v68
    %v122 = vpack.c.bf16 %v71, %v70
    %v123 = vpack.c.bf16 %v73, %v72
    %v124 = vpack.c.bf16 %v75, %v74
    %v125 = vpack.c.bf16 %v77, %v76
    %v126 = vpack.c.bf16 %v79, %v78
    %v127 = vpack.c.bf16 %v81, %v80
    %v128 = vpack.c.bf16 %v83, %v82
    %v129 = vpack.c.bf16 %v85, %v84
    %v130 = vpack.c.bf16 %v87, %v86
    %v131 = vpack.c.bf16 %v89, %v88
    %v132 = vpack.c.bf16 %v91, %v90
    %v133 = vpack.c.bf16 %v93, %v92
    %v134 = vpack.c.bf16 %v95, %v94
    %v135 = vpack.c.bf16 %v97, %v96
    %v136 = vpack.c.bf16 %v99, %v98
    %v137 = vpack.c.bf16 %v101, %v100
    %v138 = vpack.c.bf16 %v103, %v102
    %v139 = vpack.c.bf16 %v105, %v104
    %v140 = vpack.c.bf16 %v107, %v106
    %v141 = vpack.c.bf16 %v109, %v108
    %v142 = vld [vmem:[%s1] sm:$0xf]
    %v143 = vld [vmem:[%s1 + $0x4] sm:$0xf]
    %v144 = vld [vmem:[%s1 + $0x8] sm:$0xf]
    %v145 = vld [vmem:[%s1 + $0xc] sm:$0xf]
    %v146 = vld [vmem:[%s4] sm:$0x1]
    %v148 = vperm.slane %v146, 0
    %v154 = vunpack.c.l.b16 %v142
    %v155 = vunpack.c.l.b16 %v143
    %v156 = vunpack.c.l.b16 %v144
    %v157 = vunpack.c.l.b16 %v145
    %v158 = vpack.c.b16 %v155, %v154
    %v159 = vpack.c.b16 %v157, %v156
    %vm162 = vcmask 261120
    %v164 = vsel %vm162, %v110, 0
    %v167 = vsel %vm162, %v111, 0
    %v170 = vsel %vm162, %v112, 0
    %v173 = vsel %vm162, %v113, 0
    %v176 = vsel %vm162, %v114, 0
    %v179 = vsel %vm162, %v115, 0
    %v182 = vsel %vm162, %v116, 0
    %v185 = vsel %vm162, %v117, 0
    %v188 = vsel %vm162, %v118, 0
    %v191 = vsel %vm162, %v119, 0
    %v194 = vsel %vm162, %v120, 0
    %v197 = vsel %vm162, %v121, 0
    %v200 = vsel %vm162, %v122, 0
    %v203 = vsel %vm162, %v123, 0
    %v206 = vsel %vm162, %v124, 0
    %v209 = vsel %vm162, %v125, 0
    %v212 = vsel %vm162, %v126, 0
    %v215 = vsel %vm162, %v127, 0
    %v218 = vsel %vm162, %v128, 0
    %v221 = vsel %vm162, %v129, 0
    %v224 = vsel %vm162, %v130, 0
    %v227 = vsel %vm162, %v131, 0
    %v230 = vsel %vm162, %v132, 0
    %v233 = vsel %vm162, %v133, 0
    %v236 = vsel %vm162, %v134, 0
    %v239 = vsel %vm162, %v135, 0
    %v242 = vsel %vm162, %v136, 0
    %v245 = vsel %vm162, %v137, 0
    %v248 = vsel %vm162, %v138, 0
    %v251 = vsel %vm162, %v139, 0
    %v254 = vsel %vm162, %v140, 0
    %v257 = vsel %vm162, %v141, 0
    %259 = vmatpush.bf16.msra.mxu0 0
    %260 = vmatpush.bf16.msra.mxu0 0
    %261 = vmatpush.bf16.msra.mxu0 0
    %262 = vmatpush.bf16.msra.mxu0 0
    %263 = vmatpush.bf16.msra.mxu0 0
    %264 = vmatpush.bf16.msra.mxu0 0
    %265 = vmatpush.bf16.msra.mxu0 %v159
    %266 = vmatpush.bf16.msra.mxu0 %v158
    %267 = vmatmul.bf16.gmra.mxu0 %v164
    %v268 = vpop.f32.mrf.mxu0
    %v269 = vadd.f32 %v148, %v268
    %v270 = vpop.f32.mrf.mxu0
    %v271 = vadd.f32 %v148, %v270
    %272 = vmatmul.bf16.gmra.mxu0 %v167
    %v273 = vpop.f32.mrf.mxu0
    %v274 = vadd.f32 %v148, %v273
    %v275 = vpop.f32.mrf.mxu0
    %v276 = vadd.f32 %v148, %v275
    %277 = vmatmul.bf16.gmra.mxu0 %v170
    %v278 = vpop.f32.mrf.mxu0
    %v279 = vadd.f32 %v148, %v278
    %v280 = vpop.f32.mrf.mxu0
    %v281 = vadd.f32 %v148, %v280
    %282 = vmatmul.bf16.gmra.mxu0 %v173
    %v283 = vpop.f32.mrf.mxu0
    %v284 = vadd.f32 %v148, %v283
    %v285 = vpop.f32.mrf.mxu0
    %v286 = vadd.f32 %v148, %v285
    %287 = vmatmul.bf16.gmra.mxu0 %v176
    %v288 = vpop.f32.mrf.mxu0
    %v289 = vadd.f32 %v148, %v288
    %v290 = vpop.f32.mrf.mxu0
    %v291 = vadd.f32 %v148, %v290
    %292 = vmatmul.bf16.gmra.mxu0 %v179
    %v293 = vpop.f32.mrf.mxu0
    %v294 = vadd.f32 %v148, %v293
    %v295 = vpop.f32.mrf.mxu0
    %v296 = vadd.f32 %v148, %v295
    %297 = vmatmul.bf16.gmra.mxu0 %v182
    %v298 = vpop.f32.mrf.mxu0
    %v299 = vadd.f32 %v148, %v298
    %v300 = vpop.f32.mrf.mxu0
    %v301 = vadd.f32 %v148, %v300
    %302 = vmatmul.bf16.gmra.mxu0 %v185
    %v303 = vpop.f32.mrf.mxu0
    %v304 = vadd.f32 %v148, %v303
    %v305 = vpop.f32.mrf.mxu0
    %v306 = vadd.f32 %v148, %v305
    %307 = vmatmul.bf16.gmra.mxu0 %v188
    %v308 = vpop.f32.mrf.mxu0
    %v309 = vadd.f32 %v148, %v308
    %v310 = vpop.f32.mrf.mxu0
    %v311 = vadd.f32 %v148, %v310
    %312 = vmatmul.bf16.gmra.mxu0 %v191
    %v313 = vpop.f32.mrf.mxu0
    %v314 = vadd.f32 %v148, %v313
    %v315 = vpop.f32.mrf.mxu0
    %v316 = vadd.f32 %v148, %v315
    %317 = vmatmul.bf16.gmra.mxu0 %v194
    %v318 = vpop.f32.mrf.mxu0
    %v319 = vadd.f32 %v148, %v318
    %v320 = vpop.f32.mrf.mxu0
    %v321 = vadd.f32 %v148, %v320
    %322 = vmatmul.bf16.gmra.mxu0 %v197
    %v323 = vpop.f32.mrf.mxu0
    %v324 = vadd.f32 %v148, %v323
    %v325 = vpop.f32.mrf.mxu0
    %v326 = vadd.f32 %v148, %v325
    %327 = vmatmul.bf16.gmra.mxu0 %v200
    %v328 = vpop.f32.mrf.mxu0
    %v329 = vadd.f32 %v148, %v328
    %v330 = vpop.f32.mrf.mxu0
    %v331 = vadd.f32 %v148, %v330
    %332 = vmatmul.bf16.gmra.mxu0 %v203
    %v333 = vpop.f32.mrf.mxu0
    %v334 = vadd.f32 %v148, %v333
    %v335 = vpop.f32.mrf.mxu0
    %v336 = vadd.f32 %v148, %v335
    %337 = vmatmul.bf16.gmra.mxu0 %v206
    %v338 = vpop.f32.mrf.mxu0
    %v339 = vadd.f32 %v148, %v338
    %v340 = vpop.f32.mrf.mxu0
    %v341 = vadd.f32 %v148, %v340
    %342 = vmatmul.bf16.gmra.mxu0 %v209
    %v343 = vpop.f32.mrf.mxu0
    %v344 = vadd.f32 %v148, %v343
    %v345 = vpop.f32.mrf.mxu0
    %v346 = vadd.f32 %v148, %v345
    %347 = vmatmul.bf16.gmra.mxu0 %v212
    %v348 = vpop.f32.mrf.mxu0
    %v349 = vadd.f32 %v148, %v348
    %v350 = vpop.f32.mrf.mxu0
    %v351 = vadd.f32 %v148, %v350
    %352 = vmatmul.bf16.gmra.mxu0 %v215
    %v353 = vpop.f32.mrf.mxu0
    %v354 = vadd.f32 %v148, %v353
    %v355 = vpop.f32.mrf.mxu0
    %v356 = vadd.f32 %v148, %v355
    %357 = vmatmul.bf16.gmra.mxu0 %v218
    %v358 = vpop.f32.mrf.mxu0
    %v359 = vadd.f32 %v148, %v358
    %v360 = vpop.f32.mrf.mxu0
    %v361 = vadd.f32 %v148, %v360
    %362 = vmatmul.bf16.gmra.mxu0 %v221
    %v363 = vpop.f32.mrf.mxu0
    %v364 = vadd.f32 %v148, %v363
    %v365 = vpop.f32.mrf.mxu0
    %v366 = vadd.f32 %v148, %v365
    %367 = vmatmul.bf16.gmra.mxu0 %v224
    %v368 = vpop.f32.mrf.mxu0
    %v369 = vadd.f32 %v148, %v368
    %v370 = vpop.f32.mrf.mxu0
    %v371 = vadd.f32 %v148, %v370
    %372 = vmatmul.bf16.gmra.mxu0 %v227
    %v373 = vpop.f32.mrf.mxu0
    %v374 = vadd.f32 %v148, %v373
    %v375 = vpop.f32.mrf.mxu0
    %v376 = vadd.f32 %v148, %v375
    %377 = vmatmul.bf16.gmra.mxu0 %v230
    %v378 = vpop.f32.mrf.mxu0
    %v379 = vadd.f32 %v148, %v378
    %v380 = vpop.f32.mrf.mxu0
    %v381 = vadd.f32 %v148, %v380
    %382 = vmatmul.bf16.gmra.mxu0 %v233
    %v383 = vpop.f32.mrf.mxu0
    %v384 = vadd.f32 %v148, %v383
    %v385 = vpop.f32.mrf.mxu0
    %v386 = vadd.f32 %v148, %v385
    %387 = vmatmul.bf16.gmra.mxu0 %v236
    %v388 = vpop.f32.mrf.mxu0
    %v389 = vadd.f32 %v148, %v388
    %v390 = vpop.f32.mrf.mxu0
    %v391 = vadd.f32 %v148, %v390
    %392 = vmatmul.bf16.gmra.mxu0 %v239
    %v393 = vpop.f32.mrf.mxu0
    %v394 = vadd.f32 %v148, %v393
    %v395 = vpop.f32.mrf.mxu0
    %v396 = vadd.f32 %v148, %v395
    %397 = vmatmul.bf16.gmra.mxu0 %v242
    %v398 = vpop.f32.mrf.mxu0
    %v399 = vadd.f32 %v148, %v398
    %v400 = vpop.f32.mrf.mxu0
    %v401 = vadd.f32 %v148, %v400
    %402 = vmatmul.bf16.gmra.mxu0 %v245
    %v403 = vpop.f32.mrf.mxu0
    %v404 = vadd.f32 %v148, %v403
    %v405 = vpop.f32.mrf.mxu0
    %v406 = vadd.f32 %v148, %v405
    %407 = vmatmul.bf16.gmra.mxu0 %v248
    %v408 = vpop.f32.mrf.mxu0
    %v409 = vadd.f32 %v148, %v408
    %v410 = vpop.f32.mrf.mxu0
    %v411 = vadd.f32 %v148, %v410
    %412 = vmatmul.bf16.gmra.mxu0 %v251
    %v413 = vpop.f32.mrf.mxu0
    %v414 = vadd.f32 %v148, %v413
    %v415 = vpop.f32.mrf.mxu0
    %v416 = vadd.f32 %v148, %v415
    %417 = vmatmul.bf16.gmra.mxu0 %v254
    %v418 = vpop.f32.mrf.mxu0
    %v419 = vadd.f32 %v148, %v418
    %v420 = vpop.f32.mrf.mxu0
    %v421 = vadd.f32 %v148, %v420
    %422 = vmatmul.bf16.gmra.mxu0 %v257
    %v423 = vpop.f32.mrf.mxu0
    %v424 = vadd.f32 %v148, %v423
    %v425 = vpop.f32.mrf.mxu0
    %v426 = vadd.f32 %v148, %v425
    %427 = vdwg.mxu0
    %v428 = vld [vmem:[%s2] sm:$0xf]
    %v429 = vld [vmem:[%s2 + $0x4] sm:$0xf]
    %v430 = vld [vmem:[%s2 + $0x8] sm:$0xf]
    %v431 = vld [vmem:[%s2 + $0xc] sm:$0xf]
    %v432 = vld [vmem:[%s5] sm:$0x1]
    %v434 = vperm.slane %v432, 0
    %v440 = vunpack.c.l.b16 %v428
    %v441 = vunpack.c.l.b16 %v429
    %v442 = vunpack.c.l.b16 %v430
    %v443 = vunpack.c.l.b16 %v431
    %v444 = vpack.c.b16 %v441, %v440
    %v445 = vpack.c.b16 %v443, %v442
    %448 = vmatpush.bf16.msra.mxu0 0
    %449 = vmatpush.bf16.msra.mxu0 0
    %450 = vmatpush.bf16.msra.mxu0 0
    %451 = vmatpush.bf16.msra.mxu0 0
    %452 = vmatpush.bf16.msra.mxu0 0
    %453 = vmatpush.bf16.msra.mxu0 0
    %454 = vmatpush.bf16.msra.mxu0 %v445
    %455 = vmatpush.bf16.msra.mxu0 %v444
    %456 = vmatmul.bf16.gmra.mxu0 %v164
    %v457 = vpop.f32.mrf.mxu0
    %v458 = vadd.f32 %v434, %v457
    %v459 = vpop.f32.mrf.mxu0
    %v460 = vadd.f32 %v434, %v459
    %461 = vmatmul.bf16.gmra.mxu0 %v167
    %v462 = vpop.f32.mrf.mxu0
    %v463 = vadd.f32 %v434, %v462
    %v464 = vpop.f32.mrf.mxu0
    %v465 = vadd.f32 %v434, %v464
    %466 = vmatmul.bf16.gmra.mxu0 %v170
    %v467 = vpop.f32.mrf.mxu0
    %v468 = vadd.f32 %v434, %v467
    %v469 = vpop.f32.mrf.mxu0
    %v470 = vadd.f32 %v434, %v469
    %471 = vmatmul.bf16.gmra.mxu0 %v173
    %v472 = vpop.f32.mrf.mxu0
    %v473 = vadd.f32 %v434, %v472
    %v474 = vpop.f32.mrf.mxu0
    %v475 = vadd.f32 %v434, %v474
    %476 = vmatmul.bf16.gmra.mxu0 %v176
    %v477 = vpop.f32.mrf.mxu0
    %v478 = vadd.f32 %v434, %v477
    %v479 = vpop.f32.mrf.mxu0
    %v480 = vadd.f32 %v434, %v479
    %481 = vmatmul.bf16.gmra.mxu0 %v179
    %v482 = vpop.f32.mrf.mxu0
    %v483 = vadd.f32 %v434, %v482
    %v484 = vpop.f32.mrf.mxu0
    %v485 = vadd.f32 %v434, %v484
    %486 = vmatmul.bf16.gmra.mxu0 %v182
    %v487 = vpop.f32.mrf.mxu0
    %v488 = vadd.f32 %v434, %v487
    %v489 = vpop.f32.mrf.mxu0
    %v490 = vadd.f32 %v434, %v489
    %491 = vmatmul.bf16.gmra.mxu0 %v185
    %v492 = vpop.f32.mrf.mxu0
    %v493 = vadd.f32 %v434, %v492
    %v494 = vpop.f32.mrf.mxu0
    %v495 = vadd.f32 %v434, %v494
    %496 = vmatmul.bf16.gmra.mxu0 %v188
    %v497 = vpop.f32.mrf.mxu0
    %v498 = vadd.f32 %v434, %v497
    %v499 = vpop.f32.mrf.mxu0
    %v500 = vadd.f32 %v434, %v499
    %501 = vmatmul.bf16.gmra.mxu0 %v191
    %v502 = vpop.f32.mrf.mxu0
    %v503 = vadd.f32 %v434, %v502
    %v504 = vpop.f32.mrf.mxu0
    %v505 = vadd.f32 %v434, %v504
    %506 = vmatmul.bf16.gmra.mxu0 %v194
    %v507 = vpop.f32.mrf.mxu0
    %v508 = vadd.f32 %v434, %v507
    %v509 = vpop.f32.mrf.mxu0
    %v510 = vadd.f32 %v434, %v509
    %511 = vmatmul.bf16.gmra.mxu0 %v197
    %v512 = vpop.f32.mrf.mxu0
    %v513 = vadd.f32 %v434, %v512
    %v514 = vpop.f32.mrf.mxu0
    %v515 = vadd.f32 %v434, %v514
    %516 = vmatmul.bf16.gmra.mxu0 %v200
    %v517 = vpop.f32.mrf.mxu0
    %v518 = vadd.f32 %v434, %v517
    %v519 = vpop.f32.mrf.mxu0
    %v520 = vadd.f32 %v434, %v519
    %521 = vmatmul.bf16.gmra.mxu0 %v203
    %v522 = vpop.f32.mrf.mxu0
    %v523 = vadd.f32 %v434, %v522
    %v524 = vpop.f32.mrf.mxu0
    %v525 = vadd.f32 %v434, %v524
    %526 = vmatmul.bf16.gmra.mxu0 %v206
    %v527 = vpop.f32.mrf.mxu0
    %v528 = vadd.f32 %v434, %v527
    %v529 = vpop.f32.mrf.mxu0
    %v530 = vadd.f32 %v434, %v529
    %531 = vmatmul.bf16.gmra.mxu0 %v209
    %v532 = vpop.f32.mrf.mxu0
    %v533 = vadd.f32 %v434, %v532
    %v534 = vpop.f32.mrf.mxu0
    %v535 = vadd.f32 %v434, %v534
    %536 = vmatmul.bf16.gmra.mxu0 %v212
    %v537 = vpop.f32.mrf.mxu0
    %v538 = vadd.f32 %v434, %v537
    %v539 = vpop.f32.mrf.mxu0
    %v540 = vadd.f32 %v434, %v539
    %541 = vmatmul.bf16.gmra.mxu0 %v215
    %v542 = vpop.f32.mrf.mxu0
    %v543 = vadd.f32 %v434, %v542
    %v544 = vpop.f32.mrf.mxu0
    %v545 = vadd.f32 %v434, %v544
    %546 = vmatmul.bf16.gmra.mxu0 %v218
    %v547 = vpop.f32.mrf.mxu0
    %v548 = vadd.f32 %v434, %v547
    %v549 = vpop.f32.mrf.mxu0
    %v550 = vadd.f32 %v434, %v549
    %551 = vmatmul.bf16.gmra.mxu0 %v221
    %v552 = vpop.f32.mrf.mxu0
    %v553 = vadd.f32 %v434, %v552
    %v554 = vpop.f32.mrf.mxu0
    %v555 = vadd.f32 %v434, %v554
    %556 = vmatmul.bf16.gmra.mxu0 %v224
    %v557 = vpop.f32.mrf.mxu0
    %v558 = vadd.f32 %v434, %v557
    %v559 = vpop.f32.mrf.mxu0
    %v560 = vadd.f32 %v434, %v559
    %561 = vmatmul.bf16.gmra.mxu0 %v227
    %v562 = vpop.f32.mrf.mxu0
    %v563 = vadd.f32 %v434, %v562
    %v564 = vpop.f32.mrf.mxu0
    %v565 = vadd.f32 %v434, %v564
    %566 = vmatmul.bf16.gmra.mxu0 %v230
    %v567 = vpop.f32.mrf.mxu0
    %v568 = vadd.f32 %v434, %v567
    %v569 = vpop.f32.mrf.mxu0
    %v570 = vadd.f32 %v434, %v569
    %571 = vmatmul.bf16.gmra.mxu0 %v233
    %v572 = vpop.f32.mrf.mxu0
    %v573 = vadd.f32 %v434, %v572
    %v574 = vpop.f32.mrf.mxu0
    %v575 = vadd.f32 %v434, %v574
    %576 = vmatmul.bf16.gmra.mxu0 %v236
    %v577 = vpop.f32.mrf.mxu0
    %v578 = vadd.f32 %v434, %v577
    %v579 = vpop.f32.mrf.mxu0
    %v580 = vadd.f32 %v434, %v579
    %581 = vmatmul.bf16.gmra.mxu0 %v239
    %v582 = vpop.f32.mrf.mxu0
    %v583 = vadd.f32 %v434, %v582
    %v584 = vpop.f32.mrf.mxu0
    %v585 = vadd.f32 %v434, %v584
    %586 = vmatmul.bf16.gmra.mxu0 %v242
    %v587 = vpop.f32.mrf.mxu0
    %v588 = vadd.f32 %v434, %v587
    %v589 = vpop.f32.mrf.mxu0
    %v590 = vadd.f32 %v434, %v589
    %591 = vmatmul.bf16.gmra.mxu0 %v245
    %v592 = vpop.f32.mrf.mxu0
    %v593 = vadd.f32 %v434, %v592
    %v594 = vpop.f32.mrf.mxu0
    %v595 = vadd.f32 %v434, %v594
    %596 = vmatmul.bf16.gmra.mxu0 %v248
    %v597 = vpop.f32.mrf.mxu0
    %v598 = vadd.f32 %v434, %v597
    %v599 = vpop.f32.mrf.mxu0
    %v600 = vadd.f32 %v434, %v599
    %601 = vmatmul.bf16.gmra.mxu0 %v251
    %v602 = vpop.f32.mrf.mxu0
    %v603 = vadd.f32 %v434, %v602
    %v604 = vpop.f32.mrf.mxu0
    %v605 = vadd.f32 %v434, %v604
    %606 = vmatmul.bf16.gmra.mxu0 %v254
    %v607 = vpop.f32.mrf.mxu0
    %v608 = vadd.f32 %v434, %v607
    %v609 = vpop.f32.mrf.mxu0
    %v610 = vadd.f32 %v434, %v609
    %611 = vmatmul.bf16.gmra.mxu0 %v257
    %v612 = vpop.f32.mrf.mxu0
    %v613 = vadd.f32 %v434, %v612
    %v614 = vpop.f32.mrf.mxu0
    %v615 = vadd.f32 %v434, %v614
    %616 = vdwg.mxu0
    %v617 = vld [vmem:[%s3] sm:$0xf]
    %v618 = vld [vmem:[%s3 + $0x4] sm:$0xf]
    %v619 = vld [vmem:[%s3 + $0x8] sm:$0xf]
    %v620 = vld [vmem:[%s3 + $0xc] sm:$0xf]
    %v621 = vld [vmem:[%s6] sm:$0x1]
    %v623 = vperm.slane %v621, 0
    %v629 = vunpack.c.l.b16 %v617
    %v630 = vunpack.c.l.b16 %v618
    %v631 = vunpack.c.l.b16 %v619
    %v632 = vunpack.c.l.b16 %v620
    %v633 = vpack.c.b16 %v630, %v629
    %v634 = vpack.c.b16 %v632, %v631
    %637 = vmatpush.bf16.msra.mxu0 0
    %638 = vmatpush.bf16.msra.mxu0 0
    %639 = vmatpush.bf16.msra.mxu0 0
    %640 = vmatpush.bf16.msra.mxu0 0
    %641 = vmatpush.bf16.msra.mxu0 0
    %642 = vmatpush.bf16.msra.mxu0 0
    %643 = vmatpush.bf16.msra.mxu0 %v634
    %644 = vmatpush.bf16.msra.mxu0 %v633
    %645 = vmatmul.bf16.gmra.mxu0 %v164
    %v646 = vpop.f32.mrf.mxu0
    %v647 = vadd.f32 %v623, %v646
    %v648 = vpop.f32.mrf.mxu0
    %v649 = vadd.f32 %v623, %v648
    %650 = vmatmul.bf16.gmra.mxu0 %v167
    %v651 = vpop.f32.mrf.mxu0
    %v652 = vadd.f32 %v623, %v651
    %v653 = vpop.f32.mrf.mxu0
    %v654 = vadd.f32 %v623, %v653
    %655 = vmatmul.bf16.gmra.mxu0 %v170
    %v656 = vpop.f32.mrf.mxu0
    %v657 = vadd.f32 %v623, %v656
    %v658 = vpop.f32.mrf.mxu0
    %v659 = vadd.f32 %v623, %v658
    %660 = vmatmul.bf16.gmra.mxu0 %v173
    %v661 = vpop.f32.mrf.mxu0
    %v662 = vadd.f32 %v623, %v661
    %v663 = vpop.f32.mrf.mxu0
    %v664 = vadd.f32 %v623, %v663
    %665 = vmatmul.bf16.gmra.mxu0 %v176
    %v666 = vpop.f32.mrf.mxu0
    %v667 = vadd.f32 %v623, %v666
    %v668 = vpop.f32.mrf.mxu0
    %v669 = vadd.f32 %v623, %v668
    %670 = vmatmul.bf16.gmra.mxu0 %v179
    %v671 = vpop.f32.mrf.mxu0
    %v672 = vadd.f32 %v623, %v671
    %v673 = vpop.f32.mrf.mxu0
    %v674 = vadd.f32 %v623, %v673
    %675 = vmatmul.bf16.gmra.mxu0 %v182
    %v676 = vpop.f32.mrf.mxu0
    %v677 = vadd.f32 %v623, %v676
    %v678 = vpop.f32.mrf.mxu0
    %v679 = vadd.f32 %v623, %v678
    %680 = vmatmul.bf16.gmra.mxu0 %v185
    %v681 = vpop.f32.mrf.mxu0
    %v682 = vadd.f32 %v623, %v681
    %v683 = vpop.f32.mrf.mxu0
    %v684 = vadd.f32 %v623, %v683
    %685 = vmatmul.bf16.gmra.mxu0 %v188
    %v686 = vpop.f32.mrf.mxu0
    %v687 = vadd.f32 %v623, %v686
    %v688 = vpop.f32.mrf.mxu0
    %v689 = vadd.f32 %v623, %v688
    %690 = vmatmul.bf16.gmra.mxu0 %v191
    %v691 = vpop.f32.mrf.mxu0
    %v692 = vadd.f32 %v623, %v691
    %v693 = vpop.f32.mrf.mxu0
    %v694 = vadd.f32 %v623, %v693
    %695 = vmatmul.bf16.gmra.mxu0 %v194
    %v696 = vpop.f32.mrf.mxu0
    %v697 = vadd.f32 %v623, %v696
    %v698 = vpop.f32.mrf.mxu0
    %v699 = vadd.f32 %v623, %v698
    %700 = vmatmul.bf16.gmra.mxu0 %v197
    %v701 = vpop.f32.mrf.mxu0
    %v702 = vadd.f32 %v623, %v701
    %v703 = vpop.f32.mrf.mxu0
    %v704 = vadd.f32 %v623, %v703
    %705 = vmatmul.bf16.gmra.mxu0 %v200
    %v706 = vpop.f32.mrf.mxu0
    %v707 = vadd.f32 %v623, %v706
    %v708 = vpop.f32.mrf.mxu0
    %v709 = vadd.f32 %v623, %v708
    %710 = vmatmul.bf16.gmra.mxu0 %v203
    %v711 = vpop.f32.mrf.mxu0
    %v712 = vadd.f32 %v623, %v711
    %v713 = vpop.f32.mrf.mxu0
    %v714 = vadd.f32 %v623, %v713
    %715 = vmatmul.bf16.gmra.mxu0 %v206
    %v716 = vpop.f32.mrf.mxu0
    %v717 = vadd.f32 %v623, %v716
    %v718 = vpop.f32.mrf.mxu0
    %v719 = vadd.f32 %v623, %v718
    %720 = vmatmul.bf16.gmra.mxu0 %v209
    %v721 = vpop.f32.mrf.mxu0
    %v722 = vadd.f32 %v623, %v721
    %v723 = vpop.f32.mrf.mxu0
    %v724 = vadd.f32 %v623, %v723
    %725 = vmatmul.bf16.gmra.mxu0 %v212
    %v726 = vpop.f32.mrf.mxu0
    %v727 = vadd.f32 %v623, %v726
    %v728 = vpop.f32.mrf.mxu0
    %v729 = vadd.f32 %v623, %v728
    %730 = vmatmul.bf16.gmra.mxu0 %v215
    %v731 = vpop.f32.mrf.mxu0
    %v732 = vadd.f32 %v623, %v731
    %v733 = vpop.f32.mrf.mxu0
    %v734 = vadd.f32 %v623, %v733
    %735 = vmatmul.bf16.gmra.mxu0 %v218
    %v736 = vpop.f32.mrf.mxu0
    %v737 = vadd.f32 %v623, %v736
    %v738 = vpop.f32.mrf.mxu0
    %v739 = vadd.f32 %v623, %v738
    %740 = vmatmul.bf16.gmra.mxu0 %v221
    %v741 = vpop.f32.mrf.mxu0
    %v742 = vadd.f32 %v623, %v741
    %v743 = vpop.f32.mrf.mxu0
    %v744 = vadd.f32 %v623, %v743
    %745 = vmatmul.bf16.gmra.mxu0 %v224
    %v746 = vpop.f32.mrf.mxu0
    %v747 = vadd.f32 %v623, %v746
    %v748 = vpop.f32.mrf.mxu0
    %v749 = vadd.f32 %v623, %v748
    %750 = vmatmul.bf16.gmra.mxu0 %v227
    %v751 = vpop.f32.mrf.mxu0
    %v752 = vadd.f32 %v623, %v751
    %v753 = vpop.f32.mrf.mxu0
    %v754 = vadd.f32 %v623, %v753
    %755 = vmatmul.bf16.gmra.mxu0 %v230
    %v756 = vpop.f32.mrf.mxu0
    %v757 = vadd.f32 %v623, %v756
    %v758 = vpop.f32.mrf.mxu0
    %v759 = vadd.f32 %v623, %v758
    %760 = vmatmul.bf16.gmra.mxu0 %v233
    %v761 = vpop.f32.mrf.mxu0
    %v762 = vadd.f32 %v623, %v761
    %v763 = vpop.f32.mrf.mxu0
    %v764 = vadd.f32 %v623, %v763
    %765 = vmatmul.bf16.gmra.mxu0 %v236
    %v766 = vpop.f32.mrf.mxu0
    %v767 = vadd.f32 %v623, %v766
    %v768 = vpop.f32.mrf.mxu0
    %v769 = vadd.f32 %v623, %v768
    %770 = vmatmul.bf16.gmra.mxu0 %v239
    %v771 = vpop.f32.mrf.mxu0
    %v772 = vadd.f32 %v623, %v771
    %v773 = vpop.f32.mrf.mxu0
    %v774 = vadd.f32 %v623, %v773
    %775 = vmatmul.bf16.gmra.mxu0 %v242
    %v776 = vpop.f32.mrf.mxu0
    %v777 = vadd.f32 %v623, %v776
    %v778 = vpop.f32.mrf.mxu0
    %v779 = vadd.f32 %v623, %v778
    %780 = vmatmul.bf16.gmra.mxu0 %v245
    %v781 = vpop.f32.mrf.mxu0
    %v782 = vadd.f32 %v623, %v781
    %v783 = vpop.f32.mrf.mxu0
    %v784 = vadd.f32 %v623, %v783
    %785 = vmatmul.bf16.gmra.mxu0 %v248
    %v786 = vpop.f32.mrf.mxu0
    %v787 = vadd.f32 %v623, %v786
    %v788 = vpop.f32.mrf.mxu0
    %v789 = vadd.f32 %v623, %v788
    %790 = vmatmul.bf16.gmra.mxu0 %v251
    %v791 = vpop.f32.mrf.mxu0
    %v792 = vadd.f32 %v623, %v791
    %v793 = vpop.f32.mrf.mxu0
    %v794 = vadd.f32 %v623, %v793
    %795 = vmatmul.bf16.gmra.mxu0 %v254
    %v796 = vpop.f32.mrf.mxu0
    %v797 = vadd.f32 %v623, %v796
    %v798 = vpop.f32.mrf.mxu0
    %v799 = vadd.f32 %v623, %v798
    %800 = vmatmul.bf16.gmra.mxu0 %v257
    %v801 = vpop.f32.mrf.mxu0
    %v802 = vadd.f32 %v623, %v801
    %v803 = vpop.f32.mrf.mxu0
    %v804 = vadd.f32 %v623, %v803
    %805 = vdwg.mxu0
    %v806 = vpack.c.bf16 %v269, %v269
    %v807 = vpack.c.bf16 %v271, %v271
    %v808 = vpack.c.bf16 %v274, %v274
    %v809 = vpack.c.bf16 %v276, %v276
    %v810 = vpack.c.bf16 %v279, %v279
    %v811 = vpack.c.bf16 %v281, %v281
    %v812 = vpack.c.bf16 %v284, %v284
    %v813 = vpack.c.bf16 %v286, %v286
    %v814 = vpack.c.bf16 %v289, %v289
    %v815 = vpack.c.bf16 %v291, %v291
    %v816 = vpack.c.bf16 %v294, %v294
    %v817 = vpack.c.bf16 %v296, %v296
    %v818 = vpack.c.bf16 %v299, %v299
    %v819 = vpack.c.bf16 %v301, %v301
    %v820 = vpack.c.bf16 %v304, %v304
    %v821 = vpack.c.bf16 %v306, %v306
    %v822 = vpack.c.bf16 %v309, %v309
    %v823 = vpack.c.bf16 %v311, %v311
    %v824 = vpack.c.bf16 %v314, %v314
    %v825 = vpack.c.bf16 %v316, %v316
    %v826 = vpack.c.bf16 %v319, %v319
    %v827 = vpack.c.bf16 %v321, %v321
    %v828 = vpack.c.bf16 %v324, %v324
    %v829 = vpack.c.bf16 %v326, %v326
    %v830 = vpack.c.bf16 %v329, %v329
    %v831 = vpack.c.bf16 %v331, %v331
    %v832 = vpack.c.bf16 %v334, %v334
    %v833 = vpack.c.bf16 %v336, %v336
    %v834 = vpack.c.bf16 %v339, %v339
    %v835 = vpack.c.bf16 %v341, %v341
    %v836 = vpack.c.bf16 %v344, %v344
    %v837 = vpack.c.bf16 %v346, %v346
    %v838 = vpack.c.bf16 %v349, %v349
    %v839 = vpack.c.bf16 %v351, %v351
    %v840 = vpack.c.bf16 %v354, %v354
    %v841 = vpack.c.bf16 %v356, %v356
    %v842 = vpack.c.bf16 %v359, %v359
    %v843 = vpack.c.bf16 %v361, %v361
    %v844 = vpack.c.bf16 %v364, %v364
    %v845 = vpack.c.bf16 %v366, %v366
    %v846 = vpack.c.bf16 %v369, %v369
    %v847 = vpack.c.bf16 %v371, %v371
    %v848 = vpack.c.bf16 %v374, %v374
    %v849 = vpack.c.bf16 %v376, %v376
    %v850 = vpack.c.bf16 %v379, %v379
    %v851 = vpack.c.bf16 %v381, %v381
    %v852 = vpack.c.bf16 %v384, %v384
    %v853 = vpack.c.bf16 %v386, %v386
    %v854 = vpack.c.bf16 %v389, %v389
    %v855 = vpack.c.bf16 %v391, %v391
    %v856 = vpack.c.bf16 %v394, %v394
    %v857 = vpack.c.bf16 %v396, %v396
    %v858 = vpack.c.bf16 %v399, %v399
    %v859 = vpack.c.bf16 %v401, %v401
    %v860 = vpack.c.bf16 %v404, %v404
    %v861 = vpack.c.bf16 %v406, %v406
    %v862 = vpack.c.bf16 %v409, %v409
    %v863 = vpack.c.bf16 %v411, %v411
    %v864 = vpack.c.bf16 %v414, %v414
    %v865 = vpack.c.bf16 %v416, %v416
    %v866 = vpack.c.bf16 %v419, %v419
    %v867 = vpack.c.bf16 %v421, %v421
    %v868 = vpack.c.bf16 %v424, %v424
    %v869 = vpack.c.bf16 %v426, %v426
    %870 = vst [vmem:[%s7] sm:$0xf] %v806
    %871 = vst [vmem:[%s7 + $0x4] sm:$0xf] %v807
    %872 = vst [vmem:[%s7 + $0x8] sm:$0xf] %v808
    %873 = vst [vmem:[%s7 + $0xc] sm:$0xf] %v809
    %874 = vst [vmem:[%s7 + $0x10] sm:$0xf] %v810
    %875 = vst [vmem:[%s7 + $0x14] sm:$0xf] %v811
    %876 = vst [vmem:[%s7 + $0x18] sm:$0xf] %v812
    %877 = vst [vmem:[%s7 + $0x1c] sm:$0xf] %v813
    %878 = vst [vmem:[%s7 + $0x20] sm:$0xf] %v814
    %879 = vst [vmem:[%s7 + $0x24] sm:$0xf] %v815
    %880 = vst [vmem:[%s7 + $0x28] sm:$0xf] %v816
    %881 = vst [vmem:[%s7 + $0x2c] sm:$0xf] %v817
    %882 = vst [vmem:[%s7 + $0x30] sm:$0xf] %v818
    %883 = vst [vmem:[%s7 + $0x34] sm:$0xf] %v819
    %884 = vst [vmem:[%s7 + $0x38] sm:$0xf] %v820
    %885 = vst [vmem:[%s7 + $0x3c] sm:$0xf] %v821
    %886 = vst [vmem:[%s7 + $0x40] sm:$0xf] %v822
    %887 = vst [vmem:[%s7 + $0x44] sm:$0xf] %v823
    %888 = vst [vmem:[%s7 + $0x48] sm:$0xf] %v824
    %889 = vst [vmem:[%s7 + $0x4c] sm:$0xf] %v825
    %890 = vst [vmem:[%s7 + $0x50] sm:$0xf] %v826
    %891 = vst [vmem:[%s7 + $0x54] sm:$0xf] %v827
    %892 = vst [vmem:[%s7 + $0x58] sm:$0xf] %v828
    %893 = vst [vmem:[%s7 + $0x5c] sm:$0xf] %v829
    %894 = vst [vmem:[%s7 + $0x60] sm:$0xf] %v830
    %895 = vst [vmem:[%s7 + $0x64] sm:$0xf] %v831
    %896 = vst [vmem:[%s7 + $0x68] sm:$0xf] %v832
    %897 = vst [vmem:[%s7 + $0x6c] sm:$0xf] %v833
    %898 = vst [vmem:[%s7 + $0x70] sm:$0xf] %v834
    %899 = vst [vmem:[%s7 + $0x74] sm:$0xf] %v835
    %900 = vst [vmem:[%s7 + $0x78] sm:$0xf] %v836
    %901 = vst [vmem:[%s7 + $0x7c] sm:$0xf] %v837
    %902 = vst [vmem:[%s7 + $0x80] sm:$0xf] %v838
    %903 = vst [vmem:[%s7 + $0x84] sm:$0xf] %v839
    %904 = vst [vmem:[%s7 + $0x88] sm:$0xf] %v840
    %905 = vst [vmem:[%s7 + $0x8c] sm:$0xf] %v841
    %906 = vst [vmem:[%s7 + $0x90] sm:$0xf] %v842
    %907 = vst [vmem:[%s7 + $0x94] sm:$0xf] %v843
    %908 = vst [vmem:[%s7 + $0x98] sm:$0xf] %v844
    %909 = vst [vmem:[%s7 + $0x9c] sm:$0xf] %v845
    %910 = vst [vmem:[%s7 + $0xa0] sm:$0xf] %v846
    %911 = vst [vmem:[%s7 + $0xa4] sm:$0xf] %v847
    %912 = vst [vmem:[%s7 + $0xa8] sm:$0xf] %v848
    %913 = vst [vmem:[%s7 + $0xac] sm:$0xf] %v849
    %914 = vst [vmem:[%s7 + $0xb0] sm:$0xf] %v850
    %915 = vst [vmem:[%s7 + $0xb4] sm:$0xf] %v851
    %916 = vst [vmem:[%s7 + $0xb8] sm:$0xf] %v852
    %917 = vst [vmem:[%s7 + $0xbc] sm:$0xf] %v853
    %918 = vst [vmem:[%s7 + $0xc0] sm:$0xf] %v854
    %919 = vst [vmem:[%s7 + $0xc4] sm:$0xf] %v855
    %920 = vst [vmem:[%s7 + $0xc8] sm:$0xf] %v856
    %921 = vst [vmem:[%s7 + $0xcc] sm:$0xf] %v857
    %922 = vst [vmem:[%s7 + $0xd0] sm:$0xf] %v858
    %923 = vst [vmem:[%s7 + $0xd4] sm:$0xf] %v859
    %924 = vst [vmem:[%s7 + $0xd8] sm:$0xf] %v860
    %925 = vst [vmem:[%s7 + $0xdc] sm:$0xf] %v861
    %926 = vst [vmem:[%s7 + $0xe0] sm:$0xf] %v862
    %927 = vst [vmem:[%s7 + $0xe4] sm:$0xf] %v863
    %928 = vst [vmem:[%s7 + $0xe8] sm:$0xf] %v864
    %929 = vst [vmem:[%s7 + $0xec] sm:$0xf] %v865
    %930 = vst [vmem:[%s7 + $0xf0] sm:$0xf] %v866
    %931 = vst [vmem:[%s7 + $0xf4] sm:$0xf] %v867
    %932 = vst [vmem:[%s7 + $0xf8] sm:$0xf] %v868
    %933 = vst [vmem:[%s7 + $0xfc] sm:$0xf] %v869
    %v934 = vpack.c.bf16 %v458, %v458
    %v935 = vpack.c.bf16 %v460, %v460
    %v936 = vpack.c.bf16 %v463, %v463
    %v937 = vpack.c.bf16 %v465, %v465
    %v938 = vpack.c.bf16 %v468, %v468
    %v939 = vpack.c.bf16 %v470, %v470
    %v940 = vpack.c.bf16 %v473, %v473
    %v941 = vpack.c.bf16 %v475, %v475
    %v942 = vpack.c.bf16 %v478, %v478
    %v943 = vpack.c.bf16 %v480, %v480
    %v944 = vpack.c.bf16 %v483, %v483
    %v945 = vpack.c.bf16 %v485, %v485
    %v946 = vpack.c.bf16 %v488, %v488
    %v947 = vpack.c.bf16 %v490, %v490
    %v948 = vpack.c.bf16 %v493, %v493
    %v949 = vpack.c.bf16 %v495, %v495
    %v950 = vpack.c.bf16 %v498, %v498
    %v951 = vpack.c.bf16 %v500, %v500
    %v952 = vpack.c.bf16 %v503, %v503
    %v953 = vpack.c.bf16 %v505, %v505
    %v954 = vpack.c.bf16 %v508, %v508
    %v955 = vpack.c.bf16 %v510, %v510
    %v956 = vpack.c.bf16 %v513, %v513
    %v957 = vpack.c.bf16 %v515, %v515
    %v958 = vpack.c.bf16 %v518, %v518
    %v959 = vpack.c.bf16 %v520, %v520
    %v960 = vpack.c.bf16 %v523, %v523
    %v961 = vpack.c.bf16 %v525, %v525
    %v962 = vpack.c.bf16 %v528, %v528
    %v963 = vpack.c.bf16 %v530, %v530
    %v964 = vpack.c.bf16 %v533, %v533
    %v965 = vpack.c.bf16 %v535, %v535
    %v966 = vpack.c.bf16 %v538, %v538
    %v967 = vpack.c.bf16 %v540, %v540
    %v968 = vpack.c.bf16 %v543, %v543
    %v969 = vpack.c.bf16 %v545, %v545
    %v970 = vpack.c.bf16 %v548, %v548
    %v971 = vpack.c.bf16 %v550, %v550
    %v972 = vpack.c.bf16 %v553, %v553
    %v973 = vpack.c.bf16 %v555, %v555
    %v974 = vpack.c.bf16 %v558, %v558
    %v975 = vpack.c.bf16 %v560, %v560
    %v976 = vpack.c.bf16 %v563, %v563
    %v977 = vpack.c.bf16 %v565, %v565
    %v978 = vpack.c.bf16 %v568, %v568
    %v979 = vpack.c.bf16 %v570, %v570
    %v980 = vpack.c.bf16 %v573, %v573
    %v981 = vpack.c.bf16 %v575, %v575
    %v982 = vpack.c.bf16 %v578, %v578
    %v983 = vpack.c.bf16 %v580, %v580
    %v984 = vpack.c.bf16 %v583, %v583
    %v985 = vpack.c.bf16 %v585, %v585
    %v986 = vpack.c.bf16 %v588, %v588
    %v987 = vpack.c.bf16 %v590, %v590
    %v988 = vpack.c.bf16 %v593, %v593
    %v989 = vpack.c.bf16 %v595, %v595
    %v990 = vpack.c.bf16 %v598, %v598
    %v991 = vpack.c.bf16 %v600, %v600
    %v992 = vpack.c.bf16 %v603, %v603
    %v993 = vpack.c.bf16 %v605, %v605
    %v994 = vpack.c.bf16 %v608, %v608
    %v995 = vpack.c.bf16 %v610, %v610
    %v996 = vpack.c.bf16 %v613, %v613
    %v997 = vpack.c.bf16 %v615, %v615
    %998 = vst [vmem:[%s8] sm:$0xf] %v934
    %999 = vst [vmem:[%s8 + $0x4] sm:$0xf] %v935
    %1000 = vst [vmem:[%s8 + $0x8] sm:$0xf] %v936
    %1001 = vst [vmem:[%s8 + $0xc] sm:$0xf] %v937
    %1002 = vst [vmem:[%s8 + $0x10] sm:$0xf] %v938
    %1003 = vst [vmem:[%s8 + $0x14] sm:$0xf] %v939
    %1004 = vst [vmem:[%s8 + $0x18] sm:$0xf] %v940
    %1005 = vst [vmem:[%s8 + $0x1c] sm:$0xf] %v941
    %1006 = vst [vmem:[%s8 + $0x20] sm:$0xf] %v942
    %1007 = vst [vmem:[%s8 + $0x24] sm:$0xf] %v943
    %1008 = vst [vmem:[%s8 + $0x28] sm:$0xf] %v944
    %1009 = vst [vmem:[%s8 + $0x2c] sm:$0xf] %v945
    %1010 = vst [vmem:[%s8 + $0x30] sm:$0xf] %v946
    %1011 = vst [vmem:[%s8 + $0x34] sm:$0xf] %v947
    %1012 = vst [vmem:[%s8 + $0x38] sm:$0xf] %v948
    %1013 = vst [vmem:[%s8 + $0x3c] sm:$0xf] %v949
    %1014 = vst [vmem:[%s8 + $0x40] sm:$0xf] %v950
    %1015 = vst [vmem:[%s8 + $0x44] sm:$0xf] %v951
    %1016 = vst [vmem:[%s8 + $0x48] sm:$0xf] %v952
    %1017 = vst [vmem:[%s8 + $0x4c] sm:$0xf] %v953
    %1018 = vst [vmem:[%s8 + $0x50] sm:$0xf] %v954
    %1019 = vst [vmem:[%s8 + $0x54] sm:$0xf] %v955
    %1020 = vst [vmem:[%s8 + $0x58] sm:$0xf] %v956
    %1021 = vst [vmem:[%s8 + $0x5c] sm:$0xf] %v957
    %1022 = vst [vmem:[%s8 + $0x60] sm:$0xf] %v958
    %1023 = vst [vmem:[%s8 + $0x64] sm:$0xf] %v959
    %1024 = vst [vmem:[%s8 + $0x68] sm:$0xf] %v960
    %1025 = vst [vmem:[%s8 + $0x6c] sm:$0xf] %v961
    %1026 = vst [vmem:[%s8 + $0x70] sm:$0xf] %v962
    %1027 = vst [vmem:[%s8 + $0x74] sm:$0xf] %v963
    %1028 = vst [vmem:[%s8 + $0x78] sm:$0xf] %v964
    %1029 = vst [vmem:[%s8 + $0x7c] sm:$0xf] %v965
    %1030 = vst [vmem:[%s8 + $0x80] sm:$0xf] %v966
    %1031 = vst [vmem:[%s8 + $0x84] sm:$0xf] %v967
    %1032 = vst [vmem:[%s8 + $0x88] sm:$0xf] %v968
    %1033 = vst [vmem:[%s8 + $0x8c] sm:$0xf] %v969
    %1034 = vst [vmem:[%s8 + $0x90] sm:$0xf] %v970
    %1035 = vst [vmem:[%s8 + $0x94] sm:$0xf] %v971
    %1036 = vst [vmem:[%s8 + $0x98] sm:$0xf] %v972
    %1037 = vst [vmem:[%s8 + $0x9c] sm:$0xf] %v973
    %1038 = vst [vmem:[%s8 + $0xa0] sm:$0xf] %v974
    %1039 = vst [vmem:[%s8 + $0xa4] sm:$0xf] %v975
    %1040 = vst [vmem:[%s8 + $0xa8] sm:$0xf] %v976
    %1041 = vst [vmem:[%s8 + $0xac] sm:$0xf] %v977
    %1042 = vst [vmem:[%s8 + $0xb0] sm:$0xf] %v978
    %1043 = vst [vmem:[%s8 + $0xb4] sm:$0xf] %v979
    %1044 = vst [vmem:[%s8 + $0xb8] sm:$0xf] %v980
    %1045 = vst [vmem:[%s8 + $0xbc] sm:$0xf] %v981
    %1046 = vst [vmem:[%s8 + $0xc0] sm:$0xf] %v982
    %1047 = vst [vmem:[%s8 + $0xc4] sm:$0xf] %v983
    %1048 = vst [vmem:[%s8 + $0xc8] sm:$0xf] %v984
    %1049 = vst [vmem:[%s8 + $0xcc] sm:$0xf] %v985
    %1050 = vst [vmem:[%s8 + $0xd0] sm:$0xf] %v986
    %1051 = vst [vmem:[%s8 + $0xd4] sm:$0xf] %v987
    %1052 = vst [vmem:[%s8 + $0xd8] sm:$0xf] %v988
    %1053 = vst [vmem:[%s8 + $0xdc] sm:$0xf] %v989
    %1054 = vst [vmem:[%s8 + $0xe0] sm:$0xf] %v990
    %1055 = vst [vmem:[%s8 + $0xe4] sm:$0xf] %v991
    %1056 = vst [vmem:[%s8 + $0xe8] sm:$0xf] %v992
    %1057 = vst [vmem:[%s8 + $0xec] sm:$0xf] %v993
    %1058 = vst [vmem:[%s8 + $0xf0] sm:$0xf] %v994
    %1059 = vst [vmem:[%s8 + $0xf4] sm:$0xf] %v995
    %1060 = vst [vmem:[%s8 + $0xf8] sm:$0xf] %v996
    %1061 = vst [vmem:[%s8 + $0xfc] sm:$0xf] %v997
    %v1062 = vpack.c.bf16 %v647, %v647
    %v1063 = vpack.c.bf16 %v649, %v649
    %v1064 = vpack.c.bf16 %v652, %v652
    %v1065 = vpack.c.bf16 %v654, %v654
    %v1066 = vpack.c.bf16 %v657, %v657
    %v1067 = vpack.c.bf16 %v659, %v659
    %v1068 = vpack.c.bf16 %v662, %v662
    %v1069 = vpack.c.bf16 %v664, %v664
    %v1070 = vpack.c.bf16 %v667, %v667
    %v1071 = vpack.c.bf16 %v669, %v669
    %v1072 = vpack.c.bf16 %v672, %v672
    %v1073 = vpack.c.bf16 %v674, %v674
    %v1074 = vpack.c.bf16 %v677, %v677
    %v1075 = vpack.c.bf16 %v679, %v679
    %v1076 = vpack.c.bf16 %v682, %v682
    %v1077 = vpack.c.bf16 %v684, %v684
    %v1078 = vpack.c.bf16 %v687, %v687
    %v1079 = vpack.c.bf16 %v689, %v689
    %v1080 = vpack.c.bf16 %v692, %v692
    %v1081 = vpack.c.bf16 %v694, %v694
    %v1082 = vpack.c.bf16 %v697, %v697
    %v1083 = vpack.c.bf16 %v699, %v699
    %v1084 = vpack.c.bf16 %v702, %v702
    %v1085 = vpack.c.bf16 %v704, %v704
    %v1086 = vpack.c.bf16 %v707, %v707
    %v1087 = vpack.c.bf16 %v709, %v709
    %v1088 = vpack.c.bf16 %v712, %v712
    %v1089 = vpack.c.bf16 %v714, %v714
    %v1090 = vpack.c.bf16 %v717, %v717
    %v1091 = vpack.c.bf16 %v719, %v719
    %v1092 = vpack.c.bf16 %v722, %v722
    %v1093 = vpack.c.bf16 %v724, %v724
    %v1094 = vpack.c.bf16 %v727, %v727
    %v1095 = vpack.c.bf16 %v729, %v729
    %v1096 = vpack.c.bf16 %v732, %v732
    %v1097 = vpack.c.bf16 %v734, %v734
    %v1098 = vpack.c.bf16 %v737, %v737
    %v1099 = vpack.c.bf16 %v739, %v739
    %v1100 = vpack.c.bf16 %v742, %v742
    %v1101 = vpack.c.bf16 %v744, %v744
    %v1102 = vpack.c.bf16 %v747, %v747
    %v1103 = vpack.c.bf16 %v749, %v749
    %v1104 = vpack.c.bf16 %v752, %v752
    %v1105 = vpack.c.bf16 %v754, %v754
    %v1106 = vpack.c.bf16 %v757, %v757
    %v1107 = vpack.c.bf16 %v759, %v759
    %v1108 = vpack.c.bf16 %v762, %v762
    %v1109 = vpack.c.bf16 %v764, %v764
    %v1110 = vpack.c.bf16 %v767, %v767
    %v1111 = vpack.c.bf16 %v769, %v769
    %v1112 = vpack.c.bf16 %v772, %v772
    %v1113 = vpack.c.bf16 %v774, %v774
    %v1114 = vpack.c.bf16 %v777, %v777
    %v1115 = vpack.c.bf16 %v779, %v779
    %v1116 = vpack.c.bf16 %v782, %v782
    %v1117 = vpack.c.bf16 %v784, %v784
    %v1118 = vpack.c.bf16 %v787, %v787
    %v1119 = vpack.c.bf16 %v789, %v789
    %v1120 = vpack.c.bf16 %v792, %v792
    %v1121 = vpack.c.bf16 %v794, %v794
    %v1122 = vpack.c.bf16 %v797, %v797
    %v1123 = vpack.c.bf16 %v799, %v799
    %v1124 = vpack.c.bf16 %v802, %v802
    %v1125 = vpack.c.bf16 %v804, %v804
    %1126 = vst [vmem:[%s9] sm:$0xf] %v1062
    %1127 = vst [vmem:[%s9 + $0x4] sm:$0xf] %v1063
    %1128 = vst [vmem:[%s9 + $0x8] sm:$0xf] %v1064
    %1129 = vst [vmem:[%s9 + $0xc] sm:$0xf] %v1065
    %1130 = vst [vmem:[%s9 + $0x10] sm:$0xf] %v1066
    %1131 = vst [vmem:[%s9 + $0x14] sm:$0xf] %v1067
    %1132 = vst [vmem:[%s9 + $0x18] sm:$0xf] %v1068
    %1133 = vst [vmem:[%s9 + $0x1c] sm:$0xf] %v1069
    %1134 = vst [vmem:[%s9 + $0x20] sm:$0xf] %v1070
    %1135 = vst [vmem:[%s9 + $0x24] sm:$0xf] %v1071
    %1136 = vst [vmem:[%s9 + $0x28] sm:$0xf] %v1072
    %1137 = vst [vmem:[%s9 + $0x2c] sm:$0xf] %v1073
    %1138 = vst [vmem:[%s9 + $0x30] sm:$0xf] %v1074
    %1139 = vst [vmem:[%s9 + $0x34] sm:$0xf] %v1075
    %1140 = vst [vmem:[%s9 + $0x38] sm:$0xf] %v1076
    %1141 = vst [vmem:[%s9 + $0x3c] sm:$0xf] %v1077
    %1142 = vst [vmem:[%s9 + $0x40] sm:$0xf] %v1078
    %1143 = vst [vmem:[%s9 + $0x44] sm:$0xf] %v1079
    %1144 = vst [vmem:[%s9 + $0x48] sm:$0xf] %v1080
    %1145 = vst [vmem:[%s9 + $0x4c] sm:$0xf] %v1081
    %1146 = vst [vmem:[%s9 + $0x50] sm:$0xf] %v1082
    %1147 = vst [vmem:[%s9 + $0x54] sm:$0xf] %v1083
    %1148 = vst [vmem:[%s9 + $0x58] sm:$0xf] %v1084
    %1149 = vst [vmem:[%s9 + $0x5c] sm:$0xf] %v1085
    %1150 = vst [vmem:[%s9 + $0x60] sm:$0xf] %v1086
    %1151 = vst [vmem:[%s9 + $0x64] sm:$0xf] %v1087
    %1152 = vst [vmem:[%s9 + $0x68] sm:$0xf] %v1088
    %1153 = vst [vmem:[%s9 + $0x6c] sm:$0xf] %v1089
    %1154 = vst [vmem:[%s9 + $0x70] sm:$0xf] %v1090
    %1155 = vst [vmem:[%s9 + $0x74] sm:$0xf] %v1091
    %1156 = vst [vmem:[%s9 + $0x78] sm:$0xf] %v1092
    %1157 = vst [vmem:[%s9 + $0x7c] sm:$0xf] %v1093
    %1158 = vst [vmem:[%s9 + $0x80] sm:$0xf] %v1094
    %1159 = vst [vmem:[%s9 + $0x84] sm:$0xf] %v1095
    %1160 = vst [vmem:[%s9 + $0x88] sm:$0xf] %v1096
    %1161 = vst [vmem:[%s9 + $0x8c] sm:$0xf] %v1097
    %1162 = vst [vmem:[%s9 + $0x90] sm:$0xf] %v1098
    %1163 = vst [vmem:[%s9 + $0x94] sm:$0xf] %v1099
    %1164 = vst [vmem:[%s9 + $0x98] sm:$0xf] %v1100
    %1165 = vst [vmem:[%s9 + $0x9c] sm:$0xf] %v1101
    %1166 = vst [vmem:[%s9 + $0xa0] sm:$0xf] %v1102
    %1167 = vst [vmem:[%s9 + $0xa4] sm:$0xf] %v1103
    %1168 = vst [vmem:[%s9 + $0xa8] sm:$0xf] %v1104
    %1169 = vst [vmem:[%s9 + $0xac] sm:$0xf] %v1105
    %1170 = vst [vmem:[%s9 + $0xb0] sm:$0xf] %v1106
    %1171 = vst [vmem:[%s9 + $0xb4] sm:$0xf] %v1107
    %1172 = vst [vmem:[%s9 + $0xb8] sm:$0xf] %v1108
    %1173 = vst [vmem:[%s9 + $0xbc] sm:$0xf] %v1109
    %1174 = vst [vmem:[%s9 + $0xc0] sm:$0xf] %v1110
    %1175 = vst [vmem:[%s9 + $0xc4] sm:$0xf] %v1111
    %1176 = vst [vmem:[%s9 + $0xc8] sm:$0xf] %v1112
    %1177 = vst [vmem:[%s9 + $0xcc] sm:$0xf] %v1113
    %1178 = vst [vmem:[%s9 + $0xd0] sm:$0xf] %v1114
    %1179 = vst [vmem:[%s9 + $0xd4] sm:$0xf] %v1115
    %1180 = vst [vmem:[%s9 + $0xd8] sm:$0xf] %v1116
    %1181 = vst [vmem:[%s9 + $0xdc] sm:$0xf] %v1117
    %1182 = vst [vmem:[%s9 + $0xe0] sm:$0xf] %v1118
    %1183 = vst [vmem:[%s9 + $0xe4] sm:$0xf] %v1119
    %1184 = vst [vmem:[%s9 + $0xe8] sm:$0xf] %v1120
    %1185 = vst [vmem:[%s9 + $0xec] sm:$0xf] %v1121
    %1186 = vst [vmem:[%s9 + $0xf0] sm:$0xf] %v1122
    %1187 = vst [vmem:[%s9 + $0xf4] sm:$0xf] %v1123
    %1188 = vst [vmem:[%s9 + $0xf8] sm:$0xf] %v1124
    %1189 = vst [vmem:[%s9 + $0xfc] sm:$0xf] %v1125
    // Predicated region
    $region34: #{nonlocal_block.3} parent=1 // pred_check
      _
    $region35: #{nonlocal_block.3} parent=1 // pred_check_branch
      %1191 = sbr.rel (0) target = $region37
    $region36: #{nonlocal_block.3} parent=1 // pred_region
      _
    $region37: #{nonlocal_block.3} parent=1 // pred_fallthru
      _
    // Predicated region
    $region38: #{nonlocal_block.3} parent=1 // pred_check
      _
    $region39: #{nonlocal_block.3} parent=1 // pred_check_branch
      %1193 = sbr.rel (0) target = $region41
    $region40: #{nonlocal_block.3} parent=1 // pred_region
      _
    $region41: #{nonlocal_block.3} parent=1 // pred_fallthru
      _
    // Predicated region
    $region42: #{nonlocal_block.3} parent=1 // pred_check
      _
    $region43: #{nonlocal_block.3} parent=1 // pred_check_branch
      %1195 = sbr.rel (0) target = $region45
    $region44: #{nonlocal_block.3} parent=1 // pred_region
      _
    $region45: #{nonlocal_block.3} parent=1 // pred_fallthru
      _
    // Predicated region
    $region46: #{nonlocal_block.3} parent=1 // pred_check
      _
    $region47: #{nonlocal_block.3} parent=1 // pred_check_branch
      %1197 = sbr.rel (0) target = $region49
    $region48: #{nonlocal_block.3} parent=1 // pred_region
      _
    $region49: #{nonlocal_block.3} parent=1 // pred_fallthru
      _
    // Predicated region
    $region50: #{nonlocal_block.3} parent=1 // pred_check
      _
    $region51: #{nonlocal_block.3} parent=1 // pred_check_branch
      %1199 = sbr.rel (0) target = $region53
    $region52: #{nonlocal_block.3} parent=1 // pred_region
      _
    $region53: #{nonlocal_block.3} parent=1 // pred_fallthru
      _
    // Predicated region
    $region54: #{nonlocal_block.3} parent=1 // pred_check
      _
    $region55: #{nonlocal_block.3} parent=1 // pred_check_branch
      %1201 = sbr.rel (0) target = $region57
    $region56: #{nonlocal_block.3} parent=1 // pred_region
      _
    $region57: #{nonlocal_block.3} parent=1 // pred_fallthru
      _
    %1202 = vsyncpa [#allocation3], 1

// kernel: nonlocal_block.4
$region0: #{nonlocal_block.4}
  #allocation0 [shape = 'u32[]', space=smem, size = 0x4, offset = 0x4, fixed_abs, tag = 'smem constant byte address 0x4 - core index']
  #allocation1 [shape = 'u32[72,128]{1,0:T(1,128)}', space=vmem, size = 0x9000, scoped, tag = 'internal scratch']
  #allocation2 [shape = 'f32[256,1]{1,0:T(8,128)}', space=vmem, size = 0x20000, scoped, tag = 'scratch operand']
  #allocation3 [shape = 'f32[256,1]{1,0:T(8,128)}', space=vmem, size = 0x20000, scoped, tag = 'scratch operand']
  #allocation4 [shape = 'f32[256,128]{1,0:T(8,128)}', space=vmem, size = 0x20000, scoped, tag = 'scratch operand']
  %s0 = inlined_call_operand.vmem [shape: bf16[2,256,128], index: 0, kind: input, shape index: {}]
  %s1 = inlined_call_operand.vmem [shape: bf16[2,256,128], index: 1, kind: input, shape index: {}]
  %s2 = inlined_call_operand.vmem [shape: bf16[2,256,128], index: 2, kind: input, shape index: {}]
  %s3 = inlined_call_operand.vmem [shape: bf16[128,128], index: 3, kind: input, shape index: {}]
  %s4 = inlined_call_operand.vmem [shape: f32[1,128], index: 4, kind: input, shape index: {}]
  %s5 = inlined_call_operand.vmem [shape: bf16[2,256,128], index: 5, kind: output, shape index: {0}]
  %s6 = inlined_call_operand.vmem [shape: f32[2,1,8,128], index: 6, kind: output, shape index: {1}]
  %7 = xla_tuple %s5, %s6
  %s8 = sld [smem:[#allocation0]]
  $region69: #{nonlocal_block.4} parent=0
    _
  %s10 = ssub.s32 1, %s8
  %s11 = scalar_select 0, %s10, %s8
  loop: start=0, step=1, limit=4
  $region2: #{nonlocal_block.4} parent=0 // loop_pre_header
    _
  $region3: #{nonlocal_block.4} parent=0 // loop_header
    %s13 = sphi 0, %s17
    %p14 = scmp.ge.s32.totalorder %s13, 4
    %s20 = sphi 0, %s39
    %s21 = sphi 0, %s35
    %s22 = sphi 0, %s31
    %s23 = sphi 0, %s20
    %s24 = sphi 0, %s21
    %s25 = sphi 0, %s22
    %s26 = sphi 0, %s23
    %s27 = sphi 0, %s24
    %s28 = sphi 0, %s25
    %s44 = sphi 0, %s46
    %s47 = sphi 0, %s44
    %s48 = sphi 0, %s47
    %s64 = sphi 0, %s48
    %s72 = sphi 0, %s74
    %s75 = sphi 0, %s72
    %s76 = sphi 0, %s75
    %s92 = sphi 0, %s76
    %s100 = sphi 0, %s102
    %s103 = sphi 0, %s100
    %s104 = sphi 0, %s103
    %s120 = sphi 0, %s104
    %s124 = sphi 0, %s124
    %s126 = sphi 0, %s124
    %s127 = sphi 0, %s126
    %s141 = sphi 0, %s127
    %s145 = sphi 0, %s145
    %s147 = sphi 0, %s145
    %s148 = sphi 0, %s147
    %s162 = sphi 0, %s148
    %s170 = sphi 0, %s172
    %s173 = sphi 0, %s170
    %s174 = sphi 0, %s173
    %s190 = sphi 0, %s174
    %s198 = sphi 0, %s200
    %s201 = sphi 0, %s198
    %s202 = sphi 0, %s201
    %s218 = sphi 0, %s202
  $region4: #{nonlocal_block.4} parent=0 // loop_header_branch
    %16 = sbr.rel (%p14) target = $region8
  $region5: #{nonlocal_block.4} parent=0 // loop_body
    %s18 = ssub.s32 %s13, 1
    %s19 = ssub.s32 %s13, 2
    %s29 = sadd.s32 1, %s22
    %p30 = scmp.ge.s32.totalorder %s29, 1
    %s31 = scalar_select %p30, 0, %s29
    %s32 = sadd.s32 1, %s21
    %s33 = scalar_select %p30, %s32, %s21
    %p34 = scmp.ge.s32.totalorder %s33, 1
    %s35 = scalar_select %p34, 0, %s33
    %s36 = sadd.s32 1, %s20
    %s37 = scalar_select %p34, %s36, %s20
    %p38 = scmp.ge.s32.totalorder %s37, 2
    %s39 = scalar_select %p38, 0, %s37
    %s40 = ssub.s32 %s20, %s39
    %s41 = ssub.s32 %s21, %s35
    %s42 = sor.u32 %s40, %s41
    %p43 = scmp.eq.s32.totalorder %s42, 0
    %s45 = sadd.s32 %s44, 1
    %s46 = scalar_select %p43, %s44, %s45
    %p49 = pneg %p43
    %p50 = scmp.eq.s32.totalorder %s13, 1
    %p51 = por %p49, %p50
    %p52 = scmp.ne.s32.totalorder %s44, %s47
    %p53 = scmp.eq.s32.totalorder %s13, 0
    %p54 = por %p52, %p53
    %p55 = scmp.ne.s32.totalorder %s44, %s47
    %p56 = scmp.eq.s32.totalorder %s18, 1
    %p57 = por %p55, %p56
    %p58 = scmp.ne.s32.totalorder %s47, %s48
    %p59 = scmp.eq.s32.totalorder %s18, 0
    %p60 = por %p58, %p59
    %p61 = scmp.ne.s32.totalorder %s47, %s48
    %p62 = scmp.eq.s32.totalorder %s19, 1
    %p63 = por %p61, %p62
    %p65 = scmp.ne.s32.totalorder %s48, %s64
    %p66 = scmp.eq.s32.totalorder %s19, 0
    %p67 = por %p65, %p66
    %s68 = ssub.s32 %s20, %s39
    %s69 = ssub.s32 %s22, %s31
    %s70 = sor.u32 %s68, %s69
    %p71 = scmp.eq.s32.totalorder %s70, 0
    %s73 = sadd.s32 %s72, 1
    %s74 = scalar_select %p71, %s72, %s73
    %p77 = pneg %p71
    %p78 = scmp.eq.s32.totalorder %s13, 1
    %p79 = por %p77, %p78
    %p80 = scmp.ne.s32.totalorder %s72, %s75
    %p81 = scmp.eq.s32.totalorder %s13, 0
    %p82 = por %p80, %p81
    %p83 = scmp.ne.s32.totalorder %s72, %s75
    %p84 = scmp.eq.s32.totalorder %s18, 1
    %p85 = por %p83, %p84
    %p86 = scmp.ne.s32.totalorder %s75, %s76
    %p87 = scmp.eq.s32.totalorder %s18, 0
    %p88 = por %p86, %p87
    %p89 = scmp.ne.s32.totalorder %s75, %s76
    %p90 = scmp.eq.s32.totalorder %s19, 1
    %p91 = por %p89, %p90
    %p93 = scmp.ne.s32.totalorder %s76, %s92
    %p94 = scmp.eq.s32.totalorder %s19, 0
    %p95 = por %p93, %p94
    %s96 = ssub.s32 %s20, %s39
    %s97 = ssub.s32 %s22, %s31
    %s98 = sor.u32 %s96, %s97
    %p99 = scmp.eq.s32.totalorder %s98, 0
    %s101 = sadd.s32 %s100, 1
    %s102 = scalar_select %p99, %s100, %s101
    %p105 = pneg %p99
    %p106 = scmp.eq.s32.totalorder %s13, 1
    %p107 = por %p105, %p106
    %p108 = scmp.ne.s32.totalorder %s100, %s103
    %p109 = scmp.eq.s32.totalorder %s13, 0
    %p110 = por %p108, %p109
    %p111 = scmp.ne.s32.totalorder %s100, %s103
    %p112 = scmp.eq.s32.totalorder %s18, 1
    %p113 = por %p111, %p112
    %p114 = scmp.ne.s32.totalorder %s103, %s104
    %p115 = scmp.eq.s32.totalorder %s18, 0
    %p116 = por %p114, %p115
    %p117 = scmp.ne.s32.totalorder %s103, %s104
    %p118 = scmp.eq.s32.totalorder %s19, 1
    %p119 = por %p117, %p118
    %p121 = scmp.ne.s32.totalorder %s104, %s120
    %p122 = scmp.eq.s32.totalorder %s19, 0
    %p123 = por %p121, %p122
    %s125 = sadd.s32 %s124, 1
    %p128 = scmp.eq.s32.totalorder %s13, 1
    %p129 = scmp.ne.s32.totalorder %s124, %s126
    %p130 = scmp.eq.s32.totalorder %s13, 0
    %p131 = por %p129, %p130
    %p132 = scmp.ne.s32.totalorder %s124, %s126
    %p133 = scmp.eq.s32.totalorder %s18, 1
    %p134 = por %p132, %p133
    %p135 = scmp.ne.s32.totalorder %s126, %s127
    %p136 = scmp.eq.s32.totalorder %s18, 0
    %p137 = por %p135, %p136
    %p138 = scmp.ne.s32.totalorder %s126, %s127
    %p139 = scmp.eq.s32.totalorder %s19, 1
    %p140 = por %p138, %p139
    %p142 = scmp.ne.s32.totalorder %s127, %s141
    %p143 = scmp.eq.s32.totalorder %s19, 0
    %p144 = por %p142, %p143
    %s146 = sadd.s32 %s145, 1
    %p149 = scmp.eq.s32.totalorder %s13, 1
    %p150 = scmp.ne.s32.totalorder %s145, %s147
    %p151 = scmp.eq.s32.totalorder %s13, 0
    %p152 = por %p150, %p151
    %p153 = scmp.ne.s32.totalorder %s145, %s147
    %p154 = scmp.eq.s32.totalorder %s18, 1
    %p155 = por %p153, %p154
    %p156 = scmp.ne.s32.totalorder %s147, %s148
    %p157 = scmp.eq.s32.totalorder %s18, 0
    %p158 = por %p156, %p157
    %p159 = scmp.ne.s32.totalorder %s147, %s148
    %p160 = scmp.eq.s32.totalorder %s19, 1
    %p161 = por %p159, %p160
    %p163 = scmp.ne.s32.totalorder %s148, %s162
    %p164 = scmp.eq.s32.totalorder %s19, 0
    %p165 = por %p163, %p164
    %s166 = ssub.s32 %s20, %s39
    %s167 = ssub.s32 %s21, %s35
    %s168 = sor.u32 %s166, %s167
    %p169 = scmp.eq.s32.totalorder %s168, 0
    %s171 = sadd.s32 %s170, 1
    %s172 = scalar_select %p169, %s170, %s171
    %p175 = pneg %p169
    %p176 = scmp.eq.s32.totalorder %s13, 1
    %p177 = por %p175, %p176
    %p178 = scmp.ne.s32.totalorder %s170, %s173
    %p179 = scmp.eq.s32.totalorder %s13, 0
    %p180 = por %p178, %p179
    %p181 = scmp.ne.s32.totalorder %s170, %s173
    %p182 = scmp.eq.s32.totalorder %s18, 1
    %p183 = por %p181, %p182
    %p184 = scmp.ne.s32.totalorder %s173, %s174
    %p185 = scmp.eq.s32.totalorder %s18, 0
    %p186 = por %p184, %p185
    %p187 = scmp.ne.s32.totalorder %s173, %s174
    %p188 = scmp.eq.s32.totalorder %s19, 1
    %p189 = por %p187, %p188
    %p191 = scmp.ne.s32.totalorder %s174, %s190
    %p192 = scmp.eq.s32.totalorder %s19, 0
    %p193 = por %p191, %p192
    %s194 = ssub.s32 %s20, %s39
    %s195 = ssub.s32 %s21, %s35
    %s196 = sor.u32 %s194, %s195
    %p197 = scmp.eq.s32.totalorder %s196, 0
    %s199 = sadd.s32 %s198, 1
    %s200 = scalar_select %p197, %s198, %s199
    %p203 = pneg %p197
    %p204 = scmp.eq.s32.totalorder %s13, 1
    %p205 = por %p203, %p204
    %p206 = scmp.ne.s32.totalorder %s198, %s201
    %p207 = scmp.eq.s32.totalorder %s13, 0
    %p208 = por %p206, %p207
    %p209 = scmp.ne.s32.totalorder %s198, %s201
    %p210 = scmp.eq.s32.totalorder %s18, 1
    %p211 = por %p209, %p210
    %p212 = scmp.ne.s32.totalorder %s201, %s202
    %p213 = scmp.eq.s32.totalorder %s18, 0
    %p214 = por %p212, %p213
    %p215 = scmp.ne.s32.totalorder %s201, %s202
    %p216 = scmp.eq.s32.totalorder %s19, 1
    %p217 = por %p215, %p216
    %p219 = scmp.ne.s32.totalorder %s202, %s218
    %p220 = scmp.eq.s32.totalorder %s19, 0
    %p221 = por %p219, %p220
    %p222 = scmp.le.s32.totalorder 1, %s13
    %p223 = scmp.lt.s32.totalorder %s13, 3
    %p224 = pnand %p222, %p223
    %p225 = pneg %p224
    // Predicated region
    $region9: #{nonlocal_block.4} parent=5 // pred_check
      _
    $region10: #{nonlocal_block.4} parent=5 // pred_check_branch
      %227 = sbr.rel (%p224) target = $region12
    $region11: #{nonlocal_block.4} parent=5 // pred_region
      %s228 = ssub.s32 %s13, 1
      // Predicated region
      $region13: #{nonlocal_block.4} parent=11 // pred_check
        %p229 = pneg %p137
      $region14: #{nonlocal_block.4} parent=11 // pred_check_branch
        %231 = sbr.rel (%p229) target = $region16
      $region15: #{nonlocal_block.4} parent=11 // pred_region
        _
      $region16: #{nonlocal_block.4} parent=11 // pred_fallthru
        _
      // Predicated region
      $region17: #{nonlocal_block.4} parent=11 // pred_check
        %p232 = pneg %p158
      $region18: #{nonlocal_block.4} parent=11 // pred_check_branch
        %234 = sbr.rel (%p232) target = $region20
      $region19: #{nonlocal_block.4} parent=11 // pred_region
        _
      $region20: #{nonlocal_block.4} parent=11 // pred_fallthru
        _
    $region12: #{nonlocal_block.4} parent=5 // pred_fallthru
      _
    %p235 = scmp.lt.s32.totalorder %s13, 2
    // Predicated region
    $region21: #{nonlocal_block.4} parent=5 // pred_check
      %p236 = pneg %p235
    $region22: #{nonlocal_block.4} parent=5 // pred_check_branch
      %238 = sbr.rel (%p236) target = $region24
    $region23: #{nonlocal_block.4} parent=5 // pred_region
      // Predicated region
      $region25: #{nonlocal_block.4} parent=23 // pred_check
        %p239 = pneg %p54
      $region26: #{nonlocal_block.4} parent=23 // pred_check_branch
        %241 = sbr.rel (%p239) target = $region28
      $region27: #{nonlocal_block.4} parent=23 // pred_region
        %s242 = smul.u32 32, %s21
        %p243 = scmp.lt.s32.totalorder %s20, 1
        %s244 = scalar_select %p243, %s20, 1
        %p245 = scmp.lt.s32.totalorder %s242, 31
        %s246 = scalar_select %p245, %s242, 31
        %s247 = smul.addr %s244, 32
        %s248 = sadd.s32 %s246, %s247
        %s249 = smul.addr %s248, 4
        %s250 = scalar_lea.vmem %s0, %s249
        %s251 = smul.u32 32, %s21
      $region28: #{nonlocal_block.4} parent=23 // pred_fallthru
        _
      // Predicated region
      $region29: #{nonlocal_block.4} parent=23 // pred_check
        %p252 = pneg %p82
      $region30: #{nonlocal_block.4} parent=23 // pred_check_branch
        %254 = sbr.rel (%p252) target = $region32
      $region31: #{nonlocal_block.4} parent=23 // pred_region
        %s255 = smul.u32 32, %s22
        %p256 = scmp.lt.s32.totalorder %s20, 1
        %s257 = scalar_select %p256, %s20, 1
        %p258 = scmp.lt.s32.totalorder %s255, 31
        %s259 = scalar_select %p258, %s255, 31
        %s260 = smul.addr %s257, 32
        %s261 = sadd.s32 %s259, %s260
        %s262 = smul.addr %s261, 4
        %s263 = scalar_lea.vmem %s1, %s262
        %s264 = smul.u32 32, %s22
      $region32: #{nonlocal_block.4} parent=23 // pred_fallthru
        _
      // Predicated region
      $region33: #{nonlocal_block.4} parent=23 // pred_check
        %p265 = pneg %p110
      $region34: #{nonlocal_block.4} parent=23 // pred_check_branch
        %267 = sbr.rel (%p265) target = $region36
      $region35: #{nonlocal_block.4} parent=23 // pred_region
        %s268 = smul.u32 32, %s22
        %p269 = scmp.lt.s32.totalorder %s20, 1
        %s270 = scalar_select %p269, %s20, 1
        %p271 = scmp.lt.s32.totalorder %s268, 31
        %s272 = scalar_select %p271, %s268, 31
        %s273 = smul.addr %s270, 32
        %s274 = sadd.s32 %s272, %s273
        %s275 = smul.addr %s274, 4
        %s276 = scalar_lea.vmem %s2, %s275
        %s277 = smul.u32 32, %s22
      $region36: #{nonlocal_block.4} parent=23 // pred_fallthru
        _
    $region24: #{nonlocal_block.4} parent=5 // pred_fallthru
      _
    %p278 = scmp.le.s32.totalorder 1, %s13
    %p279 = scmp.lt.s32.totalorder %s13, 3
    %p280 = pnand %p278, %p279
    %p281 = pneg %p280
    // Predicated region
    $region37: #{nonlocal_block.4} parent=5 // pred_check
      _
    $region38: #{nonlocal_block.4} parent=5 // pred_check_branch
      %283 = sbr.rel (%p280) target = $region40
    $region39: #{nonlocal_block.4} parent=5 // pred_region
      %s284 = ssub.s32 %s13, 1
      %s285 = smul.u32 32, %s24
      %p286 = scmp.lt.s32.totalorder %s23, 1
      %s287 = scalar_select %p286, %s23, 1
      %p288 = scmp.lt.s32.totalorder %s285, 31
      %s289 = scalar_select %p288, %s285, 31
      %s290 = smul.addr %s287, 32
      %s291 = sadd.s32 %s289, %s290
      %s292 = smul.addr %s291, 4
      %s293 = scalar_lea.vmem %s0, %s292
      %p294 = pneg %p60
      %p295 = pneg %p57
      %s296 = smul.u32 32, %s25
      %p297 = scmp.lt.s32.totalorder %s23, 1
      %s298 = scalar_select %p297, %s23, 1
      %p299 = scmp.lt.s32.totalorder %s296, 31
      %s300 = scalar_select %p299, %s296, 31
      %s301 = smul.addr %s298, 32
      %s302 = sadd.s32 %s300, %s301
      %s303 = smul.addr %s302, 4
      %s304 = scalar_lea.vmem %s1, %s303
      %p305 = pneg %p88
      %p306 = pneg %p85
      %s307 = smul.u32 32, %s25
      %p308 = scmp.lt.s32.totalorder %s23, 1
      %s309 = scalar_select %p308, %s23, 1
      %p310 = scmp.lt.s32.totalorder %s307, 31
      %s311 = scalar_select %p310, %s307, 31
      %s312 = smul.addr %s309, 32
      %s313 = sadd.s32 %s311, %s312
      %s314 = smul.addr %s313, 4
      %s315 = scalar_lea.vmem %s2, %s314
      %p316 = pneg %p116
      %p317 = pneg %p113
      %p318 = pneg %p137
      %p319 = pneg %p134
      %p320 = pneg %p158
      %p321 = pneg %p155
      %p322 = pneg %p186
      %p323 = pneg %p183
      %s324 = smul.u32 32, %s24
      %p325 = scmp.lt.s32.totalorder %s23, 1
      %s326 = scalar_select %p325, %s23, 1
      %p327 = scmp.lt.s32.totalorder %s324, 31
      %s328 = scalar_select %p327, %s324, 31
      %s329 = smul.addr %s326, 32
      %s330 = sadd.s32 %s328, %s329
      %s331 = smul.addr %s330, 4
      %s332 = scalar_lea.vmem %s5, %s331
      %p333 = pneg %p214
      %p334 = pneg %p211
      %p335 = scmp.lt.s32.totalorder %s23, 1
      %s336 = scalar_select %p335, %s23, 1
      %p337 = scmp.lt.s32.totalorder %s24, 0
      %s338 = scalar_select %p337, %s24, 0
      %s339 = sadd.s32 %s338, %s336
      %s340 = smul.addr %s339, 8
      %s341 = scalar_lea.vmem %s6, %s340
      %s342 = smul.u32 32, %s24
      %p343 = scmp.lt.s32.totalorder %s23, 1
      %s344 = scalar_select %p343, %s23, 1
      %p345 = scmp.lt.s32.totalorder %s342, 31
      %s346 = scalar_select %p345, %s342, 31
      %s347 = smul.addr %s344, 32
      %s348 = sadd.s32 %s346, %s347
      %s349 = smul.addr %s348, 4
      %s350 = scalar_lea.vmem %s0, %s349
      %s351 = smul.u32 32, %s24
      %s352 = smul.u32 32, %s25
      %p353 = scmp.lt.s32.totalorder %s23, 1
      %s354 = scalar_select %p353, %s23, 1
      %p355 = scmp.lt.s32.totalorder %s352, 31
      %s356 = scalar_select %p355, %s352, 31
      %s357 = smul.addr %s354, 32
      %s358 = sadd.s32 %s356, %s357
      %s359 = smul.addr %s358, 4
      %s360 = scalar_lea.vmem %s1, %s359
      %s361 = smul.u32 32, %s25
      %s362 = smul.u32 32, %s25
      %p363 = scmp.lt.s32.totalorder %s23, 1
      %s364 = scalar_select %p363, %s23, 1
      %p365 = scmp.lt.s32.totalorder %s362, 31
      %s366 = scalar_select %p365, %s362, 31
      %s367 = smul.addr %s364, 32
      %s368 = sadd.s32 %s366, %s367
      %s369 = smul.addr %s368, 4
      %s370 = scalar_lea.vmem %s2, %s369
      %s371 = smul.u32 32, %s25
      %s372 = smul.u32 32, %s24
      %p373 = scmp.lt.s32.totalorder %s23, 1
      %s374 = scalar_select %p373, %s23, 1
      %p375 = scmp.lt.s32.totalorder %s372, 31
      %s376 = scalar_select %p375, %s372, 31
      %s377 = smul.addr %s374, 32
      %s378 = sadd.s32 %s376, %s377
      %s379 = smul.addr %s378, 4
      %s380 = scalar_lea.vmem %s5, %s379
      %s381 = smul.u32 32, %s24
      %p382 = scmp.lt.s32.totalorder %s23, 1
      %s383 = scalar_select %p382, %s23, 1
      %p384 = scmp.lt.s32.totalorder %s24, 0
      %s385 = scalar_select %p384, %s24, 0
      %s386 = sadd.s32 %s385, %s383
      %s387 = smul.addr %s386, 8
      %s388 = scalar_lea.vmem %s6, %s387
      %p389 = scmp.eq.s32.totalorder %s25, 0
      // Predicated region
      $region41: #{nonlocal_block.4} parent=39 // pred_check
        %p390 = pneg %p389
      $region42: #{nonlocal_block.4} parent=39 // pred_check_branch
        %392 = sbr.rel (%p390) target = $region44
      $region43: #{nonlocal_block.4} parent=39 // pred_region
        %vm393 = vcmask 7168
        %394 = vst.msk [vmem:[#allocation2] sm:$0xff] %vm393, -inf
        %395 = vst.msk [vmem:[#allocation2 + $0x8] sm:$0xff] %vm393, -inf
        %396 = vst.msk [vmem:[#allocation2 + $0x10] sm:$0xff] %vm393, -inf
        %397 = vst.msk [vmem:[#allocation2 + $0x18] sm:$0xff] %vm393, -inf
        %398 = vst.msk [vmem:[#allocation2 + $0x20] sm:$0xff] %vm393, -inf
        %399 = vst.msk [vmem:[#allocation2 + $0x28] sm:$0xff] %vm393, -inf
        %400 = vst.msk [vmem:[#allocation2 + $0x30] sm:$0xff] %vm393, -inf
        %401 = vst.msk [vmem:[#allocation2 + $0x38] sm:$0xff] %vm393, -inf
        %402 = vst.msk [vmem:[#allocation2 + $0x40] sm:$0xff] %vm393, -inf
        %403 = vst.msk [vmem:[#allocation2 + $0x48] sm:$0xff] %vm393, -inf
        %404 = vst.msk [vmem:[#allocation2 + $0x50] sm:$0xff] %vm393, -inf
        %405 = vst.msk [vmem:[#allocation2 + $0x58] sm:$0xff] %vm393, -inf
        %406 = vst.msk [vmem:[#allocation2 + $0x60] sm:$0xff] %vm393, -inf
        %407 = vst.msk [vmem:[#allocation2 + $0x68] sm:$0xff] %vm393, -inf
        %408 = vst.msk [vmem:[#allocation2 + $0x70] sm:$0xff] %vm393, -inf
        %409 = vst.msk [vmem:[#allocation2 + $0x78] sm:$0xff] %vm393, -inf
        %410 = vst.msk [vmem:[#allocation2 + $0x80] sm:$0xff] %vm393, -inf
        %411 = vst.msk [vmem:[#allocation2 + $0x88] sm:$0xff] %vm393, -inf
        %412 = vst.msk [vmem:[#allocation2 + $0x90] sm:$0xff] %vm393, -inf
        %413 = vst.msk [vmem:[#allocation2 + $0x98] sm:$0xff] %vm393, -inf
        %414 = vst.msk [vmem:[#allocation2 + $0xa0] sm:$0xff] %vm393, -inf
        %415 = vst.msk [vmem:[#allocation2 + $0xa8] sm:$0xff] %vm393, -inf
        %416 = vst.msk [vmem:[#allocation2 + $0xb0] sm:$0xff] %vm393, -inf
        %417 = vst.msk [vmem:[#allocation2 + $0xb8] sm:$0xff] %vm393, -inf
        %418 = vst.msk [vmem:[#allocation2 + $0xc0] sm:$0xff] %vm393, -inf
        %419 = vst.msk [vmem:[#allocation2 + $0xc8] sm:$0xff] %vm393, -inf
        %420 = vst.msk [vmem:[#allocation2 + $0xd0] sm:$0xff] %vm393, -inf
        %421 = vst.msk [vmem:[#allocation2 + $0xd8] sm:$0xff] %vm393, -inf
        %422 = vst.msk [vmem:[#allocation2 + $0xe0] sm:$0xff] %vm393, -inf
        %423 = vst.msk [vmem:[#allocation2 + $0xe8] sm:$0xff] %vm393, -inf
        %424 = vst.msk [vmem:[#allocation2 + $0xf0] sm:$0xff] %vm393, -inf
        %425 = vst.msk [vmem:[#allocation2 + $0xf8] sm:$0xff] %vm393, -inf
        %426 = vst.msk [vmem:[#allocation3] sm:$0xff] %vm393, 0.0
        %427 = vst.msk [vmem:[#allocation3 + $0x8] sm:$0xff] %vm393, 0.0
        %428 = vst.msk [vmem:[#allocation3 + $0x10] sm:$0xff] %vm393, 0.0
        %429 = vst.msk [vmem:[#allocation3 + $0x18] sm:$0xff] %vm393, 0.0
        %430 = vst.msk [vmem:[#allocation3 + $0x20] sm:$0xff] %vm393, 0.0
        %431 = vst.msk [vmem:[#allocation3 + $0x28] sm:$0xff] %vm393, 0.0
        %432 = vst.msk [vmem:[#allocation3 + $0x30] sm:$0xff] %vm393, 0.0
        %433 = vst.msk [vmem:[#allocation3 + $0x38] sm:$0xff] %vm393, 0.0
        %434 = vst.msk [vmem:[#allocation3 + $0x40] sm:$0xff] %vm393, 0.0
        %435 = vst.msk [vmem:[#allocation3 + $0x48] sm:$0xff] %vm393, 0.0
        %436 = vst.msk [vmem:[#allocation3 + $0x50] sm:$0xff] %vm393, 0.0
        %437 = vst.msk [vmem:[#allocation3 + $0x58] sm:$0xff] %vm393, 0.0
        %438 = vst.msk [vmem:[#allocation3 + $0x60] sm:$0xff] %vm393, 0.0
        %439 = vst.msk [vmem:[#allocation3 + $0x68] sm:$0xff] %vm393, 0.0
        %440 = vst.msk [vmem:[#allocation3 + $0x70] sm:$0xff] %vm393, 0.0
        %441 = vst.msk [vmem:[#allocation3 + $0x78] sm:$0xff] %vm393, 0.0
        %442 = vst.msk [vmem:[#allocation3 + $0x80] sm:$0xff] %vm393, 0.0
        %443 = vst.msk [vmem:[#allocation3 + $0x88] sm:$0xff] %vm393, 0.0
        %444 = vst.msk [vmem:[#allocation3 + $0x90] sm:$0xff] %vm393, 0.0
        %445 = vst.msk [vmem:[#allocation3 + $0x98] sm:$0xff] %vm393, 0.0
        %446 = vst.msk [vmem:[#allocation3 + $0xa0] sm:$0xff] %vm393, 0.0
        %447 = vst.msk [vmem:[#allocation3 + $0xa8] sm:$0xff] %vm393, 0.0
        %448 = vst.msk [vmem:[#allocation3 + $0xb0] sm:$0xff] %vm393, 0.0
        %449 = vst.msk [vmem:[#allocation3 + $0xb8] sm:$0xff] %vm393, 0.0
        %450 = vst.msk [vmem:[#allocation3 + $0xc0] sm:$0xff] %vm393, 0.0
        %451 = vst.msk [vmem:[#allocation3 + $0xc8] sm:$0xff] %vm393, 0.0
        %452 = vst.msk [vmem:[#allocation3 + $0xd0] sm:$0xff] %vm393, 0.0
        %453 = vst.msk [vmem:[#allocation3 + $0xd8] sm:$0xff] %vm393, 0.0
        %454 = vst.msk [vmem:[#allocation3 + $0xe0] sm:$0xff] %vm393, 0.0
        %455 = vst.msk [vmem:[#allocation3 + $0xe8] sm:$0xff] %vm393, 0.0
        %456 = vst.msk [vmem:[#allocation3 + $0xf0] sm:$0xff] %vm393, 0.0
        %457 = vst.msk [vmem:[#allocation3 + $0xf8] sm:$0xff] %vm393, 0.0
        %458 = vst [vmem:[#allocation4] sm:$0xff] 0.0
        %459 = vst [vmem:[#allocation4 + $0x8] sm:$0xff] 0.0
        %460 = vst [vmem:[#allocation4 + $0x10] sm:$0xff] 0.0
        %461 = vst [vmem:[#allocation4 + $0x18] sm:$0xff] 0.0
        %462 = vst [vmem:[#allocation4 + $0x20] sm:$0xff] 0.0
        %463 = vst [vmem:[#allocation4 + $0x28] sm:$0xff] 0.0
        %464 = vst [vmem:[#allocation4 + $0x30] sm:$0xff] 0.0
        %465 = vst [vmem:[#allocation4 + $0x38] sm:$0xff] 0.0
        %466 = vst [vmem:[#allocation4 + $0x40] sm:$0xff] 0.0
        %467 = vst [vmem:[#allocation4 + $0x48] sm:$0xff] 0.0
        %468 = vst [vmem:[#allocation4 + $0x50] sm:$0xff] 0.0
        %469 = vst [vmem:[#allocation4 + $0x58] sm:$0xff] 0.0
        %470 = vst [vmem:[#allocation4 + $0x60] sm:$0xff] 0.0
        %471 = vst [vmem:[#allocation4 + $0x68] sm:$0xff] 0.0
        %472 = vst [vmem:[#allocation4 + $0x70] sm:$0xff] 0.0
        %473 = vst [vmem:[#allocation4 + $0x78] sm:$0xff] 0.0
        %474 = vst [vmem:[#allocation4 + $0x80] sm:$0xff] 0.0
        %475 = vst [vmem:[#allocation4 + $0x88] sm:$0xff] 0.0
        %476 = vst [vmem:[#allocation4 + $0x90] sm:$0xff] 0.0
        %477 = vst [vmem:[#allocation4 + $0x98] sm:$0xff] 0.0
        %478 = vst [vmem:[#allocation4 + $0xa0] sm:$0xff] 0.0
        %479 = vst [vmem:[#allocation4 + $0xa8] sm:$0xff] 0.0
        %480 = vst [vmem:[#allocation4 + $0xb0] sm:$0xff] 0.0
        %481 = vst [vmem:[#allocation4 + $0xb8] sm:$0xff] 0.0
        %482 = vst [vmem:[#allocation4 + $0xc0] sm:$0xff] 0.0
        %483 = vst [vmem:[#allocation4 + $0xc8] sm:$0xff] 0.0
        %484 = vst [vmem:[#allocation4 + $0xd0] sm:$0xff] 0.0
        %485 = vst [vmem:[#allocation4 + $0xd8] sm:$0xff] 0.0
        %486 = vst [vmem:[#allocation4 + $0xe0] sm:$0xff] 0.0
        %487 = vst [vmem:[#allocation4 + $0xe8] sm:$0xff] 0.0
        %488 = vst [vmem:[#allocation4 + $0xf0] sm:$0xff] 0.0
        %489 = vst [vmem:[#allocation4 + $0xf8] sm:$0xff] 0.0
      $region44: #{nonlocal_block.4} parent=39 // pred_fallthru
        _
      %v490 = vld [vmem:[%s350] sm:$0xf]
      %v491 = vld [vmem:[%s350 + $0x4] sm:$0xf]
      %v492 = vld [vmem:[%s350 + $0x8] sm:$0xf]
      %v493 = vld [vmem:[%s350 + $0xc] sm:$0xf]
      %v494 = vld [vmem:[%s350 + $0x10] sm:$0xf]
      %v495 = vld [vmem:[%s350 + $0x14] sm:$0xf]
      %v496 = vld [vmem:[%s350 + $0x18] sm:$0xf]
      %v497 = vld [vmem:[%s350 + $0x1c] sm:$0xf]
      %v498 = vld [vmem:[%s350 + $0x20] sm:$0xf]
      %v499 = vld [vmem:[%s350 + $0x24] sm:$0xf]
      %v500 = vld [vmem:[%s350 + $0x28] sm:$0xf]
      %v501 = vld [vmem:[%s350 + $0x2c] sm:$0xf]
      %v502 = vld [vmem:[%s350 + $0x30] sm:$0xf]
      %v503 = vld [vmem:[%s350 + $0x34] sm:$0xf]
      %v504 = vld [vmem:[%s350 + $0x38] sm:$0xf]
      %v505 = vld [vmem:[%s350 + $0x3c] sm:$0xf]
      %v506 = vld [vmem:[%s350 + $0x40] sm:$0xf]
      %v507 = vld [vmem:[%s350 + $0x44] sm:$0xf]
      %v508 = vld [vmem:[%s350 + $0x48] sm:$0xf]
      %v509 = vld [vmem:[%s350 + $0x4c] sm:$0xf]
      %v510 = vld [vmem:[%s350 + $0x50] sm:$0xf]
      %v511 = vld [vmem:[%s350 + $0x54] sm:$0xf]
      %v512 = vld [vmem:[%s350 + $0x58] sm:$0xf]
      %v513 = vld [vmem:[%s350 + $0x5c] sm:$0xf]
      %v514 = vld [vmem:[%s350 + $0x60] sm:$0xf]
      %v515 = vld [vmem:[%s350 + $0x64] sm:$0xf]
      %v516 = vld [vmem:[%s350 + $0x68] sm:$0xf]
      %v517 = vld [vmem:[%s350 + $0x6c] sm:$0xf]
      %v518 = vld [vmem:[%s350 + $0x70] sm:$0xf]
      %v519 = vld [vmem:[%s350 + $0x74] sm:$0xf]
      %v520 = vld [vmem:[%s350 + $0x78] sm:$0xf]
      %v521 = vld [vmem:[%s350 + $0x7c] sm:$0xf]
      %v522 = vld [vmem:[%s360] sm:$0xf]
      %v523 = vld [vmem:[%s360 + $0x4] sm:$0xf]
      %v524 = vld [vmem:[%s360 + $0x8] sm:$0xf]
      %v525 = vld [vmem:[%s360 + $0xc] sm:$0xf]
      %v526 = vld [vmem:[%s360 + $0x10] sm:$0xf]
      %v527 = vld [vmem:[%s360 + $0x14] sm:$0xf]
      %v528 = vld [vmem:[%s360 + $0x18] sm:$0xf]
      %v529 = vld [vmem:[%s360 + $0x1c] sm:$0xf]
      %v530 = vld [vmem:[%s360 + $0x20] sm:$0xf]
      %v531 = vld [vmem:[%s360 + $0x24] sm:$0xf]
      %v532 = vld [vmem:[%s360 + $0x28] sm:$0xf]
      %v533 = vld [vmem:[%s360 + $0x2c] sm:$0xf]
      %v534 = vld [vmem:[%s360 + $0x30] sm:$0xf]
      %v535 = vld [vmem:[%s360 + $0x34] sm:$0xf]
      %v536 = vld [vmem:[%s360 + $0x38] sm:$0xf]
      %v537 = vld [vmem:[%s360 + $0x3c] sm:$0xf]
      %v538 = vld [vmem:[%s360 + $0x40] sm:$0xf]
      %v539 = vld [vmem:[%s360 + $0x44] sm:$0xf]
      %v540 = vld [vmem:[%s360 + $0x48] sm:$0xf]
      %v541 = vld [vmem:[%s360 + $0x4c] sm:$0xf]
      %v542 = vld [vmem:[%s360 + $0x50] sm:$0xf]
      %v543 = vld [vmem:[%s360 + $0x54] sm:$0xf]
      %v544 = vld [vmem:[%s360 + $0x58] sm:$0xf]
      %v545 = vld [vmem:[%s360 + $0x5c] sm:$0xf]
      %v546 = vld [vmem:[%s360 + $0x60] sm:$0xf]
      %v547 = vld [vmem:[%s360 + $0x64] sm:$0xf]
      %v548 = vld [vmem:[%s360 + $0x68] sm:$0xf]
      %v549 = vld [vmem:[%s360 + $0x6c] sm:$0xf]
      %v550 = vld [vmem:[%s360 + $0x70] sm:$0xf]
      %v551 = vld [vmem:[%s360 + $0x74] sm:$0xf]
      %v552 = vld [vmem:[%s360 + $0x78] sm:$0xf]
      %v553 = vld [vmem:[%s360 + $0x7c] sm:$0xf]
      %v554 = vld [vmem:[%s370] sm:$0xf]
      %v555 = vld [vmem:[%s370 + $0x4] sm:$0xf]
      %v556 = vld [vmem:[%s370 + $0x8] sm:$0xf]
      %v557 = vld [vmem:[%s370 + $0xc] sm:$0xf]
      %v558 = vld [vmem:[%s370 + $0x10] sm:$0xf]
      %v559 = vld [vmem:[%s370 + $0x14] sm:$0xf]
      %v560 = vld [vmem:[%s370 + $0x18] sm:$0xf]
      %v561 = vld [vmem:[%s370 + $0x1c] sm:$0xf]
      %v562 = vld [vmem:[%s370 + $0x20] sm:$0xf]
      %v563 = vld [vmem:[%s370 + $0x24] sm:$0xf]
      %v564 = vld [vmem:[%s370 + $0x28] sm:$0xf]
      %v565 = vld [vmem:[%s370 + $0x2c] sm:$0xf]
      %v566 = vld [vmem:[%s370 + $0x30] sm:$0xf]
      %v567 = vld [vmem:[%s370 + $0x34] sm:$0xf]
      %v568 = vld [vmem:[%s370 + $0x38] sm:$0xf]
      %v569 = vld [vmem:[%s370 + $0x3c] sm:$0xf]
      %v570 = vld [vmem:[%s370 + $0x40] sm:$0xf]
      %v571 = vld [vmem:[%s370 + $0x44] sm:$0xf]
      %v572 = vld [vmem:[%s370 + $0x48] sm:$0xf]
      %v573 = vld [vmem:[%s370 + $0x4c] sm:$0xf]
      %v574 = vld [vmem:[%s370 + $0x50] sm:$0xf]
      %v575 = vld [vmem:[%s370 + $0x54] sm:$0xf]
      %v576 = vld [vmem:[%s370 + $0x58] sm:$0xf]
      %v577 = vld [vmem:[%s370 + $0x5c] sm:$0xf]
      %v578 = vld [vmem:[%s370 + $0x60] sm:$0xf]
      %v579 = vld [vmem:[%s370 + $0x64] sm:$0xf]
      %v580 = vld [vmem:[%s370 + $0x68] sm:$0xf]
      %v581 = vld [vmem:[%s370 + $0x6c] sm:$0xf]
      %v582 = vld [vmem:[%s370 + $0x70] sm:$0xf]
      %v583 = vld [vmem:[%s370 + $0x74] sm:$0xf]
      %v584 = vld [vmem:[%s370 + $0x78] sm:$0xf]
      %v585 = vld [vmem:[%s370 + $0x7c] sm:$0xf]
      %v618 = vunpack.c.l.b16 %v490
      %v619 = vunpack.c.l.b16 %v491
      %v620 = vunpack.c.l.b16 %v492
      %v621 = vunpack.c.l.b16 %v493
      %v622 = vunpack.c.l.b16 %v494
      %v623 = vunpack.c.l.b16 %v495
      %v624 = vunpack.c.l.b16 %v496
      %v625 = vunpack.c.l.b16 %v497
      %v626 = vunpack.c.l.b16 %v498
      %v627 = vunpack.c.l.b16 %v499
      %v628 = vunpack.c.l.b16 %v500
      %v629 = vunpack.c.l.b16 %v501
      %v630 = vunpack.c.l.b16 %v502
      %v631 = vunpack.c.l.b16 %v503
      %v632 = vunpack.c.l.b16 %v504
      %v633 = vunpack.c.l.b16 %v505
      %v634 = vunpack.c.l.b16 %v506
      %v635 = vunpack.c.l.b16 %v507
      %v636 = vunpack.c.l.b16 %v508
      %v637 = vunpack.c.l.b16 %v509
      %v638 = vunpack.c.l.b16 %v510
      %v639 = vunpack.c.l.b16 %v511
      %v640 = vunpack.c.l.b16 %v512
      %v641 = vunpack.c.l.b16 %v513
      %v642 = vunpack.c.l.b16 %v514
      %v643 = vunpack.c.l.b16 %v515
      %v644 = vunpack.c.l.b16 %v516
      %v645 = vunpack.c.l.b16 %v517
      %v646 = vunpack.c.l.b16 %v518
      %v647 = vunpack.c.l.b16 %v519
      %v648 = vunpack.c.l.b16 %v520
      %v649 = vunpack.c.l.b16 %v521
      %v650 = vpack.c.b16 %v619, %v618
      %v651 = vpack.c.b16 %v621, %v620
      %v652 = vpack.c.b16 %v623, %v622
      %v653 = vpack.c.b16 %v625, %v624
      %v654 = vpack.c.b16 %v627, %v626
      %v655 = vpack.c.b16 %v629, %v628
      %v656 = vpack.c.b16 %v631, %v630
      %v657 = vpack.c.b16 %v633, %v632
      %v658 = vpack.c.b16 %v635, %v634
      %v659 = vpack.c.b16 %v637, %v636
      %v660 = vpack.c.b16 %v639, %v638
      %v661 = vpack.c.b16 %v641, %v640
      %v662 = vpack.c.b16 %v643, %v642
      %v663 = vpack.c.b16 %v645, %v644
      %v664 = vpack.c.b16 %v647, %v646
      %v665 = vpack.c.b16 %v649, %v648
      %v714 = vunpack.c.l.b16 %v522
      %v715 = vunpack.c.l.b16 %v523
      %v716 = vunpack.c.l.b16 %v524
      %v717 = vunpack.c.l.b16 %v525
      %v718 = vunpack.c.l.b16 %v526
      %v719 = vunpack.c.l.b16 %v527
      %v720 = vunpack.c.l.b16 %v528
      %v721 = vunpack.c.l.b16 %v529
      %v722 = vunpack.c.l.b16 %v530
      %v723 = vunpack.c.l.b16 %v531
      %v724 = vunpack.c.l.b16 %v532
      %v725 = vunpack.c.l.b16 %v533
      %v726 = vunpack.c.l.b16 %v534
      %v727 = vunpack.c.l.b16 %v535
      %v728 = vunpack.c.l.b16 %v536
      %v729 = vunpack.c.l.b16 %v537
      %v730 = vunpack.c.l.b16 %v538
      %v731 = vunpack.c.l.b16 %v539
      %v732 = vunpack.c.l.b16 %v540
      %v733 = vunpack.c.l.b16 %v541
      %v734 = vunpack.c.l.b16 %v542
      %v735 = vunpack.c.l.b16 %v543
      %v736 = vunpack.c.l.b16 %v544
      %v737 = vunpack.c.l.b16 %v545
      %v738 = vunpack.c.l.b16 %v546
      %v739 = vunpack.c.l.b16 %v547
      %v740 = vunpack.c.l.b16 %v548
      %v741 = vunpack.c.l.b16 %v549
      %v742 = vunpack.c.l.b16 %v550
      %v743 = vunpack.c.l.b16 %v551
      %v744 = vunpack.c.l.b16 %v552
      %v745 = vunpack.c.l.b16 %v553
      %v746 = vpack.c.b16 %v715, %v714
      %v747 = vpack.c.b16 %v717, %v716
      %v748 = vpack.c.b16 %v719, %v718
      %v749 = vpack.c.b16 %v721, %v720
      %v750 = vpack.c.b16 %v723, %v722
      %v751 = vpack.c.b16 %v725, %v724
      %v752 = vpack.c.b16 %v727, %v726
      %v753 = vpack.c.b16 %v729, %v728
      %v754 = vpack.c.b16 %v731, %v730
      %v755 = vpack.c.b16 %v733, %v732
      %v756 = vpack.c.b16 %v735, %v734
      %v757 = vpack.c.b16 %v737, %v736
      %v758 = vpack.c.b16 %v739, %v738
      %v759 = vpack.c.b16 %v741, %v740
      %v760 = vpack.c.b16 %v743, %v742
      %v761 = vpack.c.b16 %v745, %v744
      %778 = vmatpush.bf16.xpose.msra.mxu0 %v753
      %779 = vmatpush.bf16.xpose.msra.mxu0 %v752
      %780 = vmatpush.bf16.xpose.msra.mxu0 %v751
      %781 = vmatpush.bf16.xpose.msra.mxu0 %v750
      %782 = vmatpush.bf16.xpose.msra.mxu0 %v749
      %783 = vmatpush.bf16.xpose.msra.mxu0 %v748
      %784 = vmatpush.bf16.xpose.msra.mxu0 %v747
      %785 = vmatpush.bf16.xpose.msra.mxu0 %v746
      %786 = vmatmul.bf16.gmra.mxu0 %v650
      %v787 = vpop.f32.mrf.mxu0
      %v788 = vadd.f32 0.0, %v787
      %v789 = vpop.f32.mrf.mxu0
      %v790 = vadd.f32 0.0, %v789
      %791 = vmatmul.bf16.gmra.mxu0 %v651
      %v792 = vpop.f32.mrf.mxu0
      %v793 = vadd.f32 0.0, %v792
      %v794 = vpop.f32.mrf.mxu0
      %v795 = vadd.f32 0.0, %v794
      %796 = vmatmul.bf16.gmra.mxu0 %v652
      %v797 = vpop.f32.mrf.mxu0
      %v798 = vadd.f32 0.0, %v797
      %v799 = vpop.f32.mrf.mxu0
      %v800 = vadd.f32 0.0, %v799
      %801 = vmatmul.bf16.gmra.mxu0 %v653
      %v802 = vpop.f32.mrf.mxu0
      %v803 = vadd.f32 0.0, %v802
      %v804 = vpop.f32.mrf.mxu0
      %v805 = vadd.f32 0.0, %v804
      %806 = vmatmul.bf16.gmra.mxu0 %v654
      %v807 = vpop.f32.mrf.mxu0
      %v808 = vadd.f32 0.0, %v807
      %v809 = vpop.f32.mrf.mxu0
      %v810 = vadd.f32 0.0, %v809
      %811 = vmatmul.bf16.gmra.mxu0 %v655
      %v812 = vpop.f32.mrf.mxu0
      %v813 = vadd.f32 0.0, %v812
      %v814 = vpop.f32.mrf.mxu0
      %v815 = vadd.f32 0.0, %v814
      %816 = vmatmul.bf16.gmra.mxu0 %v656
      %v817 = vpop.f32.mrf.mxu0
      %v818 = vadd.f32 0.0, %v817
      %v819 = vpop.f32.mrf.mxu0
      %v820 = vadd.f32 0.0, %v819
      %821 = vmatmul.bf16.gmra.mxu0 %v657
      %v822 = vpop.f32.mrf.mxu0
      %v823 = vadd.f32 0.0, %v822
      %v824 = vpop.f32.mrf.mxu0
      %v825 = vadd.f32 0.0, %v824
      %826 = vmatmul.bf16.gmra.mxu0 %v658
      %v827 = vpop.f32.mrf.mxu0
      %v828 = vadd.f32 0.0, %v827
      %v829 = vpop.f32.mrf.mxu0
      %v830 = vadd.f32 0.0, %v829
      %831 = vmatmul.bf16.gmra.mxu0 %v659
      %v832 = vpop.f32.mrf.mxu0
      %v833 = vadd.f32 0.0, %v832
      %v834 = vpop.f32.mrf.mxu0
      %v835 = vadd.f32 0.0, %v834
      %836 = vmatmul.bf16.gmra.mxu0 %v660
      %v837 = vpop.f32.mrf.mxu0
      %v838 = vadd.f32 0.0, %v837
      %v839 = vpop.f32.mrf.mxu0
      %v840 = vadd.f32 0.0, %v839
      %841 = vmatmul.bf16.gmra.mxu0 %v661
      %v842 = vpop.f32.mrf.mxu0
      %v843 = vadd.f32 0.0, %v842
      %v844 = vpop.f32.mrf.mxu0
      %v845 = vadd.f32 0.0, %v844
      %846 = vmatmul.bf16.gmra.mxu0 %v662
      %v847 = vpop.f32.mrf.mxu0
      %v848 = vadd.f32 0.0, %v847
      %v849 = vpop.f32.mrf.mxu0
      %v850 = vadd.f32 0.0, %v849
      %851 = vmatmul.bf16.gmra.mxu0 %v663
      %v852 = vpop.f32.mrf.mxu0
      %v853 = vadd.f32 0.0, %v852
      %v854 = vpop.f32.mrf.mxu0
      %v855 = vadd.f32 0.0, %v854
      %856 = vmatmul.bf16.gmra.mxu0 %v664
      %v857 = vpop.f32.mrf.mxu0
      %v858 = vadd.f32 0.0, %v857
      %v859 = vpop.f32.mrf.mxu0
      %v860 = vadd.f32 0.0, %v859
      %861 = vmatmul.bf16.gmra.mxu0 %v665
      %v862 = vpop.f32.mrf.mxu0
      %v863 = vadd.f32 0.0, %v862
      %v864 = vpop.f32.mrf.mxu0
      %v865 = vadd.f32 0.0, %v864
      %866 = vdwg.mxu0
      %867 = vmatpush.bf16.xpose.msra.mxu0 %v761
      %868 = vmatpush.bf16.xpose.msra.mxu0 %v760
      %869 = vmatpush.bf16.xpose.msra.mxu0 %v759
      %870 = vmatpush.bf16.xpose.msra.mxu0 %v758
      %871 = vmatpush.bf16.xpose.msra.mxu0 %v757
      %872 = vmatpush.bf16.xpose.msra.mxu0 %v756
      %873 = vmatpush.bf16.xpose.msra.mxu0 %v755
      %874 = vmatpush.bf16.xpose.msra.mxu0 %v754
      %875 = vmatmul.bf16.gmra.mxu0 %v650
      %v876 = vpop.f32.mrf.mxu0
      %v877 = vadd.f32 0.0, %v876
      %v878 = vpop.f32.mrf.mxu0
      %v879 = vadd.f32 0.0, %v878
      %880 = vmatmul.bf16.gmra.mxu0 %v651
      %v881 = vpop.f32.mrf.mxu0
      %v882 = vadd.f32 0.0, %v881
      %v883 = vpop.f32.mrf.mxu0
      %v884 = vadd.f32 0.0, %v883
      %885 = vmatmul.bf16.gmra.mxu0 %v652
      %v886 = vpop.f32.mrf.mxu0
      %v887 = vadd.f32 0.0, %v886
      %v888 = vpop.f32.mrf.mxu0
      %v889 = vadd.f32 0.0, %v888
      %890 = vmatmul.bf16.gmra.mxu0 %v653
      %v891 = vpop.f32.mrf.mxu0
      %v892 = vadd.f32 0.0, %v891
      %v893 = vpop.f32.mrf.mxu0
      %v894 = vadd.f32 0.0, %v893
      %895 = vmatmul.bf16.gmra.mxu0 %v654
      %v896 = vpop.f32.mrf.mxu0
      %v897 = vadd.f32 0.0, %v896
      %v898 = vpop.f32.mrf.mxu0
      %v899 = vadd.f32 0.0, %v898
      %900 = vmatmul.bf16.gmra.mxu0 %v655
      %v901 = vpop.f32.mrf.mxu0
      %v902 = vadd.f32 0.0, %v901
      %v903 = vpop.f32.mrf.mxu0
      %v904 = vadd.f32 0.0, %v903
      %905 = vmatmul.bf16.gmra.mxu0 %v656
      %v906 = vpop.f32.mrf.mxu0
      %v907 = vadd.f32 0.0, %v906
      %v908 = vpop.f32.mrf.mxu0
      %v909 = vadd.f32 0.0, %v908
      %910 = vmatmul.bf16.gmra.mxu0 %v657
      %v911 = vpop.f32.mrf.mxu0
      %v912 = vadd.f32 0.0, %v911
      %v913 = vpop.f32.mrf.mxu0
      %v914 = vadd.f32 0.0, %v913
      %915 = vmatmul.bf16.gmra.mxu0 %v658
      %v916 = vpop.f32.mrf.mxu0
      %v917 = vadd.f32 0.0, %v916
      %v918 = vpop.f32.mrf.mxu0
      %v919 = vadd.f32 0.0, %v918
      %920 = vmatmul.bf16.gmra.mxu0 %v659
      %v921 = vpop.f32.mrf.mxu0
      %v922 = vadd.f32 0.0, %v921
      %v923 = vpop.f32.mrf.mxu0
      %v924 = vadd.f32 0.0, %v923
      %925 = vmatmul.bf16.gmra.mxu0 %v660
      %v926 = vpop.f32.mrf.mxu0
      %v927 = vadd.f32 0.0, %v926
      %v928 = vpop.f32.mrf.mxu0
      %v929 = vadd.f32 0.0, %v928
      %930 = vmatmul.bf16.gmra.mxu0 %v661
      %v931 = vpop.f32.mrf.mxu0
      %v932 = vadd.f32 0.0, %v931
      %v933 = vpop.f32.mrf.mxu0
      %v934 = vadd.f32 0.0, %v933
      %935 = vmatmul.bf16.gmra.mxu0 %v662
      %v936 = vpop.f32.mrf.mxu0
      %v937 = vadd.f32 0.0, %v936
      %v938 = vpop.f32.mrf.mxu0
      %v939 = vadd.f32 0.0, %v938
      %940 = vmatmul.bf16.gmra.mxu0 %v663
      %v941 = vpop.f32.mrf.mxu0
      %v942 = vadd.f32 0.0, %v941
      %v943 = vpop.f32.mrf.mxu0
      %v944 = vadd.f32 0.0, %v943
      %945 = vmatmul.bf16.gmra.mxu0 %v664
      %v946 = vpop.f32.mrf.mxu0
      %v947 = vadd.f32 0.0, %v946
      %v948 = vpop.f32.mrf.mxu0
      %v949 = vadd.f32 0.0, %v948
      %950 = vmatmul.bf16.gmra.mxu0 %v665
      %v951 = vpop.f32.mrf.mxu0
      %v952 = vadd.f32 0.0, %v951
      %v953 = vpop.f32.mrf.mxu0
      %v954 = vadd.f32 0.0, %v953
      %955 = vdwg.mxu0
      %v956 = vld [vmem:[#allocation2] sm:$0xff]
      %v957 = vld [vmem:[#allocation2 + $0x8] sm:$0xff]
      %v958 = vld [vmem:[#allocation2 + $0x10] sm:$0xff]
      %v959 = vld [vmem:[#allocation2 + $0x18] sm:$0xff]
      %v960 = vld [vmem:[#allocation2 + $0x20] sm:$0xff]
      %v961 = vld [vmem:[#allocation2 + $0x28] sm:$0xff]
      %v962 = vld [vmem:[#allocation2 + $0x30] sm:$0xff]
      %v963 = vld [vmem:[#allocation2 + $0x38] sm:$0xff]
      %v964 = vld [vmem:[#allocation2 + $0x40] sm:$0xff]
      %v965 = vld [vmem:[#allocation2 + $0x48] sm:$0xff]
      %v966 = vld [vmem:[#allocation2 + $0x50] sm:$0xff]
      %v967 = vld [vmem:[#allocation2 + $0x58] sm:$0xff]
      %v968 = vld [vmem:[#allocation2 + $0x60] sm:$0xff]
      %v969 = vld [vmem:[#allocation2 + $0x68] sm:$0xff]
      %v970 = vld [vmem:[#allocation2 + $0x70] sm:$0xff]
      %v971 = vld [vmem:[#allocation2 + $0x78] sm:$0xff]
      %v972 = vld [vmem:[#allocation2 + $0x80] sm:$0xff]
      %v973 = vld [vmem:[#allocation2 + $0x88] sm:$0xff]
      %v974 = vld [vmem:[#allocation2 + $0x90] sm:$0xff]
      %v975 = vld [vmem:[#allocation2 + $0x98] sm:$0xff]
      %v976 = vld [vmem:[#allocation2 + $0xa0] sm:$0xff]
      %v977 = vld [vmem:[#allocation2 + $0xa8] sm:$0xff]
      %v978 = vld [vmem:[#allocation2 + $0xb0] sm:$0xff]
      %v979 = vld [vmem:[#allocation2 + $0xb8] sm:$0xff]
      %v980 = vld [vmem:[#allocation2 + $0xc0] sm:$0xff]
      %v981 = vld [vmem:[#allocation2 + $0xc8] sm:$0xff]
      %v982 = vld [vmem:[#allocation2 + $0xd0] sm:$0xff]
      %v983 = vld [vmem:[#allocation2 + $0xd8] sm:$0xff]
      %v984 = vld [vmem:[#allocation2 + $0xe0] sm:$0xff]
      %v985 = vld [vmem:[#allocation2 + $0xe8] sm:$0xff]
      %v986 = vld [vmem:[#allocation2 + $0xf0] sm:$0xff]
      %v987 = vld [vmem:[#allocation2 + $0xf8] sm:$0xff]
      %v988 = vmax.f32 %v788, %v877
      %989 = vmax.xlane.f32.xlu0 %v988
      %v990 = vpop.xlane.xlu0 %989
      %v991 = vmax.f32 %v790, %v879
      %992 = vmax.xlane.f32.xlu0 %v991
      %v993 = vpop.xlane.xlu0 %992
      %v994 = vmax.f32 %v793, %v882
      %995 = vmax.xlane.f32.xlu0 %v994
      %v996 = vpop.xlane.xlu0 %995
      %v997 = vmax.f32 %v795, %v884
      %998 = vmax.xlane.f32.xlu0 %v997
      %v999 = vpop.xlane.xlu0 %998
      %v1000 = vmax.f32 %v798, %v887
      %1001 = vmax.xlane.f32.xlu0 %v1000
      %v1002 = vpop.xlane.xlu0 %1001
      %v1003 = vmax.f32 %v800, %v889
      %1004 = vmax.xlane.f32.xlu0 %v1003
      %v1005 = vpop.xlane.xlu0 %1004
      %v1006 = vmax.f32 %v803, %v892
      %1007 = vmax.xlane.f32.xlu0 %v1006
      %v1008 = vpop.xlane.xlu0 %1007
      %v1009 = vmax.f32 %v805, %v894
      %1010 = vmax.xlane.f32.xlu0 %v1009
      %v1011 = vpop.xlane.xlu0 %1010
      %v1012 = vmax.f32 %v808, %v897
      %1013 = vmax.xlane.f32.xlu0 %v1012
      %v1014 = vpop.xlane.xlu0 %1013
      %v1015 = vmax.f32 %v810, %v899
      %1016 = vmax.xlane.f32.xlu0 %v1015
      %v1017 = vpop.xlane.xlu0 %1016
      %v1018 = vmax.f32 %v813, %v902
      %1019 = vmax.xlane.f32.xlu0 %v1018
      %v1020 = vpop.xlane.xlu0 %1019
      %v1021 = vmax.f32 %v815, %v904
      %1022 = vmax.xlane.f32.xlu0 %v1021
      %v1023 = vpop.xlane.xlu0 %1022
      %v1024 = vmax.f32 %v818, %v907
      %1025 = vmax.xlane.f32.xlu0 %v1024
      %v1026 = vpop.xlane.xlu0 %1025
      %v1027 = vmax.f32 %v820, %v909
      %1028 = vmax.xlane.f32.xlu0 %v1027
      %v1029 = vpop.xlane.xlu0 %1028
      %v1030 = vmax.f32 %v823, %v912
      %1031 = vmax.xlane.f32.xlu0 %v1030
      %v1032 = vpop.xlane.xlu0 %1031
      %v1033 = vmax.f32 %v825, %v914
      %1034 = vmax.xlane.f32.xlu0 %v1033
      %v1035 = vpop.xlane.xlu0 %1034
      %v1036 = vmax.f32 %v828, %v917
      %1037 = vmax.xlane.f32.xlu0 %v1036
      %v1038 = vpop.xlane.xlu0 %1037
      %v1039 = vmax.f32 %v830, %v919
      %1040 = vmax.xlane.f32.xlu0 %v1039
      %v1041 = vpop.xlane.xlu0 %1040
      %v1042 = vmax.f32 %v833, %v922
      %1043 = vmax.xlane.f32.xlu0 %v1042
      %v1044 = vpop.xlane.xlu0 %1043
      %v1045 = vmax.f32 %v835, %v924
      %1046 = vmax.xlane.f32.xlu0 %v1045
      %v1047 = vpop.xlane.xlu0 %1046
      %v1048 = vmax.f32 %v838, %v927
      %1049 = vmax.xlane.f32.xlu0 %v1048
      %v1050 = vpop.xlane.xlu0 %1049
      %v1051 = vmax.f32 %v840, %v929
      %1052 = vmax.xlane.f32.xlu0 %v1051
      %v1053 = vpop.xlane.xlu0 %1052
      %v1054 = vmax.f32 %v843, %v932
      %1055 = vmax.xlane.f32.xlu0 %v1054
      %v1056 = vpop.xlane.xlu0 %1055
      %v1057 = vmax.f32 %v845, %v934
      %1058 = vmax.xlane.f32.xlu0 %v1057
      %v1059 = vpop.xlane.xlu0 %1058
      %v1060 = vmax.f32 %v848, %v937
      %1061 = vmax.xlane.f32.xlu0 %v1060
      %v1062 = vpop.xlane.xlu0 %1061
      %v1063 = vmax.f32 %v850, %v939
      %1064 = vmax.xlane.f32.xlu0 %v1063
      %v1065 = vpop.xlane.xlu0 %1064
      %v1066 = vmax.f32 %v853, %v942
      %1067 = vmax.xlane.f32.xlu0 %v1066
      %v1068 = vpop.xlane.xlu0 %1067
      %v1069 = vmax.f32 %v855, %v944
      %1070 = vmax.xlane.f32.xlu0 %v1069
      %v1071 = vpop.xlane.xlu0 %1070
      %v1072 = vmax.f32 %v858, %v947
      %1073 = vmax.xlane.f32.xlu0 %v1072
      %v1074 = vpop.xlane.xlu0 %1073
      %v1075 = vmax.f32 %v860, %v949
      %1076 = vmax.xlane.f32.xlu0 %v1075
      %v1077 = vpop.xlane.xlu0 %1076
      %v1078 = vmax.f32 %v863, %v952
      %1079 = vmax.xlane.f32.xlu0 %v1078
      %v1080 = vpop.xlane.xlu0 %1079
      %v1081 = vmax.f32 %v865, %v954
      %1082 = vmax.xlane.f32.xlu0 %v1081
      %v1083 = vpop.xlane.xlu0 %1082
      %v1084 = vmax.f32 %v956, %v990
      %v1085 = vmax.f32 %v957, %v993
      %v1086 = vmax.f32 %v958, %v996
      %v1087 = vmax.f32 %v959, %v999
      %v1088 = vmax.f32 %v960, %v1002
      %v1089 = vmax.f32 %v961, %v1005
      %v1090 = vmax.f32 %v962, %v1008
      %v1091 = vmax.f32 %v963, %v1011
      %v1092 = vmax.f32 %v964, %v1014
      %v1093 = vmax.f32 %v965, %v1017
      %v1094 = vmax.f32 %v966, %v1020
      %v1095 = vmax.f32 %v967, %v1023
      %v1096 = vmax.f32 %v968, %v1026
      %v1097 = vmax.f32 %v969, %v1029
      %v1098 = vmax.f32 %v970, %v1032
      %v1099 = vmax.f32 %v971, %v1035
      %v1100 = vmax.f32 %v972, %v1038
      %v1101 = vmax.f32 %v973, %v1041
      %v1102 = vmax.f32 %v974, %v1044
      %v1103 = vmax.f32 %v975, %v1047
      %v1104 = vmax.f32 %v976, %v1050
      %v1105 = vmax.f32 %v977, %v1053
      %v1106 = vmax.f32 %v978, %v1056
      %v1107 = vmax.f32 %v979, %v1059
      %v1108 = vmax.f32 %v980, %v1062
      %v1109 = vmax.f32 %v981, %v1065
      %v1110 = vmax.f32 %v982, %v1068
      %v1111 = vmax.f32 %v983, %v1071
      %v1112 = vmax.f32 %v984, %v1074
      %v1113 = vmax.f32 %v985, %v1077
      %v1114 = vmax.f32 %v986, %v1080
      %v1115 = vmax.f32 %v987, %v1083
      %v1116 = vsub.f32 %v956, %v1084
      %v1117 = vsub.f32 %v957, %v1085
      %v1118 = vsub.f32 %v958, %v1086
      %v1119 = vsub.f32 %v959, %v1087
      %v1120 = vsub.f32 %v960, %v1088
      %v1121 = vsub.f32 %v961, %v1089
      %v1122 = vsub.f32 %v962, %v1090
      %v1123 = vsub.f32 %v963, %v1091
      %v1124 = vsub.f32 %v964, %v1092
      %v1125 = vsub.f32 %v965, %v1093
      %v1126 = vsub.f32 %v966, %v1094
      %v1127 = vsub.f32 %v967, %v1095
      %v1128 = vsub.f32 %v968, %v1096
      %v1129 = vsub.f32 %v969, %v1097
      %v1130 = vsub.f32 %v970, %v1098
      %v1131 = vsub.f32 %v971, %v1099
      %v1132 = vsub.f32 %v972, %v1100
      %v1133 = vsub.f32 %v973, %v1101
      %v1134 = vsub.f32 %v974, %v1102
      %v1135 = vsub.f32 %v975, %v1103
      %v1136 = vsub.f32 %v976, %v1104
      %v1137 = vsub.f32 %v977, %v1105
      %v1138 = vsub.f32 %v978, %v1106
      %v1139 = vsub.f32 %v979, %v1107
      %v1140 = vsub.f32 %v980, %v1108
      %v1141 = vsub.f32 %v981, %v1109
      %v1142 = vsub.f32 %v982, %v1110
      %v1143 = vsub.f32 %v983, %v1111
      %v1144 = vsub.f32 %v984, %v1112
      %v1145 = vsub.f32 %v985, %v1113
      %v1146 = vsub.f32 %v986, %v1114
      %v1147 = vsub.f32 %v987, %v1115
      %v1148 = vmul.f32 %v1116, 1.442695
      %v1149 = vpow.pop %v1148
      %v1150 = vmul.f32 %v1117, 1.442695
      %v1151 = vpow.pop %v1150
      %v1152 = vmul.f32 %v1118, 1.442695
      %v1153 = vpow.pop %v1152
      %v1154 = vmul.f32 %v1119, 1.442695
      %v1155 = vpow.pop %v1154
      %v1156 = vmul.f32 %v1120, 1.442695
      %v1157 = vpow.pop %v1156
      %v1158 = vmul.f32 %v1121, 1.442695
      %v1159 = vpow.pop %v1158
      %v1160 = vmul.f32 %v1122, 1.442695
      %v1161 = vpow.pop %v1160
      %v1162 = vmul.f32 %v1123, 1.442695
      %v1163 = vpow.pop %v1162
      %v1164 = vmul.f32 %v1124, 1.442695
      %v1165 = vpow.pop %v1164
      %v1166 = vmul.f32 %v1125, 1.442695
      %v1167 = vpow.pop %v1166
      %v1168 = vmul.f32 %v1126, 1.442695
      %v1169 = vpow.pop %v1168
      %v1170 = vmul.f32 %v1127, 1.442695
      %v1171 = vpow.pop %v1170
      %v1172 = vmul.f32 %v1128, 1.442695
      %v1173 = vpow.pop %v1172
      %v1174 = vmul.f32 %v1129, 1.442695
      %v1175 = vpow.pop %v1174
      %v1176 = vmul.f32 %v1130, 1.442695
      %v1177 = vpow.pop %v1176
      %v1178 = vmul.f32 %v1131, 1.442695
      %v1179 = vpow.pop %v1178
      %v1180 = vmul.f32 %v1132, 1.442695
      %v1181 = vpow.pop %v1180
      %v1182 = vmul.f32 %v1133, 1.442695
      %v1183 = vpow.pop %v1182
      %v1184 = vmul.f32 %v1134, 1.442695
      %v1185 = vpow.pop %v1184
      %v1186 = vmul.f32 %v1135, 1.442695
      %v1187 = vpow.pop %v1186
      %v1188 = vmul.f32 %v1136, 1.442695
      %v1189 = vpow.pop %v1188
      %v1190 = vmul.f32 %v1137, 1.442695
      %v1191 = vpow.pop %v1190
      %v1192 = vmul.f32 %v1138, 1.442695
      %v1193 = vpow.pop %v1192
      %v1194 = vmul.f32 %v1139, 1.442695
      %v1195 = vpow.pop %v1194
      %v1196 = vmul.f32 %v1140, 1.442695
      %v1197 = vpow.pop %v1196
      %v1198 = vmul.f32 %v1141, 1.442695
      %v1199 = vpow.pop %v1198
      %v1200 = vmul.f32 %v1142, 1.442695
      %v1201 = vpow.pop %v1200
      %v1202 = vmul.f32 %v1143, 1.442695
      %v1203 = vpow.pop %v1202
      %v1204 = vmul.f32 %v1144, 1.442695
      %v1205 = vpow.pop %v1204
      %v1206 = vmul.f32 %v1145, 1.442695
      %v1207 = vpow.pop %v1206
      %v1208 = vmul.f32 %v1146, 1.442695
      %v1209 = vpow.pop %v1208
      %v1210 = vmul.f32 %v1147, 1.442695
      %v1211 = vpow.pop %v1210
      %1213 = vset.pattern.permute.xlu0 0
      %1214 = vperm.xlu0 %1213, %v1084
      %v1215 = vpop.permute.xlu0 %1214
      %1218 = vset.pattern.permute.xlu0 0
      %1219 = vperm.xlu0 %1218, %v1085
      %v1220 = vpop.permute.xlu0 %1219
      %1223 = vset.pattern.permute.xlu0 0
      %1224 = vperm.xlu0 %1223, %v1086
      %v1225 = vpop.permute.xlu0 %1224
      %1228 = vset.pattern.permute.xlu0 0
      %1229 = vperm.xlu0 %1228, %v1087
      %v1230 = vpop.permute.xlu0 %1229
      %1233 = vset.pattern.permute.xlu0 0
      %1234 = vperm.xlu0 %1233, %v1088
      %v1235 = vpop.permute.xlu0 %1234
      %1238 = vset.pattern.permute.xlu0 0
      %1239 = vperm.xlu0 %1238, %v1089
      %v1240 = vpop.permute.xlu0 %1239
      %1243 = vset.pattern.permute.xlu0 0
      %1244 = vperm.xlu0 %1243, %v1090
      %v1245 = vpop.permute.xlu0 %1244
      %1248 = vset.pattern.permute.xlu0 0
      %1249 = vperm.xlu0 %1248, %v1091
      %v1250 = vpop.permute.xlu0 %1249
      %1253 = vset.pattern.permute.xlu0 0
      %1254 = vperm.xlu0 %1253, %v1092
      %v1255 = vpop.permute.xlu0 %1254
      %1258 = vset.pattern.permute.xlu0 0
      %1259 = vperm.xlu0 %1258, %v1093
      %v1260 = vpop.permute.xlu0 %1259
      %1263 = vset.pattern.permute.xlu0 0
      %1264 = vperm.xlu0 %1263, %v1094
      %v1265 = vpop.permute.xlu0 %1264
      %1268 = vset.pattern.permute.xlu0 0
      %1269 = vperm.xlu0 %1268, %v1095
      %v1270 = vpop.permute.xlu0 %1269
      %1273 = vset.pattern.permute.xlu0 0
      %1274 = vperm.xlu0 %1273, %v1096
      %v1275 = vpop.permute.xlu0 %1274
      %1278 = vset.pattern.permute.xlu0 0
      %1279 = vperm.xlu0 %1278, %v1097
      %v1280 = vpop.permute.xlu0 %1279
      %1283 = vset.pattern.permute.xlu0 0
      %1284 = vperm.xlu0 %1283, %v1098
      %v1285 = vpop.permute.xlu0 %1284
      %1288 = vset.pattern.permute.xlu0 0
      %1289 = vperm.xlu0 %1288, %v1099
      %v1290 = vpop.permute.xlu0 %1289
      %1293 = vset.pattern.permute.xlu0 0
      %1294 = vperm.xlu0 %1293, %v1100
      %v1295 = vpop.permute.xlu0 %1294
      %1298 = vset.pattern.permute.xlu0 0
      %1299 = vperm.xlu0 %1298, %v1101
      %v1300 = vpop.permute.xlu0 %1299
      %1303 = vset.pattern.permute.xlu0 0
      %1304 = vperm.xlu0 %1303, %v1102
      %v1305 = vpop.permute.xlu0 %1304
      %1308 = vset.pattern.permute.xlu0 0
      %1309 = vperm.xlu0 %1308, %v1103
      %v1310 = vpop.permute.xlu0 %1309
      %1313 = vset.pattern.permute.xlu0 0
      %1314 = vperm.xlu0 %1313, %v1104
      %v1315 = vpop.permute.xlu0 %1314
      %1318 = vset.pattern.permute.xlu0 0
      %1319 = vperm.xlu0 %1318, %v1105
      %v1320 = vpop.permute.xlu0 %1319
      %1323 = vset.pattern.permute.xlu0 0
      %1324 = vperm.xlu0 %1323, %v1106
      %v1325 = vpop.permute.xlu0 %1324
      %1328 = vset.pattern.permute.xlu0 0
      %1329 = vperm.xlu0 %1328, %v1107
      %v1330 = vpop.permute.xlu0 %1329
      %1333 = vset.pattern.permute.xlu0 0
      %1334 = vperm.xlu0 %1333, %v1108
      %v1335 = vpop.permute.xlu0 %1334
      %1338 = vset.pattern.permute.xlu0 0
      %1339 = vperm.xlu0 %1338, %v1109
      %v1340 = vpop.permute.xlu0 %1339
      %1343 = vset.pattern.permute.xlu0 0
      %1344 = vperm.xlu0 %1343, %v1110
      %v1345 = vpop.permute.xlu0 %1344
      %1348 = vset.pattern.permute.xlu0 0
      %1349 = vperm.xlu0 %1348, %v1111
      %v1350 = vpop.permute.xlu0 %1349
      %1353 = vset.pattern.permute.xlu0 0
      %1354 = vperm.xlu0 %1353, %v1112
      %v1355 = vpop.permute.xlu0 %1354
      %1358 = vset.pattern.permute.xlu0 0
      %1359 = vperm.xlu0 %1358, %v1113
      %v1360 = vpop.permute.xlu0 %1359
      %1363 = vset.pattern.permute.xlu0 0
      %1364 = vperm.xlu0 %1363, %v1114
      %v1365 = vpop.permute.xlu0 %1364
      %1368 = vset.pattern.permute.xlu0 0
      %1369 = vperm.xlu0 %1368, %v1115
      %v1370 = vpop.permute.xlu0 %1369
      %v1372 = vsub.f32 %v788, %v1215
      %v1373 = vsub.f32 %v877, %v1215
      %v1374 = vsub.f32 %v790, %v1220
      %v1375 = vsub.f32 %v879, %v1220
      %v1376 = vsub.f32 %v793, %v1225
      %v1377 = vsub.f32 %v882, %v1225
      %v1378 = vsub.f32 %v795, %v1230
      %v1379 = vsub.f32 %v884, %v1230
      %v1380 = vsub.f32 %v798, %v1235
      %v1381 = vsub.f32 %v887, %v1235
      %v1382 = vsub.f32 %v800, %v1240
      %v1383 = vsub.f32 %v889, %v1240
      %v1384 = vsub.f32 %v803, %v1245
      %v1385 = vsub.f32 %v892, %v1245
      %v1386 = vsub.f32 %v805, %v1250
      %v1387 = vsub.f32 %v894, %v1250
      %v1388 = vsub.f32 %v808, %v1255
      %v1389 = vsub.f32 %v897, %v1255
      %v1390 = vsub.f32 %v810, %v1260
      %v1391 = vsub.f32 %v899, %v1260
      %v1392 = vsub.f32 %v813, %v1265
      %v1393 = vsub.f32 %v902, %v1265
      %v1394 = vsub.f32 %v815, %v1270
      %v1395 = vsub.f32 %v904, %v1270
      %v1396 = vsub.f32 %v818, %v1275
      %v1397 = vsub.f32 %v907, %v1275
      %v1398 = vsub.f32 %v820, %v1280
      %v1399 = vsub.f32 %v909, %v1280
      %v1400 = vsub.f32 %v823, %v1285
      %v1401 = vsub.f32 %v912, %v1285
      %v1402 = vsub.f32 %v825, %v1290
      %v1403 = vsub.f32 %v914, %v1290
      %v1404 = vsub.f32 %v828, %v1295
      %v1405 = vsub.f32 %v917, %v1295
      %v1406 = vsub.f32 %v830, %v1300
      %v1407 = vsub.f32 %v919, %v1300
      %v1408 = vsub.f32 %v833, %v1305
      %v1409 = vsub.f32 %v922, %v1305
      %v1410 = vsub.f32 %v835, %v1310
      %v1411 = vsub.f32 %v924, %v1310
      %v1412 = vsub.f32 %v838, %v1315
      %v1413 = vsub.f32 %v927, %v1315
      %v1414 = vsub.f32 %v840, %v1320
      %v1415 = vsub.f32 %v929, %v1320
      %v1416 = vsub.f32 %v843, %v1325
      %v1417 = vsub.f32 %v932, %v1325
      %v1418 = vsub.f32 %v845, %v1330
      %v1419 = vsub.f32 %v934, %v1330
      %v1420 = vsub.f32 %v848, %v1335
      %v1421 = vsub.f32 %v937, %v1335
      %v1422 = vsub.f32 %v850, %v1340
      %v1423 = vsub.f32 %v939, %v1340
      %v1424 = vsub.f32 %v853, %v1345
      %v1425 = vsub.f32 %v942, %v1345
      %v1426 = vsub.f32 %v855, %v1350
      %v1427 = vsub.f32 %v944, %v1350
      %v1428 = vsub.f32 %v858, %v1355
      %v1429 = vsub.f32 %v947, %v1355
      %v1430 = vsub.f32 %v860, %v1360
      %v1431 = vsub.f32 %v949, %v1360
      %v1432 = vsub.f32 %v863, %v1365
      %v1433 = vsub.f32 %v952, %v1365
      %v1434 = vsub.f32 %v865, %v1370
      %v1435 = vsub.f32 %v954, %v1370
      %v1436 = vmul.f32 %v1372, 1.442695
      %v1437 = vpow.pop %v1436
      %v1438 = vmul.f32 %v1373, 1.442695
      %v1439 = vpow.pop %v1438
      %v1440 = vmul.f32 %v1374, 1.442695
      %v1441 = vpow.pop %v1440
      %v1442 = vmul.f32 %v1375, 1.442695
      %v1443 = vpow.pop %v1442
      %v1444 = vmul.f32 %v1376, 1.442695
      %v1445 = vpow.pop %v1444
      %v1446 = vmul.f32 %v1377, 1.442695
      %v1447 = vpow.pop %v1446
      %v1448 = vmul.f32 %v1378, 1.442695
      %v1449 = vpow.pop %v1448
      %v1450 = vmul.f32 %v1379, 1.442695
      %v1451 = vpow.pop %v1450
      %v1452 = vmul.f32 %v1380, 1.442695
      %v1453 = vpow.pop %v1452
      %v1454 = vmul.f32 %v1381, 1.442695
      %v1455 = vpow.pop %v1454
      %v1456 = vmul.f32 %v1382, 1.442695
      %v1457 = vpow.pop %v1456
      %v1458 = vmul.f32 %v1383, 1.442695
      %v1459 = vpow.pop %v1458
      %v1460 = vmul.f32 %v1384, 1.442695
      %v1461 = vpow.pop %v1460
      %v1462 = vmul.f32 %v1385, 1.442695
      %v1463 = vpow.pop %v1462
      %v1464 = vmul.f32 %v1386, 1.442695
      %v1465 = vpow.pop %v1464
      %v1466 = vmul.f32 %v1387, 1.442695
      %v1467 = vpow.pop %v1466
      %v1468 = vmul.f32 %v1388, 1.442695
      %v1469 = vpow.pop %v1468
      %v1470 = vmul.f32 %v1389, 1.442695
      %v1471 = vpow.pop %v1470
      %v1472 = vmul.f32 %v1390, 1.442695
      %v1473 = vpow.pop %v1472
      %v1474 = vmul.f32 %v1391, 1.442695
      %v1475 = vpow.pop %v1474
      %v1476 = vmul.f32 %v1392, 1.442695
      %v1477 = vpow.pop %v1476
      %v1478 = vmul.f32 %v1393, 1.442695
      %v1479 = vpow.pop %v1478
      %v1480 = vmul.f32 %v1394, 1.442695
      %v1481 = vpow.pop %v1480
      %v1482 = vmul.f32 %v1395, 1.442695
      %v1483 = vpow.pop %v1482
      %v1484 = vmul.f32 %v1396, 1.442695
      %v1485 = vpow.pop %v1484
      %v1486 = vmul.f32 %v1397, 1.442695
      %v1487 = vpow.pop %v1486
      %v1488 = vmul.f32 %v1398, 1.442695
      %v1489 = vpow.pop %v1488
      %v1490 = vmul.f32 %v1399, 1.442695
      %v1491 = vpow.pop %v1490
      %v1492 = vmul.f32 %v1400, 1.442695
      %v1493 = vpow.pop %v1492
      %v1494 = vmul.f32 %v1401, 1.442695
      %v1495 = vpow.pop %v1494
      %v1496 = vmul.f32 %v1402, 1.442695
      %v1497 = vpow.pop %v1496
      %v1498 = vmul.f32 %v1403, 1.442695
      %v1499 = vpow.pop %v1498
      %v1500 = vmul.f32 %v1404, 1.442695
      %v1501 = vpow.pop %v1500
      %v1502 = vmul.f32 %v1405, 1.442695
      %v1503 = vpow.pop %v1502
      %v1504 = vmul.f32 %v1406, 1.442695
      %v1505 = vpow.pop %v1504
      %v1506 = vmul.f32 %v1407, 1.442695
      %v1507 = vpow.pop %v1506
      %v1508 = vmul.f32 %v1408, 1.442695
      %v1509 = vpow.pop %v1508
      %v1510 = vmul.f32 %v1409, 1.442695
      %v1511 = vpow.pop %v1510
      %v1512 = vmul.f32 %v1410, 1.442695
      %v1513 = vpow.pop %v1512
      %v1514 = vmul.f32 %v1411, 1.442695
      %v1515 = vpow.pop %v1514
      %v1516 = vmul.f32 %v1412, 1.442695
      %v1517 = vpow.pop %v1516
      %v1518 = vmul.f32 %v1413, 1.442695
      %v1519 = vpow.pop %v1518
      %v1520 = vmul.f32 %v1414, 1.442695
      %v1521 = vpow.pop %v1520
      %v1522 = vmul.f32 %v1415, 1.442695
      %v1523 = vpow.pop %v1522
      %v1524 = vmul.f32 %v1416, 1.442695
      %v1525 = vpow.pop %v1524
      %v1526 = vmul.f32 %v1417, 1.442695
      %v1527 = vpow.pop %v1526
      %v1528 = vmul.f32 %v1418, 1.442695
      %v1529 = vpow.pop %v1528
      %v1530 = vmul.f32 %v1419, 1.442695
      %v1531 = vpow.pop %v1530
      %v1532 = vmul.f32 %v1420, 1.442695
      %v1533 = vpow.pop %v1532
      %v1534 = vmul.f32 %v1421, 1.442695
      %v1535 = vpow.pop %v1534
      %v1536 = vmul.f32 %v1422, 1.442695
      %v1537 = vpow.pop %v1536
      %v1538 = vmul.f32 %v1423, 1.442695
      %v1539 = vpow.pop %v1538
      %v1540 = vmul.f32 %v1424, 1.442695
      %v1541 = vpow.pop %v1540
      %v1542 = vmul.f32 %v1425, 1.442695
      %v1543 = vpow.pop %v1542
      %v1544 = vmul.f32 %v1426, 1.442695
      %v1545 = vpow.pop %v1544
      %v1546 = vmul.f32 %v1427, 1.442695
      %v1547 = vpow.pop %v1546
      %v1548 = vmul.f32 %v1428, 1.442695
      %v1549 = vpow.pop %v1548
      %v1550 = vmul.f32 %v1429, 1.442695
      %v1551 = vpow.pop %v1550
      %v1552 = vmul.f32 %v1430, 1.442695
      %v1553 = vpow.pop %v1552
      %v1554 = vmul.f32 %v1431, 1.442695
      %v1555 = vpow.pop %v1554
      %v1556 = vmul.f32 %v1432, 1.442695
      %v1557 = vpow.pop %v1556
      %v1558 = vmul.f32 %v1433, 1.442695
      %v1559 = vpow.pop %v1558
      %v1560 = vmul.f32 %v1434, 1.442695
      %v1561 = vpow.pop %v1560
      %v1562 = vmul.f32 %v1435, 1.442695
      %v1563 = vpow.pop %v1562
      %v1564 = vld [vmem:[#allocation3] sm:$0xff]
      %v1565 = vld [vmem:[#allocation3 + $0x8] sm:$0xff]
      %v1566 = vld [vmem:[#allocation3 + $0x10] sm:$0xff]
      %v1567 = vld [vmem:[#allocation3 + $0x18] sm:$0xff]
      %v1568 = vld [vmem:[#allocation3 + $0x20] sm:$0xff]
      %v1569 = vld [vmem:[#allocation3 + $0x28] sm:$0xff]
      %v1570 = vld [vmem:[#allocation3 + $0x30] sm:$0xff]
      %v1571 = vld [vmem:[#allocation3 + $0x38] sm:$0xff]
      %v1572 = vld [vmem:[#allocation3 + $0x40] sm:$0xff]
      %v1573 = vld [vmem:[#allocation3 + $0x48] sm:$0xff]
      %v1574 = vld [vmem:[#allocation3 + $0x50] sm:$0xff]
      %v1575 = vld [vmem:[#allocation3 + $0x58] sm:$0xff]
      %v1576 = vld [vmem:[#allocation3 + $0x60] sm:$0xff]
      %v1577 = vld [vmem:[#allocation3 + $0x68] sm:$0xff]
      %v1578 = vld [vmem:[#allocation3 + $0x70] sm:$0xff]
      %v1579 = vld [vmem:[#allocation3 + $0x78] sm:$0xff]
      %v1580 = vld [vmem:[#allocation3 + $0x80] sm:$0xff]
      %v1581 = vld [vmem:[#allocation3 + $0x88] sm:$0xff]
      %v1582 = vld [vmem:[#allocation3 + $0x90] sm:$0xff]
      %v1583 = vld [vmem:[#allocation3 + $0x98] sm:$0xff]
      %v1584 = vld [vmem:[#allocation3 + $0xa0] sm:$0xff]
      %v1585 = vld [vmem:[#allocation3 + $0xa8] sm:$0xff]
      %v1586 = vld [vmem:[#allocation3 + $0xb0] sm:$0xff]
      %v1587 = vld [vmem:[#allocation3 + $0xb8] sm:$0xff]
      %v1588 = vld [vmem:[#allocation3 + $0xc0] sm:$0xff]
      %v1589 = vld [vmem:[#allocation3 + $0xc8] sm:$0xff]
      %v1590 = vld [vmem:[#allocation3 + $0xd0] sm:$0xff]
      %v1591 = vld [vmem:[#allocation3 + $0xd8] sm:$0xff]
      %v1592 = vld [vmem:[#allocation3 + $0xe0] sm:$0xff]
      %v1593 = vld [vmem:[#allocation3 + $0xe8] sm:$0xff]
      %v1594 = vld [vmem:[#allocation3 + $0xf0] sm:$0xff]
      %v1595 = vld [vmem:[#allocation3 + $0xf8] sm:$0xff]
      %v1596 = vmul.f32 %v1149, %v1564
      %v1597 = vmul.f32 %v1151, %v1565
      %v1598 = vmul.f32 %v1153, %v1566
      %v1599 = vmul.f32 %v1155, %v1567
      %v1600 = vmul.f32 %v1157, %v1568
      %v1601 = vmul.f32 %v1159, %v1569
      %v1602 = vmul.f32 %v1161, %v1570
      %v1603 = vmul.f32 %v1163, %v1571
      %v1604 = vmul.f32 %v1165, %v1572
      %v1605 = vmul.f32 %v1167, %v1573
      %v1606 = vmul.f32 %v1169, %v1574
      %v1607 = vmul.f32 %v1171, %v1575
      %v1608 = vmul.f32 %v1173, %v1576
      %v1609 = vmul.f32 %v1175, %v1577
      %v1610 = vmul.f32 %v1177, %v1578
      %v1611 = vmul.f32 %v1179, %v1579
      %v1612 = vmul.f32 %v1181, %v1580
      %v1613 = vmul.f32 %v1183, %v1581
      %v1614 = vmul.f32 %v1185, %v1582
      %v1615 = vmul.f32 %v1187, %v1583
      %v1616 = vmul.f32 %v1189, %v1584
      %v1617 = vmul.f32 %v1191, %v1585
      %v1618 = vmul.f32 %v1193, %v1586
      %v1619 = vmul.f32 %v1195, %v1587
      %v1620 = vmul.f32 %v1197, %v1588
      %v1621 = vmul.f32 %v1199, %v1589
      %v1622 = vmul.f32 %v1201, %v1590
      %v1623 = vmul.f32 %v1203, %v1591
      %v1624 = vmul.f32 %v1205, %v1592
      %v1625 = vmul.f32 %v1207, %v1593
      %v1626 = vmul.f32 %v1209, %v1594
      %v1627 = vmul.f32 %v1211, %v1595
      %v1628 = vadd.f32 %v1437, %v1439
      %1629 = vadd.xlane.f32.xlu0 %v1628
      %v1630 = vpop.xlane.xlu0 %1629
      %v1631 = vadd.f32 %v1441, %v1443
      %1632 = vadd.xlane.f32.xlu0 %v1631
      %v1633 = vpop.xlane.xlu0 %1632
      %v1634 = vadd.f32 %v1445, %v1447
      %1635 = vadd.xlane.f32.xlu0 %v1634
      %v1636 = vpop.xlane.xlu0 %1635
      %v1637 = vadd.f32 %v1449, %v1451
      %1638 = vadd.xlane.f32.xlu0 %v1637
      %v1639 = vpop.xlane.xlu0 %1638
      %v1640 = vadd.f32 %v1453, %v1455
      %1641 = vadd.xlane.f32.xlu0 %v1640
      %v1642 = vpop.xlane.xlu0 %1641
      %v1643 = vadd.f32 %v1457, %v1459
      %1644 = vadd.xlane.f32.xlu0 %v1643
      %v1645 = vpop.xlane.xlu0 %1644
      %v1646 = vadd.f32 %v1461, %v1463
      %1647 = vadd.xlane.f32.xlu0 %v1646
      %v1648 = vpop.xlane.xlu0 %1647
      %v1649 = vadd.f32 %v1465, %v1467
      %1650 = vadd.xlane.f32.xlu0 %v1649
      %v1651 = vpop.xlane.xlu0 %1650
      %v1652 = vadd.f32 %v1469, %v1471
      %1653 = vadd.xlane.f32.xlu0 %v1652
      %v1654 = vpop.xlane.xlu0 %1653
      %v1655 = vadd.f32 %v1473, %v1475
      %1656 = vadd.xlane.f32.xlu0 %v1655
      %v1657 = vpop.xlane.xlu0 %1656
      %v1658 = vadd.f32 %v1477, %v1479
      %1659 = vadd.xlane.f32.xlu0 %v1658
      %v1660 = vpop.xlane.xlu0 %1659
      %v1661 = vadd.f32 %v1481, %v1483
      %1662 = vadd.xlane.f32.xlu0 %v1661
      %v1663 = vpop.xlane.xlu0 %1662
      %v1664 = vadd.f32 %v1485, %v1487
      %1665 = vadd.xlane.f32.xlu0 %v1664
      %v1666 = vpop.xlane.xlu0 %1665
      %v1667 = vadd.f32 %v1489, %v1491
      %1668 = vadd.xlane.f32.xlu0 %v1667
      %v1669 = vpop.xlane.xlu0 %1668
      %v1670 = vadd.f32 %v1493, %v1495
      %1671 = vadd.xlane.f32.xlu0 %v1670
      %v1672 = vpop.xlane.xlu0 %1671
      %v1673 = vadd.f32 %v1497, %v1499
      %1674 = vadd.xlane.f32.xlu0 %v1673
      %v1675 = vpop.xlane.xlu0 %1674
      %v1676 = vadd.f32 %v1501, %v1503
      %1677 = vadd.xlane.f32.xlu0 %v1676
      %v1678 = vpop.xlane.xlu0 %1677
      %v1679 = vadd.f32 %v1505, %v1507
      %1680 = vadd.xlane.f32.xlu0 %v1679
      %v1681 = vpop.xlane.xlu0 %1680
      %v1682 = vadd.f32 %v1509, %v1511
      %1683 = vadd.xlane.f32.xlu0 %v1682
      %v1684 = vpop.xlane.xlu0 %1683
      %v1685 = vadd.f32 %v1513, %v1515
      %1686 = vadd.xlane.f32.xlu0 %v1685
      %v1687 = vpop.xlane.xlu0 %1686
      %v1688 = vadd.f32 %v1517, %v1519
      %1689 = vadd.xlane.f32.xlu0 %v1688
      %v1690 = vpop.xlane.xlu0 %1689
      %v1691 = vadd.f32 %v1521, %v1523
      %1692 = vadd.xlane.f32.xlu0 %v1691
      %v1693 = vpop.xlane.xlu0 %1692
      %v1694 = vadd.f32 %v1525, %v1527
      %1695 = vadd.xlane.f32.xlu0 %v1694
      %v1696 = vpop.xlane.xlu0 %1695
      %v1697 = vadd.f32 %v1529, %v1531
      %1698 = vadd.xlane.f32.xlu0 %v1697
      %v1699 = vpop.xlane.xlu0 %1698
      %v1700 = vadd.f32 %v1533, %v1535
      %1701 = vadd.xlane.f32.xlu0 %v1700
      %v1702 = vpop.xlane.xlu0 %1701
      %v1703 = vadd.f32 %v1537, %v1539
      %1704 = vadd.xlane.f32.xlu0 %v1703
      %v1705 = vpop.xlane.xlu0 %1704
      %v1706 = vadd.f32 %v1541, %v1543
      %1707 = vadd.xlane.f32.xlu0 %v1706
      %v1708 = vpop.xlane.xlu0 %1707
      %v1709 = vadd.f32 %v1545, %v1547
      %1710 = vadd.xlane.f32.xlu0 %v1709
      %v1711 = vpop.xlane.xlu0 %1710
      %v1712 = vadd.f32 %v1549, %v1551
      %1713 = vadd.xlane.f32.xlu0 %v1712
      %v1714 = vpop.xlane.xlu0 %1713
      %v1715 = vadd.f32 %v1553, %v1555
      %1716 = vadd.xlane.f32.xlu0 %v1715
      %v1717 = vpop.xlane.xlu0 %1716
      %v1718 = vadd.f32 %v1557, %v1559
      %1719 = vadd.xlane.f32.xlu0 %v1718
      %v1720 = vpop.xlane.xlu0 %1719
      %v1721 = vadd.f32 %v1561, %v1563
      %1722 = vadd.xlane.f32.xlu0 %v1721
      %v1723 = vpop.xlane.xlu0 %1722
      %v1724 = vadd.f32 %v1596, %v1630
      %v1725 = vadd.f32 %v1597, %v1633
      %v1726 = vadd.f32 %v1598, %v1636
      %v1727 = vadd.f32 %v1599, %v1639
      %v1728 = vadd.f32 %v1600, %v1642
      %v1729 = vadd.f32 %v1601, %v1645
      %v1730 = vadd.f32 %v1602, %v1648
      %v1731 = vadd.f32 %v1603, %v1651
      %v1732 = vadd.f32 %v1604, %v1654
      %v1733 = vadd.f32 %v1605, %v1657
      %v1734 = vadd.f32 %v1606, %v1660
      %v1735 = vadd.f32 %v1607, %v1663
      %v1736 = vadd.f32 %v1608, %v1666
      %v1737 = vadd.f32 %v1609, %v1669
      %v1738 = vadd.f32 %v1610, %v1672
      %v1739 = vadd.f32 %v1611, %v1675
      %v1740 = vadd.f32 %v1612, %v1678
      %v1741 = vadd.f32 %v1613, %v1681
      %v1742 = vadd.f32 %v1614, %v1684
      %v1743 = vadd.f32 %v1615, %v1687
      %v1744 = vadd.f32 %v1616, %v1690
      %v1745 = vadd.f32 %v1617, %v1693
      %v1746 = vadd.f32 %v1618, %v1696
      %v1747 = vadd.f32 %v1619, %v1699
      %v1748 = vadd.f32 %v1620, %v1702
      %v1749 = vadd.f32 %v1621, %v1705
      %v1750 = vadd.f32 %v1622, %v1708
      %v1751 = vadd.f32 %v1623, %v1711
      %v1752 = vadd.f32 %v1624, %v1714
      %v1753 = vadd.f32 %v1625, %v1717
      %v1754 = vadd.f32 %v1626, %v1720
      %v1755 = vadd.f32 %v1627, %v1723
      %vm1756 = vcmask 7168
      %1757 = vst.msk [vmem:[#allocation3] sm:$0xff] %vm1756, %v1724
      %1758 = vst.msk [vmem:[#allocation3 + $0x8] sm:$0xff] %vm1756, %v1725
      %1759 = vst.msk [vmem:[#allocation3 + $0x10] sm:$0xff] %vm1756, %v1726
      %1760 = vst.msk [vmem:[#allocation3 + $0x18] sm:$0xff] %vm1756, %v1727
      %1761 = vst.msk [vmem:[#allocation3 + $0x20] sm:$0xff] %vm1756, %v1728
      %1762 = vst.msk [vmem:[#allocation3 + $0x28] sm:$0xff] %vm1756, %v1729
      %1763 = vst.msk [vmem:[#allocation3 + $0x30] sm:$0xff] %vm1756, %v1730
      %1764 = vst.msk [vmem:[#allocation3 + $0x38] sm:$0xff] %vm1756, %v1731
      %1765 = vst.msk [vmem:[#allocation3 + $0x40] sm:$0xff] %vm1756, %v1732
      %1766 = vst.msk [vmem:[#allocation3 + $0x48] sm:$0xff] %vm1756, %v1733
      %1767 = vst.msk [vmem:[#allocation3 + $0x50] sm:$0xff] %vm1756, %v1734
      %1768 = vst.msk [vmem:[#allocation3 + $0x58] sm:$0xff] %vm1756, %v1735
      %1769 = vst.msk [vmem:[#allocation3 + $0x60] sm:$0xff] %vm1756, %v1736
      %1770 = vst.msk [vmem:[#allocation3 + $0x68] sm:$0xff] %vm1756, %v1737
      %1771 = vst.msk [vmem:[#allocation3 + $0x70] sm:$0xff] %vm1756, %v1738
      %1772 = vst.msk [vmem:[#allocation3 + $0x78] sm:$0xff] %vm1756, %v1739
      %1773 = vst.msk [vmem:[#allocation3 + $0x80] sm:$0xff] %vm1756, %v1740
      %1774 = vst.msk [vmem:[#allocation3 + $0x88] sm:$0xff] %vm1756, %v1741
      %1775 = vst.msk [vmem:[#allocation3 + $0x90] sm:$0xff] %vm1756, %v1742
      %1776 = vst.msk [vmem:[#allocation3 + $0x98] sm:$0xff] %vm1756, %v1743
      %1777 = vst.msk [vmem:[#allocation3 + $0xa0] sm:$0xff] %vm1756, %v1744
      %1778 = vst.msk [vmem:[#allocation3 + $0xa8] sm:$0xff] %vm1756, %v1745
      %1779 = vst.msk [vmem:[#allocation3 + $0xb0] sm:$0xff] %vm1756, %v1746
      %1780 = vst.msk [vmem:[#allocation3 + $0xb8] sm:$0xff] %vm1756, %v1747
      %1781 = vst.msk [vmem:[#allocation3 + $0xc0] sm:$0xff] %vm1756, %v1748
      %1782 = vst.msk [vmem:[#allocation3 + $0xc8] sm:$0xff] %vm1756, %v1749
      %1783 = vst.msk [vmem:[#allocation3 + $0xd0] sm:$0xff] %vm1756, %v1750
      %1784 = vst.msk [vmem:[#allocation3 + $0xd8] sm:$0xff] %vm1756, %v1751
      %1785 = vst.msk [vmem:[#allocation3 + $0xe0] sm:$0xff] %vm1756, %v1752
      %1786 = vst.msk [vmem:[#allocation3 + $0xe8] sm:$0xff] %vm1756, %v1753
      %1787 = vst.msk [vmem:[#allocation3 + $0xf0] sm:$0xff] %vm1756, %v1754
      %1788 = vst.msk [vmem:[#allocation3 + $0xf8] sm:$0xff] %vm1756, %v1755
      %v1789 = vld [vmem:[#allocation4] sm:$0xff]
      %v1790 = vld [vmem:[#allocation4 + $0x8] sm:$0xff]
      %v1791 = vld [vmem:[#allocation4 + $0x10] sm:$0xff]
      %v1792 = vld [vmem:[#allocation4 + $0x18] sm:$0xff]
      %v1793 = vld [vmem:[#allocation4 + $0x20] sm:$0xff]
      %v1794 = vld [vmem:[#allocation4 + $0x28] sm:$0xff]
      %v1795 = vld [vmem:[#allocation4 + $0x30] sm:$0xff]
      %v1796 = vld [vmem:[#allocation4 + $0x38] sm:$0xff]
      %v1797 = vld [vmem:[#allocation4 + $0x40] sm:$0xff]
      %v1798 = vld [vmem:[#allocation4 + $0x48] sm:$0xff]
      %v1799 = vld [vmem:[#allocation4 + $0x50] sm:$0xff]
      %v1800 = vld [vmem:[#allocation4 + $0x58] sm:$0xff]
      %v1801 = vld [vmem:[#allocation4 + $0x60] sm:$0xff]
      %v1802 = vld [vmem:[#allocation4 + $0x68] sm:$0xff]
      %v1803 = vld [vmem:[#allocation4 + $0x70] sm:$0xff]
      %v1804 = vld [vmem:[#allocation4 + $0x78] sm:$0xff]
      %v1805 = vld [vmem:[#allocation4 + $0x80] sm:$0xff]
      %v1806 = vld [vmem:[#allocation4 + $0x88] sm:$0xff]
      %v1807 = vld [vmem:[#allocation4 + $0x90] sm:$0xff]
      %v1808 = vld [vmem:[#allocation4 + $0x98] sm:$0xff]
      %v1809 = vld [vmem:[#allocation4 + $0xa0] sm:$0xff]
      %v1810 = vld [vmem:[#allocation4 + $0xa8] sm:$0xff]
      %v1811 = vld [vmem:[#allocation4 + $0xb0] sm:$0xff]
      %v1812 = vld [vmem:[#allocation4 + $0xb8] sm:$0xff]
      %v1813 = vld [vmem:[#allocation4 + $0xc0] sm:$0xff]
      %v1814 = vld [vmem:[#allocation4 + $0xc8] sm:$0xff]
      %v1815 = vld [vmem:[#allocation4 + $0xd0] sm:$0xff]
      %v1816 = vld [vmem:[#allocation4 + $0xd8] sm:$0xff]
      %v1817 = vld [vmem:[#allocation4 + $0xe0] sm:$0xff]
      %v1818 = vld [vmem:[#allocation4 + $0xe8] sm:$0xff]
      %v1819 = vld [vmem:[#allocation4 + $0xf0] sm:$0xff]
      %v1820 = vld [vmem:[#allocation4 + $0xf8] sm:$0xff]
      %1822 = vset.pattern.permute.xlu0 0
      %1823 = vperm.xlu0 %1822, %v1149
      %v1824 = vpop.permute.xlu0 %1823
      %1827 = vset.pattern.permute.xlu0 0
      %1828 = vperm.xlu0 %1827, %v1151
      %v1829 = vpop.permute.xlu0 %1828
      %1832 = vset.pattern.permute.xlu0 0
      %1833 = vperm.xlu0 %1832, %v1153
      %v1834 = vpop.permute.xlu0 %1833
      %1837 = vset.pattern.permute.xlu0 0
      %1838 = vperm.xlu0 %1837, %v1155
      %v1839 = vpop.permute.xlu0 %1838
      %1842 = vset.pattern.permute.xlu0 0
      %1843 = vperm.xlu0 %1842, %v1157
      %v1844 = vpop.permute.xlu0 %1843
      %1847 = vset.pattern.permute.xlu0 0
      %1848 = vperm.xlu0 %1847, %v1159
      %v1849 = vpop.permute.xlu0 %1848
      %1852 = vset.pattern.permute.xlu0 0
      %1853 = vperm.xlu0 %1852, %v1161
      %v1854 = vpop.permute.xlu0 %1853
      %1857 = vset.pattern.permute.xlu0 0
      %1858 = vperm.xlu0 %1857, %v1163
      %v1859 = vpop.permute.xlu0 %1858
      %1862 = vset.pattern.permute.xlu0 0
      %1863 = vperm.xlu0 %1862, %v1165
      %v1864 = vpop.permute.xlu0 %1863
      %1867 = vset.pattern.permute.xlu0 0
      %1868 = vperm.xlu0 %1867, %v1167
      %v1869 = vpop.permute.xlu0 %1868
      %1872 = vset.pattern.permute.xlu0 0
      %1873 = vperm.xlu0 %1872, %v1169
      %v1874 = vpop.permute.xlu0 %1873
      %1877 = vset.pattern.permute.xlu0 0
      %1878 = vperm.xlu0 %1877, %v1171
      %v1879 = vpop.permute.xlu0 %1878
      %1882 = vset.pattern.permute.xlu0 0
      %1883 = vperm.xlu0 %1882, %v1173
      %v1884 = vpop.permute.xlu0 %1883
      %1887 = vset.pattern.permute.xlu0 0
      %1888 = vperm.xlu0 %1887, %v1175
      %v1889 = vpop.permute.xlu0 %1888
      %1892 = vset.pattern.permute.xlu0 0
      %1893 = vperm.xlu0 %1892, %v1177
      %v1894 = vpop.permute.xlu0 %1893
      %1897 = vset.pattern.permute.xlu0 0
      %1898 = vperm.xlu0 %1897, %v1179
      %v1899 = vpop.permute.xlu0 %1898
      %1902 = vset.pattern.permute.xlu0 0
      %1903 = vperm.xlu0 %1902, %v1181
      %v1904 = vpop.permute.xlu0 %1903
      %1907 = vset.pattern.permute.xlu0 0
      %1908 = vperm.xlu0 %1907, %v1183
      %v1909 = vpop.permute.xlu0 %1908
      %1912 = vset.pattern.permute.xlu0 0
      %1913 = vperm.xlu0 %1912, %v1185
      %v1914 = vpop.permute.xlu0 %1913
      %1917 = vset.pattern.permute.xlu0 0
      %1918 = vperm.xlu0 %1917, %v1187
      %v1919 = vpop.permute.xlu0 %1918
      %1922 = vset.pattern.permute.xlu0 0
      %1923 = vperm.xlu0 %1922, %v1189
      %v1924 = vpop.permute.xlu0 %1923
      %1927 = vset.pattern.permute.xlu0 0
      %1928 = vperm.xlu0 %1927, %v1191
      %v1929 = vpop.permute.xlu0 %1928
      %1932 = vset.pattern.permute.xlu0 0
      %1933 = vperm.xlu0 %1932, %v1193
      %v1934 = vpop.permute.xlu0 %1933
      %1937 = vset.pattern.permute.xlu0 0
      %1938 = vperm.xlu0 %1937, %v1195
      %v1939 = vpop.permute.xlu0 %1938
      %1942 = vset.pattern.permute.xlu0 0
      %1943 = vperm.xlu0 %1942, %v1197
      %v1944 = vpop.permute.xlu0 %1943
      %1947 = vset.pattern.permute.xlu0 0
      %1948 = vperm.xlu0 %1947, %v1199
      %v1949 = vpop.permute.xlu0 %1948
      %1952 = vset.pattern.permute.xlu0 0
      %1953 = vperm.xlu0 %1952, %v1201
      %v1954 = vpop.permute.xlu0 %1953
      %1957 = vset.pattern.permute.xlu0 0
      %1958 = vperm.xlu0 %1957, %v1203
      %v1959 = vpop.permute.xlu0 %1958
      %1962 = vset.pattern.permute.xlu0 0
      %1963 = vperm.xlu0 %1962, %v1205
      %v1964 = vpop.permute.xlu0 %1963
      %1967 = vset.pattern.permute.xlu0 0
      %1968 = vperm.xlu0 %1967, %v1207
      %v1969 = vpop.permute.xlu0 %1968
      %1972 = vset.pattern.permute.xlu0 0
      %1973 = vperm.xlu0 %1972, %v1209
      %v1974 = vpop.permute.xlu0 %1973
      %1977 = vset.pattern.permute.xlu0 0
      %1978 = vperm.xlu0 %1977, %v1211
      %v1979 = vpop.permute.xlu0 %1978
      %v1981 = vmul.f32 %v1824, %v1789
      %v1982 = vmul.f32 %v1829, %v1790
      %v1983 = vmul.f32 %v1834, %v1791
      %v1984 = vmul.f32 %v1839, %v1792
      %v1985 = vmul.f32 %v1844, %v1793
      %v1986 = vmul.f32 %v1849, %v1794
      %v1987 = vmul.f32 %v1854, %v1795
      %v1988 = vmul.f32 %v1859, %v1796
      %v1989 = vmul.f32 %v1864, %v1797
      %v1990 = vmul.f32 %v1869, %v1798
      %v1991 = vmul.f32 %v1874, %v1799
      %v1992 = vmul.f32 %v1879, %v1800
      %v1993 = vmul.f32 %v1884, %v1801
      %v1994 = vmul.f32 %v1889, %v1802
      %v1995 = vmul.f32 %v1894, %v1803
      %v1996 = vmul.f32 %v1899, %v1804
      %v1997 = vmul.f32 %v1904, %v1805
      %v1998 = vmul.f32 %v1909, %v1806
      %v1999 = vmul.f32 %v1914, %v1807
      %v2000 = vmul.f32 %v1919, %v1808
      %v2001 = vmul.f32 %v1924, %v1809
      %v2002 = vmul.f32 %v1929, %v1810
      %v2003 = vmul.f32 %v1934, %v1811
      %v2004 = vmul.f32 %v1939, %v1812
      %v2005 = vmul.f32 %v1944, %v1813
      %v2006 = vmul.f32 %v1949, %v1814
      %v2007 = vmul.f32 %v1954, %v1815
      %v2008 = vmul.f32 %v1959, %v1816
      %v2009 = vmul.f32 %v1964, %v1817
      %v2010 = vmul.f32 %v1969, %v1818
      %v2011 = vmul.f32 %v1974, %v1819
      %v2012 = vmul.f32 %v1979, %v1820
      %v2013 = vpack.c.bf16 %v1441, %v1437
      %v2014 = vpack.c.bf16 %v1443, %v1439
      %v2015 = vpack.c.bf16 %v1449, %v1445
      %v2016 = vpack.c.bf16 %v1451, %v1447
      %v2017 = vpack.c.bf16 %v1457, %v1453
      %v2018 = vpack.c.bf16 %v1459, %v1455
      %v2019 = vpack.c.bf16 %v1465, %v1461
      %v2020 = vpack.c.bf16 %v1467, %v1463
      %v2021 = vpack.c.bf16 %v1473, %v1469
      %v2022 = vpack.c.bf16 %v1475, %v1471
      %v2023 = vpack.c.bf16 %v1481, %v1477
      %v2024 = vpack.c.bf16 %v1483, %v1479
      %v2025 = vpack.c.bf16 %v1489, %v1485
      %v2026 = vpack.c.bf16 %v1491, %v1487
      %v2027 = vpack.c.bf16 %v1497, %v1493
      %v2028 = vpack.c.bf16 %v1499, %v1495
      %v2029 = vpack.c.bf16 %v1505, %v1501
      %v2030 = vpack.c.bf16 %v1507, %v1503
      %v2031 = vpack.c.bf16 %v1513, %v1509
      %v2032 = vpack.c.bf16 %v1515, %v1511
      %v2033 = vpack.c.bf16 %v1521, %v1517
      %v2034 = vpack.c.bf16 %v1523, %v1519
      %v2035 = vpack.c.bf16 %v1529, %v1525
      %v2036 = vpack.c.bf16 %v1531, %v1527
      %v2037 = vpack.c.bf16 %v1537, %v1533
      %v2038 = vpack.c.bf16 %v1539, %v1535
      %v2039 = vpack.c.bf16 %v1545, %v1541
      %v2040 = vpack.c.bf16 %v1547, %v1543
      %v2041 = vpack.c.bf16 %v1553, %v1549
      %v2042 = vpack.c.bf16 %v1555, %v1551
      %v2043 = vpack.c.bf16 %v1561, %v1557
      %v2044 = vpack.c.bf16 %v1563, %v1559
      %v2077 = vunpack.c.l.b16 %v554
      %v2078 = vunpack.c.l.b16 %v555
      %v2079 = vunpack.c.l.b16 %v556
      %v2080 = vunpack.c.l.b16 %v557
      %v2081 = vunpack.c.l.b16 %v558
      %v2082 = vunpack.c.l.b16 %v559
      %v2083 = vunpack.c.l.b16 %v560
      %v2084 = vunpack.c.l.b16 %v561
      %v2085 = vunpack.c.l.b16 %v562
      %v2086 = vunpack.c.l.b16 %v563
      %v2087 = vunpack.c.l.b16 %v564
      %v2088 = vunpack.c.l.b16 %v565
      %v2089 = vunpack.c.l.b16 %v566
      %v2090 = vunpack.c.l.b16 %v567
      %v2091 = vunpack.c.l.b16 %v568
      %v2092 = vunpack.c.l.b16 %v569
      %v2093 = vunpack.c.l.b16 %v570
      %v2094 = vunpack.c.l.b16 %v571
      %v2095 = vunpack.c.l.b16 %v572
      %v2096 = vunpack.c.l.b16 %v573
      %v2097 = vunpack.c.l.b16 %v574
      %v2098 = vunpack.c.l.b16 %v575
      %v2099 = vunpack.c.l.b16 %v576
      %v2100 = vunpack.c.l.b16 %v577
      %v2101 = vunpack.c.l.b16 %v578
      %v2102 = vunpack.c.l.b16 %v579
      %v2103 = vunpack.c.l.b16 %v580
      %v2104 = vunpack.c.l.b16 %v581
      %v2105 = vunpack.c.l.b16 %v582
      %v2106 = vunpack.c.l.b16 %v583
      %v2107 = vunpack.c.l.b16 %v584
      %v2108 = vunpack.c.l.b16 %v585
      %v2109 = vpack.c.b16 %v2078, %v2077
      %v2110 = vpack.c.b16 %v2080, %v2079
      %v2111 = vpack.c.b16 %v2082, %v2081
      %v2112 = vpack.c.b16 %v2084, %v2083
      %v2113 = vpack.c.b16 %v2086, %v2085
      %v2114 = vpack.c.b16 %v2088, %v2087
      %v2115 = vpack.c.b16 %v2090, %v2089
      %v2116 = vpack.c.b16 %v2092, %v2091
      %v2117 = vpack.c.b16 %v2094, %v2093
      %v2118 = vpack.c.b16 %v2096, %v2095
      %v2119 = vpack.c.b16 %v2098, %v2097
      %v2120 = vpack.c.b16 %v2100, %v2099
      %v2121 = vpack.c.b16 %v2102, %v2101
      %v2122 = vpack.c.b16 %v2104, %v2103
      %v2123 = vpack.c.b16 %v2106, %v2105
      %v2124 = vpack.c.b16 %v2108, %v2107
      %2141 = vmatpush.bf16.msra.mxu0 %v2116
      %2142 = vmatpush.bf16.msra.mxu0 %v2115
      %2143 = vmatpush.bf16.msra.mxu0 %v2114
      %2144 = vmatpush.bf16.msra.mxu0 %v2113
      %2145 = vmatpush.bf16.msra.mxu0 %v2112
      %2146 = vmatpush.bf16.msra.mxu0 %v2111
      %2147 = vmatpush.bf16.msra.mxu0 %v2110
      %2148 = vmatpush.bf16.msra.mxu0 %v2109
      %2149 = vmatmul.bf16.gmra.mxu0 %v2013
      %v2150 = vpop.f32.mrf.mxu0
      %v2151 = vadd.f32 0.0, %v2150
      %v2152 = vpop.f32.mrf.mxu0
      %v2153 = vadd.f32 0.0, %v2152
      %2154 = vmatmul.bf16.gmra.mxu0 %v2015
      %v2155 = vpop.f32.mrf.mxu0
      %v2156 = vadd.f32 0.0, %v2155
      %v2157 = vpop.f32.mrf.mxu0
      %v2158 = vadd.f32 0.0, %v2157
      %2159 = vmatmul.bf16.gmra.mxu0 %v2017
      %v2160 = vpop.f32.mrf.mxu0
      %v2161 = vadd.f32 0.0, %v2160
      %v2162 = vpop.f32.mrf.mxu0
      %v2163 = vadd.f32 0.0, %v2162
      %2164 = vmatmul.bf16.gmra.mxu0 %v2019
      %v2165 = vpop.f32.mrf.mxu0
      %v2166 = vadd.f32 0.0, %v2165
      %v2167 = vpop.f32.mrf.mxu0
      %v2168 = vadd.f32 0.0, %v2167
      %2169 = vmatmul.bf16.gmra.mxu0 %v2021
      %v2170 = vpop.f32.mrf.mxu0
      %v2171 = vadd.f32 0.0, %v2170
      %v2172 = vpop.f32.mrf.mxu0
      %v2173 = vadd.f32 0.0, %v2172
      %2174 = vmatmul.bf16.gmra.mxu0 %v2023
      %v2175 = vpop.f32.mrf.mxu0
      %v2176 = vadd.f32 0.0, %v2175
      %v2177 = vpop.f32.mrf.mxu0
      %v2178 = vadd.f32 0.0, %v2177
      %2179 = vmatmul.bf16.gmra.mxu0 %v2025
      %v2180 = vpop.f32.mrf.mxu0
      %v2181 = vadd.f32 0.0, %v2180
      %v2182 = vpop.f32.mrf.mxu0
      %v2183 = vadd.f32 0.0, %v2182
      %2184 = vmatmul.bf16.gmra.mxu0 %v2027
      %v2185 = vpop.f32.mrf.mxu0
      %v2186 = vadd.f32 0.0, %v2185
      %v2187 = vpop.f32.mrf.mxu0
      %v2188 = vadd.f32 0.0, %v2187
      %2189 = vmatmul.bf16.gmra.mxu0 %v2029
      %v2190 = vpop.f32.mrf.mxu0
      %v2191 = vadd.f32 0.0, %v2190
      %v2192 = vpop.f32.mrf.mxu0
      %v2193 = vadd.f32 0.0, %v2192
      %2194 = vmatmul.bf16.gmra.mxu0 %v2031
      %v2195 = vpop.f32.mrf.mxu0
      %v2196 = vadd.f32 0.0, %v2195
      %v2197 = vpop.f32.mrf.mxu0
      %v2198 = vadd.f32 0.0, %v2197
      %2199 = vmatmul.bf16.gmra.mxu0 %v2033
      %v2200 = vpop.f32.mrf.mxu0
      %v2201 = vadd.f32 0.0, %v2200
      %v2202 = vpop.f32.mrf.mxu0
      %v2203 = vadd.f32 0.0, %v2202
      %2204 = vmatmul.bf16.gmra.mxu0 %v2035
      %v2205 = vpop.f32.mrf.mxu0
      %v2206 = vadd.f32 0.0, %v2205
      %v2207 = vpop.f32.mrf.mxu0
      %v2208 = vadd.f32 0.0, %v2207
      %2209 = vmatmul.bf16.gmra.mxu0 %v2037
      %v2210 = vpop.f32.mrf.mxu0
      %v2211 = vadd.f32 0.0, %v2210
      %v2212 = vpop.f32.mrf.mxu0
      %v2213 = vadd.f32 0.0, %v2212
      %2214 = vmatmul.bf16.gmra.mxu0 %v2039
      %v2215 = vpop.f32.mrf.mxu0
      %v2216 = vadd.f32 0.0, %v2215
      %v2217 = vpop.f32.mrf.mxu0
      %v2218 = vadd.f32 0.0, %v2217
      %2219 = vmatmul.bf16.gmra.mxu0 %v2041
      %v2220 = vpop.f32.mrf.mxu0
      %v2221 = vadd.f32 0.0, %v2220
      %v2222 = vpop.f32.mrf.mxu0
      %v2223 = vadd.f32 0.0, %v2222
      %2224 = vmatmul.bf16.gmra.mxu0 %v2043
      %v2225 = vpop.f32.mrf.mxu0
      %v2226 = vadd.f32 0.0, %v2225
      %v2227 = vpop.f32.mrf.mxu0
      %v2228 = vadd.f32 0.0, %v2227
      %2229 = vdwg.mxu0
      %2230 = vmatpush.bf16.msra.mxu0 %v2124
      %2231 = vmatpush.bf16.msra.mxu0 %v2123
      %2232 = vmatpush.bf16.msra.mxu0 %v2122
      %2233 = vmatpush.bf16.msra.mxu0 %v2121
      %2234 = vmatpush.bf16.msra.mxu0 %v2120
      %2235 = vmatpush.bf16.msra.mxu0 %v2119
      %2236 = vmatpush.bf16.msra.mxu0 %v2118
      %2237 = vmatpush.bf16.msra.mxu0 %v2117
      %2238 = vmatmul.bf16.gmra.mxu0 %v2014
      %v2239 = vpop.f32.mrf.mxu0
      %v2240 = vadd.f32 %v2151, %v2239
      %v2241 = vpop.f32.mrf.mxu0
      %v2242 = vadd.f32 %v2153, %v2241
      %2243 = vmatmul.bf16.gmra.mxu0 %v2016
      %v2244 = vpop.f32.mrf.mxu0
      %v2245 = vadd.f32 %v2156, %v2244
      %v2246 = vpop.f32.mrf.mxu0
      %v2247 = vadd.f32 %v2158, %v2246
      %2248 = vmatmul.bf16.gmra.mxu0 %v2018
      %v2249 = vpop.f32.mrf.mxu0
      %v2250 = vadd.f32 %v2161, %v2249
      %v2251 = vpop.f32.mrf.mxu0
      %v2252 = vadd.f32 %v2163, %v2251
      %2253 = vmatmul.bf16.gmra.mxu0 %v2020
      %v2254 = vpop.f32.mrf.mxu0
      %v2255 = vadd.f32 %v2166, %v2254
      %v2256 = vpop.f32.mrf.mxu0
      %v2257 = vadd.f32 %v2168, %v2256
      %2258 = vmatmul.bf16.gmra.mxu0 %v2022
      %v2259 = vpop.f32.mrf.mxu0
      %v2260 = vadd.f32 %v2171, %v2259
      %v2261 = vpop.f32.mrf.mxu0
      %v2262 = vadd.f32 %v2173, %v2261
      %2263 = vmatmul.bf16.gmra.mxu0 %v2024
      %v2264 = vpop.f32.mrf.mxu0
      %v2265 = vadd.f32 %v2176, %v2264
      %v2266 = vpop.f32.mrf.mxu0
      %v2267 = vadd.f32 %v2178, %v2266
      %2268 = vmatmul.bf16.gmra.mxu0 %v2026
      %v2269 = vpop.f32.mrf.mxu0
      %v2270 = vadd.f32 %v2181, %v2269
      %v2271 = vpop.f32.mrf.mxu0
      %v2272 = vadd.f32 %v2183, %v2271
      %2273 = vmatmul.bf16.gmra.mxu0 %v2028
      %v2274 = vpop.f32.mrf.mxu0
      %v2275 = vadd.f32 %v2186, %v2274
      %v2276 = vpop.f32.mrf.mxu0
      %v2277 = vadd.f32 %v2188, %v2276
      %2278 = vmatmul.bf16.gmra.mxu0 %v2030
      %v2279 = vpop.f32.mrf.mxu0
      %v2280 = vadd.f32 %v2191, %v2279
      %v2281 = vpop.f32.mrf.mxu0
      %v2282 = vadd.f32 %v2193, %v2281
      %2283 = vmatmul.bf16.gmra.mxu0 %v2032
      %v2284 = vpop.f32.mrf.mxu0
      %v2285 = vadd.f32 %v2196, %v2284
      %v2286 = vpop.f32.mrf.mxu0
      %v2287 = vadd.f32 %v2198, %v2286
      %2288 = vmatmul.bf16.gmra.mxu0 %v2034
      %v2289 = vpop.f32.mrf.mxu0
      %v2290 = vadd.f32 %v2201, %v2289
      %v2291 = vpop.f32.mrf.mxu0
      %v2292 = vadd.f32 %v2203, %v2291
      %2293 = vmatmul.bf16.gmra.mxu0 %v2036
      %v2294 = vpop.f32.mrf.mxu0
      %v2295 = vadd.f32 %v2206, %v2294
      %v2296 = vpop.f32.mrf.mxu0
      %v2297 = vadd.f32 %v2208, %v2296
      %2298 = vmatmul.bf16.gmra.mxu0 %v2038
      %v2299 = vpop.f32.mrf.mxu0
      %v2300 = vadd.f32 %v2211, %v2299
      %v2301 = vpop.f32.mrf.mxu0
      %v2302 = vadd.f32 %v2213, %v2301
      %2303 = vmatmul.bf16.gmra.mxu0 %v2040
      %v2304 = vpop.f32.mrf.mxu0
      %v2305 = vadd.f32 %v2216, %v2304
      %v2306 = vpop.f32.mrf.mxu0
      %v2307 = vadd.f32 %v2218, %v2306
      %2308 = vmatmul.bf16.gmra.mxu0 %v2042
      %v2309 = vpop.f32.mrf.mxu0
      %v2310 = vadd.f32 %v2221, %v2309
      %v2311 = vpop.f32.mrf.mxu0
      %v2312 = vadd.f32 %v2223, %v2311
      %2313 = vmatmul.bf16.gmra.mxu0 %v2044
      %v2314 = vpop.f32.mrf.mxu0
      %v2315 = vadd.f32 %v2226, %v2314
      %v2316 = vpop.f32.mrf.mxu0
      %v2317 = vadd.f32 %v2228, %v2316
      %2318 = vdwg.mxu0
      %v2319 = vadd.f32 %v1981, %v2240
      %v2320 = vadd.f32 %v1982, %v2242
      %v2321 = vadd.f32 %v1983, %v2245
      %v2322 = vadd.f32 %v1984, %v2247
      %v2323 = vadd.f32 %v1985, %v2250
      %v2324 = vadd.f32 %v1986, %v2252
      %v2325 = vadd.f32 %v1987, %v2255
      %v2326 = vadd.f32 %v1988, %v2257
      %v2327 = vadd.f32 %v1989, %v2260
      %v2328 = vadd.f32 %v1990, %v2262
      %v2329 = vadd.f32 %v1991, %v2265
      %v2330 = vadd.f32 %v1992, %v2267
      %v2331 = vadd.f32 %v1993, %v2270
      %v2332 = vadd.f32 %v1994, %v2272
      %v2333 = vadd.f32 %v1995, %v2275
      %v2334 = vadd.f32 %v1996, %v2277
      %v2335 = vadd.f32 %v1997, %v2280
      %v2336 = vadd.f32 %v1998, %v2282
      %v2337 = vadd.f32 %v1999, %v2285
      %v2338 = vadd.f32 %v2000, %v2287
      %v2339 = vadd.f32 %v2001, %v2290
      %v2340 = vadd.f32 %v2002, %v2292
      %v2341 = vadd.f32 %v2003, %v2295
      %v2342 = vadd.f32 %v2004, %v2297
      %v2343 = vadd.f32 %v2005, %v2300
      %v2344 = vadd.f32 %v2006, %v2302
      %v2345 = vadd.f32 %v2007, %v2305
      %v2346 = vadd.f32 %v2008, %v2307
      %v2347 = vadd.f32 %v2009, %v2310
      %v2348 = vadd.f32 %v2010, %v2312
      %v2349 = vadd.f32 %v2011, %v2315
      %v2350 = vadd.f32 %v2012, %v2317
      %2351 = vst [vmem:[#allocation4] sm:$0xff] %v2319
      %2352 = vst [vmem:[#allocation4 + $0x8] sm:$0xff] %v2320
      %2353 = vst [vmem:[#allocation4 + $0x10] sm:$0xff] %v2321
      %2354 = vst [vmem:[#allocation4 + $0x18] sm:$0xff] %v2322
      %2355 = vst [vmem:[#allocation4 + $0x20] sm:$0xff] %v2323
      %2356 = vst [vmem:[#allocation4 + $0x28] sm:$0xff] %v2324
      %2357 = vst [vmem:[#allocation4 + $0x30] sm:$0xff] %v2325
      %2358 = vst [vmem:[#allocation4 + $0x38] sm:$0xff] %v2326
      %2359 = vst [vmem:[#allocation4 + $0x40] sm:$0xff] %v2327
      %2360 = vst [vmem:[#allocation4 + $0x48] sm:$0xff] %v2328
      %2361 = vst [vmem:[#allocation4 + $0x50] sm:$0xff] %v2329
      %2362 = vst [vmem:[#allocation4 + $0x58] sm:$0xff] %v2330
      %2363 = vst [vmem:[#allocation4 + $0x60] sm:$0xff] %v2331
      %2364 = vst [vmem:[#allocation4 + $0x68] sm:$0xff] %v2332
      %2365 = vst [vmem:[#allocation4 + $0x70] sm:$0xff] %v2333
      %2366 = vst [vmem:[#allocation4 + $0x78] sm:$0xff] %v2334
      %2367 = vst [vmem:[#allocation4 + $0x80] sm:$0xff] %v2335
      %2368 = vst [vmem:[#allocation4 + $0x88] sm:$0xff] %v2336
      %2369 = vst [vmem:[#allocation4 + $0x90] sm:$0xff] %v2337
      %2370 = vst [vmem:[#allocation4 + $0x98] sm:$0xff] %v2338
      %2371 = vst [vmem:[#allocation4 + $0xa0] sm:$0xff] %v2339
      %2372 = vst [vmem:[#allocation4 + $0xa8] sm:$0xff] %v2340
      %2373 = vst [vmem:[#allocation4 + $0xb0] sm:$0xff] %v2341
      %2374 = vst [vmem:[#allocation4 + $0xb8] sm:$0xff] %v2342
      %2375 = vst [vmem:[#allocation4 + $0xc0] sm:$0xff] %v2343
      %2376 = vst [vmem:[#allocation4 + $0xc8] sm:$0xff] %v2344
      %2377 = vst [vmem:[#allocation4 + $0xd0] sm:$0xff] %v2345
      %2378 = vst [vmem:[#allocation4 + $0xd8] sm:$0xff] %v2346
      %2379 = vst [vmem:[#allocation4 + $0xe0] sm:$0xff] %v2347
      %2380 = vst [vmem:[#allocation4 + $0xe8] sm:$0xff] %v2348
      %2381 = vst [vmem:[#allocation4 + $0xf0] sm:$0xff] %v2349
      %2382 = vst [vmem:[#allocation4 + $0xf8] sm:$0xff] %v2350
      %2383 = vst.msk [vmem:[#allocation2] sm:$0xff] %vm1756, %v1084
      %2384 = vst.msk [vmem:[#allocation2 + $0x8] sm:$0xff] %vm1756, %v1085
      %2385 = vst.msk [vmem:[#allocation2 + $0x10] sm:$0xff] %vm1756, %v1086
      %2386 = vst.msk [vmem:[#allocation2 + $0x18] sm:$0xff] %vm1756, %v1087
      %2387 = vst.msk [vmem:[#allocation2 + $0x20] sm:$0xff] %vm1756, %v1088
      %2388 = vst.msk [vmem:[#allocation2 + $0x28] sm:$0xff] %vm1756, %v1089
      %2389 = vst.msk [vmem:[#allocation2 + $0x30] sm:$0xff] %vm1756, %v1090
      %2390 = vst.msk [vmem:[#allocation2 + $0x38] sm:$0xff] %vm1756, %v1091
      %2391 = vst.msk [vmem:[#allocation2 + $0x40] sm:$0xff] %vm1756, %v1092
      %2392 = vst.msk [vmem:[#allocation2 + $0x48] sm:$0xff] %vm1756, %v1093
      %2393 = vst.msk [vmem:[#allocation2 + $0x50] sm:$0xff] %vm1756, %v1094
      %2394 = vst.msk [vmem:[#allocation2 + $0x58] sm:$0xff] %vm1756, %v1095
      %2395 = vst.msk [vmem:[#allocation2 + $0x60] sm:$0xff] %vm1756, %v1096
      %2396 = vst.msk [vmem:[#allocation2 + $0x68] sm:$0xff] %vm1756, %v1097
      %2397 = vst.msk [vmem:[#allocation2 + $0x70] sm:$0xff] %vm1756, %v1098
      %2398 = vst.msk [vmem:[#allocation2 + $0x78] sm:$0xff] %vm1756, %v1099
      %2399 = vst.msk [vmem:[#allocation2 + $0x80] sm:$0xff] %vm1756, %v1100
      %2400 = vst.msk [vmem:[#allocation2 + $0x88] sm:$0xff] %vm1756, %v1101
      %2401 = vst.msk [vmem:[#allocation2 + $0x90] sm:$0xff] %vm1756, %v1102
      %2402 = vst.msk [vmem:[#allocation2 + $0x98] sm:$0xff] %vm1756, %v1103
      %2403 = vst.msk [vmem:[#allocation2 + $0xa0] sm:$0xff] %vm1756, %v1104
      %2404 = vst.msk [vmem:[#allocation2 + $0xa8] sm:$0xff] %vm1756, %v1105
      %2405 = vst.msk [vmem:[#allocation2 + $0xb0] sm:$0xff] %vm1756, %v1106
      %2406 = vst.msk [vmem:[#allocation2 + $0xb8] sm:$0xff] %vm1756, %v1107
      %2407 = vst.msk [vmem:[#allocation2 + $0xc0] sm:$0xff] %vm1756, %v1108
      %2408 = vst.msk [vmem:[#allocation2 + $0xc8] sm:$0xff] %vm1756, %v1109
      %2409 = vst.msk [vmem:[#allocation2 + $0xd0] sm:$0xff] %vm1756, %v1110
      %2410 = vst.msk [vmem:[#allocation2 + $0xd8] sm:$0xff] %vm1756, %v1111
      %2411 = vst.msk [vmem:[#allocation2 + $0xe0] sm:$0xff] %vm1756, %v1112
      %2412 = vst.msk [vmem:[#allocation2 + $0xe8] sm:$0xff] %vm1756, %v1113
      %2413 = vst.msk [vmem:[#allocation2 + $0xf0] sm:$0xff] %vm1756, %v1114
      %2414 = vst.msk [vmem:[#allocation2 + $0xf8] sm:$0xff] %vm1756, %v1115
      // Predicated region
      $region45: #{nonlocal_block.4} parent=39 // pred_check
        %p2415 = pneg %p389
      $region46: #{nonlocal_block.4} parent=39 // pred_check_branch
        %2417 = sbr.rel (%p2415) target = $region48
      $region47: #{nonlocal_block.4} parent=39 // pred_region
        %v2418 = vld [vmem:[#allocation4] sm:$0xff]
        %v2419 = vld [vmem:[#allocation4 + $0x8] sm:$0xff]
        %v2420 = vld [vmem:[#allocation4 + $0x10] sm:$0xff]
        %v2421 = vld [vmem:[#allocation4 + $0x18] sm:$0xff]
        %v2422 = vld [vmem:[#allocation4 + $0x20] sm:$0xff]
        %v2423 = vld [vmem:[#allocation4 + $0x28] sm:$0xff]
        %v2424 = vld [vmem:[#allocation4 + $0x30] sm:$0xff]
        %v2425 = vld [vmem:[#allocation4 + $0x38] sm:$0xff]
        %v2426 = vld [vmem:[#allocation4 + $0x40] sm:$0xff]
        %v2427 = vld [vmem:[#allocation4 + $0x48] sm:$0xff]
        %v2428 = vld [vmem:[#allocation4 + $0x50] sm:$0xff]
        %v2429 = vld [vmem:[#allocation4 + $0x58] sm:$0xff]
        %v2430 = vld [vmem:[#allocation4 + $0x60] sm:$0xff]
        %v2431 = vld [vmem:[#allocation4 + $0x68] sm:$0xff]
        %v2432 = vld [vmem:[#allocation4 + $0x70] sm:$0xff]
        %v2433 = vld [vmem:[#allocation4 + $0x78] sm:$0xff]
        %v2434 = vld [vmem:[#allocation4 + $0x80] sm:$0xff]
        %v2435 = vld [vmem:[#allocation4 + $0x88] sm:$0xff]
        %v2436 = vld [vmem:[#allocation4 + $0x90] sm:$0xff]
        %v2437 = vld [vmem:[#allocation4 + $0x98] sm:$0xff]
        %v2438 = vld [vmem:[#allocation4 + $0xa0] sm:$0xff]
        %v2439 = vld [vmem:[#allocation4 + $0xa8] sm:$0xff]
        %v2440 = vld [vmem:[#allocation4 + $0xb0] sm:$0xff]
        %v2441 = vld [vmem:[#allocation4 + $0xb8] sm:$0xff]
        %v2442 = vld [vmem:[#allocation4 + $0xc0] sm:$0xff]
        %v2443 = vld [vmem:[#allocation4 + $0xc8] sm:$0xff]
        %v2444 = vld [vmem:[#allocation4 + $0xd0] sm:$0xff]
        %v2445 = vld [vmem:[#allocation4 + $0xd8] sm:$0xff]
        %v2446 = vld [vmem:[#allocation4 + $0xe0] sm:$0xff]
        %v2447 = vld [vmem:[#allocation4 + $0xe8] sm:$0xff]
        %v2448 = vld [vmem:[#allocation4 + $0xf0] sm:$0xff]
        %v2449 = vld [vmem:[#allocation4 + $0xf8] sm:$0xff]
        %v2450 = vld [vmem:[#allocation3] sm:$0xff]
        %v2451 = vld [vmem:[#allocation3 + $0x8] sm:$0xff]
        %v2452 = vld [vmem:[#allocation3 + $0x10] sm:$0xff]
        %v2453 = vld [vmem:[#allocation3 + $0x18] sm:$0xff]
        %v2454 = vld [vmem:[#allocation3 + $0x20] sm:$0xff]
        %v2455 = vld [vmem:[#allocation3 + $0x28] sm:$0xff]
        %v2456 = vld [vmem:[#allocation3 + $0x30] sm:$0xff]
        %v2457 = vld [vmem:[#allocation3 + $0x38] sm:$0xff]
        %v2458 = vld [vmem:[#allocation3 + $0x40] sm:$0xff]
        %v2459 = vld [vmem:[#allocation3 + $0x48] sm:$0xff]
        %v2460 = vld [vmem:[#allocation3 + $0x50] sm:$0xff]
        %v2461 = vld [vmem:[#allocation3 + $0x58] sm:$0xff]
        %v2462 = vld [vmem:[#allocation3 + $0x60] sm:$0xff]
        %v2463 = vld [vmem:[#allocation3 + $0x68] sm:$0xff]
        %v2464 = vld [vmem:[#allocation3 + $0x70] sm:$0xff]
        %v2465 = vld [vmem:[#allocation3 + $0x78] sm:$0xff]
        %v2466 = vld [vmem:[#allocation3 + $0x80] sm:$0xff]
        %v2467 = vld [vmem:[#allocation3 + $0x88] sm:$0xff]
        %v2468 = vld [vmem:[#allocation3 + $0x90] sm:$0xff]
        %v2469 = vld [vmem:[#allocation3 + $0x98] sm:$0xff]
        %v2470 = vld [vmem:[#allocation3 + $0xa0] sm:$0xff]
        %v2471 = vld [vmem:[#allocation3 + $0xa8] sm:$0xff]
        %v2472 = vld [vmem:[#allocation3 + $0xb0] sm:$0xff]
        %v2473 = vld [vmem:[#allocation3 + $0xb8] sm:$0xff]
        %v2474 = vld [vmem:[#allocation3 + $0xc0] sm:$0xff]
        %v2475 = vld [vmem:[#allocation3 + $0xc8] sm:$0xff]
        %v2476 = vld [vmem:[#allocation3 + $0xd0] sm:$0xff]
        %v2477 = vld [vmem:[#allocation3 + $0xd8] sm:$0xff]
        %v2478 = vld [vmem:[#allocation3 + $0xe0] sm:$0xff]
        %v2479 = vld [vmem:[#allocation3 + $0xe8] sm:$0xff]
        %v2480 = vld [vmem:[#allocation3 + $0xf0] sm:$0xff]
        %v2481 = vld [vmem:[#allocation3 + $0xf8] sm:$0xff]
        %2483 = vset.pattern.permute.xlu0 0
        %2484 = vperm.xlu0 %2483, %v2450
        %v2485 = vpop.permute.xlu0 %2484
        %2488 = vset.pattern.permute.xlu0 0
        %2489 = vperm.xlu0 %2488, %v2451
        %v2490 = vpop.permute.xlu0 %2489
        %2493 = vset.pattern.permute.xlu0 0
        %2494 = vperm.xlu0 %2493, %v2452
        %v2495 = vpop.permute.xlu0 %2494
        %2498 = vset.pattern.permute.xlu0 0
        %2499 = vperm.xlu0 %2498, %v2453
        %v2500 = vpop.permute.xlu0 %2499
        %2503 = vset.pattern.permute.xlu0 0
        %2504 = vperm.xlu0 %2503, %v2454
        %v2505 = vpop.permute.xlu0 %2504
        %2508 = vset.pattern.permute.xlu0 0
        %2509 = vperm.xlu0 %2508, %v2455
        %v2510 = vpop.permute.xlu0 %2509
        %2513 = vset.pattern.permute.xlu0 0
        %2514 = vperm.xlu0 %2513, %v2456
        %v2515 = vpop.permute.xlu0 %2514
        %2518 = vset.pattern.permute.xlu0 0
        %2519 = vperm.xlu0 %2518, %v2457
        %v2520 = vpop.permute.xlu0 %2519
        %2523 = vset.pattern.permute.xlu0 0
        %2524 = vperm.xlu0 %2523, %v2458
        %v2525 = vpop.permute.xlu0 %2524
        %2528 = vset.pattern.permute.xlu0 0
        %2529 = vperm.xlu0 %2528, %v2459
        %v2530 = vpop.permute.xlu0 %2529
        %2533 = vset.pattern.permute.xlu0 0
        %2534 = vperm.xlu0 %2533, %v2460
        %v2535 = vpop.permute.xlu0 %2534
        %2538 = vset.pattern.permute.xlu0 0
        %2539 = vperm.xlu0 %2538, %v2461
        %v2540 = vpop.permute.xlu0 %2539
        %2543 = vset.pattern.permute.xlu0 0
        %2544 = vperm.xlu0 %2543, %v2462
        %v2545 = vpop.permute.xlu0 %2544
        %2548 = vset.pattern.permute.xlu0 0
        %2549 = vperm.xlu0 %2548, %v2463
        %v2550 = vpop.permute.xlu0 %2549
        %2553 = vset.pattern.permute.xlu0 0
        %2554 = vperm.xlu0 %2553, %v2464
        %v2555 = vpop.permute.xlu0 %2554
        %2558 = vset.pattern.permute.xlu0 0
        %2559 = vperm.xlu0 %2558, %v2465
        %v2560 = vpop.permute.xlu0 %2559
        %2563 = vset.pattern.permute.xlu0 0
        %2564 = vperm.xlu0 %2563, %v2466
        %v2565 = vpop.permute.xlu0 %2564
        %2568 = vset.pattern.permute.xlu0 0
        %2569 = vperm.xlu0 %2568, %v2467
        %v2570 = vpop.permute.xlu0 %2569
        %2573 = vset.pattern.permute.xlu0 0
        %2574 = vperm.xlu0 %2573, %v2468
        %v2575 = vpop.permute.xlu0 %2574
        %2578 = vset.pattern.permute.xlu0 0
        %2579 = vperm.xlu0 %2578, %v2469
        %v2580 = vpop.permute.xlu0 %2579
        %2583 = vset.pattern.permute.xlu0 0
        %2584 = vperm.xlu0 %2583, %v2470
        %v2585 = vpop.permute.xlu0 %2584
        %2588 = vset.pattern.permute.xlu0 0
        %2589 = vperm.xlu0 %2588, %v2471
        %v2590 = vpop.permute.xlu0 %2589
        %2593 = vset.pattern.permute.xlu0 0
        %2594 = vperm.xlu0 %2593, %v2472
        %v2595 = vpop.permute.xlu0 %2594
        %2598 = vset.pattern.permute.xlu0 0
        %2599 = vperm.xlu0 %2598, %v2473
        %v2600 = vpop.permute.xlu0 %2599
        %2603 = vset.pattern.permute.xlu0 0
        %2604 = vperm.xlu0 %2603, %v2474
        %v2605 = vpop.permute.xlu0 %2604
        %2608 = vset.pattern.permute.xlu0 0
        %2609 = vperm.xlu0 %2608, %v2475
        %v2610 = vpop.permute.xlu0 %2609
        %2613 = vset.pattern.permute.xlu0 0
        %2614 = vperm.xlu0 %2613, %v2476
        %v2615 = vpop.permute.xlu0 %2614
        %2618 = vset.pattern.permute.xlu0 0
        %2619 = vperm.xlu0 %2618, %v2477
        %v2620 = vpop.permute.xlu0 %2619
        %2623 = vset.pattern.permute.xlu0 0
        %2624 = vperm.xlu0 %2623, %v2478
        %v2625 = vpop.permute.xlu0 %2624
        %2628 = vset.pattern.permute.xlu0 0
        %2629 = vperm.xlu0 %2628, %v2479
        %v2630 = vpop.permute.xlu0 %2629
        %2633 = vset.pattern.permute.xlu0 0
        %2634 = vperm.xlu0 %2633, %v2480
        %v2635 = vpop.permute.xlu0 %2634
        %2638 = vset.pattern.permute.xlu0 0
        %2639 = vperm.xlu0 %2638, %v2481
        %v2640 = vpop.permute.xlu0 %2639
        %v2642 = vrcp.pop %v2485
        %v2643 = vmul.f32 %v2485, %v2642
        %v2644 = vsub.f32 1.0, %v2643
        %v2645 = vmul.f32 %v2642, %v2644
        %v2646 = vadd.f32 %v2642, %v2645
        %vm2647 = vweird.f32 %v2485
        %vm2648 = vweird.f32 %v2642
        %vm2649 = vmor %vm2647, %vm2648
        %v2650 = vsel %vm2649, %v2642, %v2646
        %v2651 = vand.u32 2147483647, %v2485
        %vm2652 = vcmp.eq.f32.partialorder %v2651, 8.507059e+37
        %v2653 = vand.u32 %v2485, 2147483648
        %v2654 = vor.u32 1.1754944e-38, %v2653
        %v2655 = vsel %vm2652, %v2654, %v2650
        %v2656 = vmul.f32 %v2418, %v2655
        %v2657 = vrcp.pop %v2490
        %v2658 = vmul.f32 %v2490, %v2657
        %v2659 = vsub.f32 1.0, %v2658
        %v2660 = vmul.f32 %v2657, %v2659
        %v2661 = vadd.f32 %v2657, %v2660
        %vm2662 = vweird.f32 %v2490
        %vm2663 = vweird.f32 %v2657
        %vm2664 = vmor %vm2662, %vm2663
        %v2665 = vsel %vm2664, %v2657, %v2661
        %v2666 = vand.u32 2147483647, %v2490
        %vm2667 = vcmp.eq.f32.partialorder %v2666, 8.507059e+37
        %v2668 = vand.u32 %v2490, 2147483648
        %v2669 = vor.u32 1.1754944e-38, %v2668
        %v2670 = vsel %vm2667, %v2669, %v2665
        %v2671 = vmul.f32 %v2419, %v2670
        %v2672 = vrcp.pop %v2495
        %v2673 = vmul.f32 %v2495, %v2672
        %v2674 = vsub.f32 1.0, %v2673
        %v2675 = vmul.f32 %v2672, %v2674
        %v2676 = vadd.f32 %v2672, %v2675
        %vm2677 = vweird.f32 %v2495
        %vm2678 = vweird.f32 %v2672
        %vm2679 = vmor %vm2677, %vm2678
        %v2680 = vsel %vm2679, %v2672, %v2676
        %v2681 = vand.u32 2147483647, %v2495
        %vm2682 = vcmp.eq.f32.partialorder %v2681, 8.507059e+37
        %v2683 = vand.u32 %v2495, 2147483648
        %v2684 = vor.u32 1.1754944e-38, %v2683
        %v2685 = vsel %vm2682, %v2684, %v2680
        %v2686 = vmul.f32 %v2420, %v2685
        %v2687 = vrcp.pop %v2500
        %v2688 = vmul.f32 %v2500, %v2687
        %v2689 = vsub.f32 1.0, %v2688
        %v2690 = vmul.f32 %v2687, %v2689
        %v2691 = vadd.f32 %v2687, %v2690
        %vm2692 = vweird.f32 %v2500
        %vm2693 = vweird.f32 %v2687
        %vm2694 = vmor %vm2692, %vm2693
        %v2695 = vsel %vm2694, %v2687, %v2691
        %v2696 = vand.u32 2147483647, %v2500
        %vm2697 = vcmp.eq.f32.partialorder %v2696, 8.507059e+37
        %v2698 = vand.u32 %v2500, 2147483648
        %v2699 = vor.u32 1.1754944e-38, %v2698
        %v2700 = vsel %vm2697, %v2699, %v2695
        %v2701 = vmul.f32 %v2421, %v2700
        %v2702 = vrcp.pop %v2505
        %v2703 = vmul.f32 %v2505, %v2702
        %v2704 = vsub.f32 1.0, %v2703
        %v2705 = vmul.f32 %v2702, %v2704
        %v2706 = vadd.f32 %v2702, %v2705
        %vm2707 = vweird.f32 %v2505
        %vm2708 = vweird.f32 %v2702
        %vm2709 = vmor %vm2707, %vm2708
        %v2710 = vsel %vm2709, %v2702, %v2706
        %v2711 = vand.u32 2147483647, %v2505
        %vm2712 = vcmp.eq.f32.partialorder %v2711, 8.507059e+37
        %v2713 = vand.u32 %v2505, 2147483648
        %v2714 = vor.u32 1.1754944e-38, %v2713
        %v2715 = vsel %vm2712, %v2714, %v2710
        %v2716 = vmul.f32 %v2422, %v2715
        %v2717 = vrcp.pop %v2510
        %v2718 = vmul.f32 %v2510, %v2717
        %v2719 = vsub.f32 1.0, %v2718
        %v2720 = vmul.f32 %v2717, %v2719
        %v2721 = vadd.f32 %v2717, %v2720
        %vm2722 = vweird.f32 %v2510
        %vm2723 = vweird.f32 %v2717
        %vm2724 = vmor %vm2722, %vm2723
        %v2725 = vsel %vm2724, %v2717, %v2721
        %v2726 = vand.u32 2147483647, %v2510
        %vm2727 = vcmp.eq.f32.partialorder %v2726, 8.507059e+37
        %v2728 = vand.u32 %v2510, 2147483648
        %v2729 = vor.u32 1.1754944e-38, %v2728
        %v2730 = vsel %vm2727, %v2729, %v2725
        %v2731 = vmul.f32 %v2423, %v2730
        %v2732 = vrcp.pop %v2515
        %v2733 = vmul.f32 %v2515, %v2732
        %v2734 = vsub.f32 1.0, %v2733
        %v2735 = vmul.f32 %v2732, %v2734
        %v2736 = vadd.f32 %v2732, %v2735
        %vm2737 = vweird.f32 %v2515
        %vm2738 = vweird.f32 %v2732
        %vm2739 = vmor %vm2737, %vm2738
        %v2740 = vsel %vm2739, %v2732, %v2736
        %v2741 = vand.u32 2147483647, %v2515
        %vm2742 = vcmp.eq.f32.partialorder %v2741, 8.507059e+37
        %v2743 = vand.u32 %v2515, 2147483648
        %v2744 = vor.u32 1.1754944e-38, %v2743
        %v2745 = vsel %vm2742, %v2744, %v2740
        %v2746 = vmul.f32 %v2424, %v2745
        %v2747 = vrcp.pop %v2520
        %v2748 = vmul.f32 %v2520, %v2747
        %v2749 = vsub.f32 1.0, %v2748
        %v2750 = vmul.f32 %v2747, %v2749
        %v2751 = vadd.f32 %v2747, %v2750
        %vm2752 = vweird.f32 %v2520
        %vm2753 = vweird.f32 %v2747
        %vm2754 = vmor %vm2752, %vm2753
        %v2755 = vsel %vm2754, %v2747, %v2751
        %v2756 = vand.u32 2147483647, %v2520
        %vm2757 = vcmp.eq.f32.partialorder %v2756, 8.507059e+37
        %v2758 = vand.u32 %v2520, 2147483648
        %v2759 = vor.u32 1.1754944e-38, %v2758
        %v2760 = vsel %vm2757, %v2759, %v2755
        %v2761 = vmul.f32 %v2425, %v2760
        %v2762 = vrcp.pop %v2525
        %v2763 = vmul.f32 %v2525, %v2762
        %v2764 = vsub.f32 1.0, %v2763
        %v2765 = vmul.f32 %v2762, %v2764
        %v2766 = vadd.f32 %v2762, %v2765
        %vm2767 = vweird.f32 %v2525
        %vm2768 = vweird.f32 %v2762
        %vm2769 = vmor %vm2767, %vm2768
        %v2770 = vsel %vm2769, %v2762, %v2766
        %v2771 = vand.u32 2147483647, %v2525
        %vm2772 = vcmp.eq.f32.partialorder %v2771, 8.507059e+37
        %v2773 = vand.u32 %v2525, 2147483648
        %v2774 = vor.u32 1.1754944e-38, %v2773
        %v2775 = vsel %vm2772, %v2774, %v2770
        %v2776 = vmul.f32 %v2426, %v2775
        %v2777 = vrcp.pop %v2530
        %v2778 = vmul.f32 %v2530, %v2777
        %v2779 = vsub.f32 1.0, %v2778
        %v2780 = vmul.f32 %v2777, %v2779
        %v2781 = vadd.f32 %v2777, %v2780
        %vm2782 = vweird.f32 %v2530
        %vm2783 = vweird.f32 %v2777
        %vm2784 = vmor %vm2782, %vm2783
        %v2785 = vsel %vm2784, %v2777, %v2781
        %v2786 = vand.u32 2147483647, %v2530
        %vm2787 = vcmp.eq.f32.partialorder %v2786, 8.507059e+37
        %v2788 = vand.u32 %v2530, 2147483648
        %v2789 = vor.u32 1.1754944e-38, %v2788
        %v2790 = vsel %vm2787, %v2789, %v2785
        %v2791 = vmul.f32 %v2427, %v2790
        %v2792 = vrcp.pop %v2535
        %v2793 = vmul.f32 %v2535, %v2792
        %v2794 = vsub.f32 1.0, %v2793
        %v2795 = vmul.f32 %v2792, %v2794
        %v2796 = vadd.f32 %v2792, %v2795
        %vm2797 = vweird.f32 %v2535
        %vm2798 = vweird.f32 %v2792
        %vm2799 = vmor %vm2797, %vm2798
        %v2800 = vsel %vm2799, %v2792, %v2796
        %v2801 = vand.u32 2147483647, %v2535
        %vm2802 = vcmp.eq.f32.partialorder %v2801, 8.507059e+37
        %v2803 = vand.u32 %v2535, 2147483648
        %v2804 = vor.u32 1.1754944e-38, %v2803
        %v2805 = vsel %vm2802, %v2804, %v2800
        %v2806 = vmul.f32 %v2428, %v2805
        %v2807 = vrcp.pop %v2540
        %v2808 = vmul.f32 %v2540, %v2807
        %v2809 = vsub.f32 1.0, %v2808
        %v2810 = vmul.f32 %v2807, %v2809
        %v2811 = vadd.f32 %v2807, %v2810
        %vm2812 = vweird.f32 %v2540
        %vm2813 = vweird.f32 %v2807
        %vm2814 = vmor %vm2812, %vm2813
        %v2815 = vsel %vm2814, %v2807, %v2811
        %v2816 = vand.u32 2147483647, %v2540
        %vm2817 = vcmp.eq.f32.partialorder %v2816, 8.507059e+37
        %v2818 = vand.u32 %v2540, 2147483648
        %v2819 = vor.u32 1.1754944e-38, %v2818
        %v2820 = vsel %vm2817, %v2819, %v2815
        %v2821 = vmul.f32 %v2429, %v2820
        %v2822 = vrcp.pop %v2545
        %v2823 = vmul.f32 %v2545, %v2822
        %v2824 = vsub.f32 1.0, %v2823
        %v2825 = vmul.f32 %v2822, %v2824
        %v2826 = vadd.f32 %v2822, %v2825
        %vm2827 = vweird.f32 %v2545
        %vm2828 = vweird.f32 %v2822
        %vm2829 = vmor %vm2827, %vm2828
        %v2830 = vsel %vm2829, %v2822, %v2826
        %v2831 = vand.u32 2147483647, %v2545
        %vm2832 = vcmp.eq.f32.partialorder %v2831, 8.507059e+37
        %v2833 = vand.u32 %v2545, 2147483648
        %v2834 = vor.u32 1.1754944e-38, %v2833
        %v2835 = vsel %vm2832, %v2834, %v2830
        %v2836 = vmul.f32 %v2430, %v2835
        %v2837 = vrcp.pop %v2550
        %v2838 = vmul.f32 %v2550, %v2837
        %v2839 = vsub.f32 1.0, %v2838
        %v2840 = vmul.f32 %v2837, %v2839
        %v2841 = vadd.f32 %v2837, %v2840
        %vm2842 = vweird.f32 %v2550
        %vm2843 = vweird.f32 %v2837
        %vm2844 = vmor %vm2842, %vm2843
        %v2845 = vsel %vm2844, %v2837, %v2841
        %v2846 = vand.u32 2147483647, %v2550
        %vm2847 = vcmp.eq.f32.partialorder %v2846, 8.507059e+37
        %v2848 = vand.u32 %v2550, 2147483648
        %v2849 = vor.u32 1.1754944e-38, %v2848
        %v2850 = vsel %vm2847, %v2849, %v2845
        %v2851 = vmul.f32 %v2431, %v2850
        %v2852 = vrcp.pop %v2555
        %v2853 = vmul.f32 %v2555, %v2852
        %v2854 = vsub.f32 1.0, %v2853
        %v2855 = vmul.f32 %v2852, %v2854
        %v2856 = vadd.f32 %v2852, %v2855
        %vm2857 = vweird.f32 %v2555
        %vm2858 = vweird.f32 %v2852
        %vm2859 = vmor %vm2857, %vm2858
        %v2860 = vsel %vm2859, %v2852, %v2856
        %v2861 = vand.u32 2147483647, %v2555
        %vm2862 = vcmp.eq.f32.partialorder %v2861, 8.507059e+37
        %v2863 = vand.u32 %v2555, 2147483648
        %v2864 = vor.u32 1.1754944e-38, %v2863
        %v2865 = vsel %vm2862, %v2864, %v2860
        %v2866 = vmul.f32 %v2432, %v2865
        %v2867 = vrcp.pop %v2560
        %v2868 = vmul.f32 %v2560, %v2867
        %v2869 = vsub.f32 1.0, %v2868
        %v2870 = vmul.f32 %v2867, %v2869
        %v2871 = vadd.f32 %v2867, %v2870
        %vm2872 = vweird.f32 %v2560
        %vm2873 = vweird.f32 %v2867
        %vm2874 = vmor %vm2872, %vm2873
        %v2875 = vsel %vm2874, %v2867, %v2871
        %v2876 = vand.u32 2147483647, %v2560
        %vm2877 = vcmp.eq.f32.partialorder %v2876, 8.507059e+37
        %v2878 = vand.u32 %v2560, 2147483648
        %v2879 = vor.u32 1.1754944e-38, %v2878
        %v2880 = vsel %vm2877, %v2879, %v2875
        %v2881 = vmul.f32 %v2433, %v2880
        %v2882 = vrcp.pop %v2565
        %v2883 = vmul.f32 %v2565, %v2882
        %v2884 = vsub.f32 1.0, %v2883
        %v2885 = vmul.f32 %v2882, %v2884
        %v2886 = vadd.f32 %v2882, %v2885
        %vm2887 = vweird.f32 %v2565
        %vm2888 = vweird.f32 %v2882
        %vm2889 = vmor %vm2887, %vm2888
        %v2890 = vsel %vm2889, %v2882, %v2886
        %v2891 = vand.u32 2147483647, %v2565
        %vm2892 = vcmp.eq.f32.partialorder %v2891, 8.507059e+37
        %v2893 = vand.u32 %v2565, 2147483648
        %v2894 = vor.u32 1.1754944e-38, %v2893
        %v2895 = vsel %vm2892, %v2894, %v2890
        %v2896 = vmul.f32 %v2434, %v2895
        %v2897 = vrcp.pop %v2570
        %v2898 = vmul.f32 %v2570, %v2897
        %v2899 = vsub.f32 1.0, %v2898
        %v2900 = vmul.f32 %v2897, %v2899
        %v2901 = vadd.f32 %v2897, %v2900
        %vm2902 = vweird.f32 %v2570
        %vm2903 = vweird.f32 %v2897
        %vm2904 = vmor %vm2902, %vm2903
        %v2905 = vsel %vm2904, %v2897, %v2901
        %v2906 = vand.u32 2147483647, %v2570
        %vm2907 = vcmp.eq.f32.partialorder %v2906, 8.507059e+37
        %v2908 = vand.u32 %v2570, 2147483648
        %v2909 = vor.u32 1.1754944e-38, %v2908
        %v2910 = vsel %vm2907, %v2909, %v2905
        %v2911 = vmul.f32 %v2435, %v2910
        %v2912 = vrcp.pop %v2575
        %v2913 = vmul.f32 %v2575, %v2912
        %v2914 = vsub.f32 1.0, %v2913
        %v2915 = vmul.f32 %v2912, %v2914
        %v2916 = vadd.f32 %v2912, %v2915
        %vm2917 = vweird.f32 %v2575
        %vm2918 = vweird.f32 %v2912
        %vm2919 = vmor %vm2917, %vm2918
        %v2920 = vsel %vm2919, %v2912, %v2916
        %v2921 = vand.u32 2147483647, %v2575
        %vm2922 = vcmp.eq.f32.partialorder %v2921, 8.507059e+37
        %v2923 = vand.u32 %v2575, 2147483648
        %v2924 = vor.u32 1.1754944e-38, %v2923
        %v2925 = vsel %vm2922, %v2924, %v2920
        %v2926 = vmul.f32 %v2436, %v2925
        %v2927 = vrcp.pop %v2580
        %v2928 = vmul.f32 %v2580, %v2927
        %v2929 = vsub.f32 1.0, %v2928
        %v2930 = vmul.f32 %v2927, %v2929
        %v2931 = vadd.f32 %v2927, %v2930
        %vm2932 = vweird.f32 %v2580
        %vm2933 = vweird.f32 %v2927
        %vm2934 = vmor %vm2932, %vm2933
        %v2935 = vsel %vm2934, %v2927, %v2931
        %v2936 = vand.u32 2147483647, %v2580
        %vm2937 = vcmp.eq.f32.partialorder %v2936, 8.507059e+37
        %v2938 = vand.u32 %v2580, 2147483648
        %v2939 = vor.u32 1.1754944e-38, %v2938
        %v2940 = vsel %vm2937, %v2939, %v2935
        %v2941 = vmul.f32 %v2437, %v2940
        %v2942 = vrcp.pop %v2585
        %v2943 = vmul.f32 %v2585, %v2942
        %v2944 = vsub.f32 1.0, %v2943
        %v2945 = vmul.f32 %v2942, %v2944
        %v2946 = vadd.f32 %v2942, %v2945
        %vm2947 = vweird.f32 %v2585
        %vm2948 = vweird.f32 %v2942
        %vm2949 = vmor %vm2947, %vm2948
        %v2950 = vsel %vm2949, %v2942, %v2946
        %v2951 = vand.u32 2147483647, %v2585
        %vm2952 = vcmp.eq.f32.partialorder %v2951, 8.507059e+37
        %v2953 = vand.u32 %v2585, 2147483648
        %v2954 = vor.u32 1.1754944e-38, %v2953
        %v2955 = vsel %vm2952, %v2954, %v2950
        %v2956 = vmul.f32 %v2438, %v2955
        %v2957 = vrcp.pop %v2590
        %v2958 = vmul.f32 %v2590, %v2957
        %v2959 = vsub.f32 1.0, %v2958
        %v2960 = vmul.f32 %v2957, %v2959
        %v2961 = vadd.f32 %v2957, %v2960
        %vm2962 = vweird.f32 %v2590
        %vm2963 = vweird.f32 %v2957
        %vm2964 = vmor %vm2962, %vm2963
        %v2965 = vsel %vm2964, %v2957, %v2961
        %v2966 = vand.u32 2147483647, %v2590
        %vm2967 = vcmp.eq.f32.partialorder %v2966, 8.507059e+37
        %v2968 = vand.u32 %v2590, 2147483648
        %v2969 = vor.u32 1.1754944e-38, %v2968
        %v2970 = vsel %vm2967, %v2969, %v2965
        %v2971 = vmul.f32 %v2439, %v2970
        %v2972 = vrcp.pop %v2595
        %v2973 = vmul.f32 %v2595, %v2972
        %v2974 = vsub.f32 1.0, %v2973
        %v2975 = vmul.f32 %v2972, %v2974
        %v2976 = vadd.f32 %v2972, %v2975
        %vm2977 = vweird.f32 %v2595
        %vm2978 = vweird.f32 %v2972
        %vm2979 = vmor %vm2977, %vm2978
        %v2980 = vsel %vm2979, %v2972, %v2976
        %v2981 = vand.u32 2147483647, %v2595
        %vm2982 = vcmp.eq.f32.partialorder %v2981, 8.507059e+37
        %v2983 = vand.u32 %v2595, 2147483648
        %v2984 = vor.u32 1.1754944e-38, %v2983
        %v2985 = vsel %vm2982, %v2984, %v2980
        %v2986 = vmul.f32 %v2440, %v2985
        %v2987 = vrcp.pop %v2600
        %v2988 = vmul.f32 %v2600, %v2987
        %v2989 = vsub.f32 1.0, %v2988
        %v2990 = vmul.f32 %v2987, %v2989
        %v2991 = vadd.f32 %v2987, %v2990
        %vm2992 = vweird.f32 %v2600
        %vm2993 = vweird.f32 %v2987
        %vm2994 = vmor %vm2992, %vm2993
        %v2995 = vsel %vm2994, %v2987, %v2991
        %v2996 = vand.u32 2147483647, %v2600
        %vm2997 = vcmp.eq.f32.partialorder %v2996, 8.507059e+37
        %v2998 = vand.u32 %v2600, 2147483648
        %v2999 = vor.u32 1.1754944e-38, %v2998
        %v3000 = vsel %vm2997, %v2999, %v2995
        %v3001 = vmul.f32 %v2441, %v3000
        %v3002 = vrcp.pop %v2605
        %v3003 = vmul.f32 %v2605, %v3002
        %v3004 = vsub.f32 1.0, %v3003
        %v3005 = vmul.f32 %v3002, %v3004
        %v3006 = vadd.f32 %v3002, %v3005
        %vm3007 = vweird.f32 %v2605
        %vm3008 = vweird.f32 %v3002
        %vm3009 = vmor %vm3007, %vm3008
        %v3010 = vsel %vm3009, %v3002, %v3006
        %v3011 = vand.u32 2147483647, %v2605
        %vm3012 = vcmp.eq.f32.partialorder %v3011, 8.507059e+37
        %v3013 = vand.u32 %v2605, 2147483648
        %v3014 = vor.u32 1.1754944e-38, %v3013
        %v3015 = vsel %vm3012, %v3014, %v3010
        %v3016 = vmul.f32 %v2442, %v3015
        %v3017 = vrcp.pop %v2610
        %v3018 = vmul.f32 %v2610, %v3017
        %v3019 = vsub.f32 1.0, %v3018
        %v3020 = vmul.f32 %v3017, %v3019
        %v3021 = vadd.f32 %v3017, %v3020
        %vm3022 = vweird.f32 %v2610
        %vm3023 = vweird.f32 %v3017
        %vm3024 = vmor %vm3022, %vm3023
        %v3025 = vsel %vm3024, %v3017, %v3021
        %v3026 = vand.u32 2147483647, %v2610
        %vm3027 = vcmp.eq.f32.partialorder %v3026, 8.507059e+37
        %v3028 = vand.u32 %v2610, 2147483648
        %v3029 = vor.u32 1.1754944e-38, %v3028
        %v3030 = vsel %vm3027, %v3029, %v3025
        %v3031 = vmul.f32 %v2443, %v3030
        %v3032 = vrcp.pop %v2615
        %v3033 = vmul.f32 %v2615, %v3032
        %v3034 = vsub.f32 1.0, %v3033
        %v3035 = vmul.f32 %v3032, %v3034
        %v3036 = vadd.f32 %v3032, %v3035
        %vm3037 = vweird.f32 %v2615
        %vm3038 = vweird.f32 %v3032
        %vm3039 = vmor %vm3037, %vm3038
        %v3040 = vsel %vm3039, %v3032, %v3036
        %v3041 = vand.u32 2147483647, %v2615
        %vm3042 = vcmp.eq.f32.partialorder %v3041, 8.507059e+37
        %v3043 = vand.u32 %v2615, 2147483648
        %v3044 = vor.u32 1.1754944e-38, %v3043
        %v3045 = vsel %vm3042, %v3044, %v3040
        %v3046 = vmul.f32 %v2444, %v3045
        %v3047 = vrcp.pop %v2620
        %v3048 = vmul.f32 %v2620, %v3047
        %v3049 = vsub.f32 1.0, %v3048
        %v3050 = vmul.f32 %v3047, %v3049
        %v3051 = vadd.f32 %v3047, %v3050
        %vm3052 = vweird.f32 %v2620
        %vm3053 = vweird.f32 %v3047
        %vm3054 = vmor %vm3052, %vm3053
        %v3055 = vsel %vm3054, %v3047, %v3051
        %v3056 = vand.u32 2147483647, %v2620
        %vm3057 = vcmp.eq.f32.partialorder %v3056, 8.507059e+37
        %v3058 = vand.u32 %v2620, 2147483648
        %v3059 = vor.u32 1.1754944e-38, %v3058
        %v3060 = vsel %vm3057, %v3059, %v3055
        %v3061 = vmul.f32 %v2445, %v3060
        %v3062 = vrcp.pop %v2625
        %v3063 = vmul.f32 %v2625, %v3062
        %v3064 = vsub.f32 1.0, %v3063
        %v3065 = vmul.f32 %v3062, %v3064
        %v3066 = vadd.f32 %v3062, %v3065
        %vm3067 = vweird.f32 %v2625
        %vm3068 = vweird.f32 %v3062
        %vm3069 = vmor %vm3067, %vm3068
        %v3070 = vsel %vm3069, %v3062, %v3066
        %v3071 = vand.u32 2147483647, %v2625
        %vm3072 = vcmp.eq.f32.partialorder %v3071, 8.507059e+37
        %v3073 = vand.u32 %v2625, 2147483648
        %v3074 = vor.u32 1.1754944e-38, %v3073
        %v3075 = vsel %vm3072, %v3074, %v3070
        %v3076 = vmul.f32 %v2446, %v3075
        %v3077 = vrcp.pop %v2630
        %v3078 = vmul.f32 %v2630, %v3077
        %v3079 = vsub.f32 1.0, %v3078
        %v3080 = vmul.f32 %v3077, %v3079
        %v3081 = vadd.f32 %v3077, %v3080
        %vm3082 = vweird.f32 %v2630
        %vm3083 = vweird.f32 %v3077
        %vm3084 = vmor %vm3082, %vm3083
        %v3085 = vsel %vm3084, %v3077, %v3081
        %v3086 = vand.u32 2147483647, %v2630
        %vm3087 = vcmp.eq.f32.partialorder %v3086, 8.507059e+37
        %v3088 = vand.u32 %v2630, 2147483648
        %v3089 = vor.u32 1.1754944e-38, %v3088
        %v3090 = vsel %vm3087, %v3089, %v3085
        %v3091 = vmul.f32 %v2447, %v3090
        %v3092 = vrcp.pop %v2635
        %v3093 = vmul.f32 %v2635, %v3092
        %v3094 = vsub.f32 1.0, %v3093
        %v3095 = vmul.f32 %v3092, %v3094
        %v3096 = vadd.f32 %v3092, %v3095
        %vm3097 = vweird.f32 %v2635
        %vm3098 = vweird.f32 %v3092
        %vm3099 = vmor %vm3097, %vm3098
        %v3100 = vsel %vm3099, %v3092, %v3096
        %v3101 = vand.u32 2147483647, %v2635
        %vm3102 = vcmp.eq.f32.partialorder %v3101, 8.507059e+37
        %v3103 = vand.u32 %v2635, 2147483648
        %v3104 = vor.u32 1.1754944e-38, %v3103
        %v3105 = vsel %vm3102, %v3104, %v3100
        %v3106 = vmul.f32 %v2448, %v3105
        %v3107 = vrcp.pop %v2640
        %v3108 = vmul.f32 %v2640, %v3107
        %v3109 = vsub.f32 1.0, %v3108
        %v3110 = vmul.f32 %v3107, %v3109
        %v3111 = vadd.f32 %v3107, %v3110
        %vm3112 = vweird.f32 %v2640
        %vm3113 = vweird.f32 %v3107
        %vm3114 = vmor %vm3112, %vm3113
        %v3115 = vsel %vm3114, %v3107, %v3111
        %v3116 = vand.u32 2147483647, %v2640
        %vm3117 = vcmp.eq.f32.partialorder %v3116, 8.507059e+37
        %v3118 = vand.u32 %v2640, 2147483648
        %v3119 = vor.u32 1.1754944e-38, %v3118
        %v3120 = vsel %vm3117, %v3119, %v3115
        %v3121 = vmul.f32 %v2449, %v3120
        %v3122 = vpack.c.bf16 %v2671, %v2656
        %v3123 = vpack.c.bf16 %v2701, %v2686
        %v3124 = vpack.c.bf16 %v2731, %v2716
        %v3125 = vpack.c.bf16 %v2761, %v2746
        %v3126 = vpack.c.bf16 %v2791, %v2776
        %v3127 = vpack.c.bf16 %v2821, %v2806
        %v3128 = vpack.c.bf16 %v2851, %v2836
        %v3129 = vpack.c.bf16 %v2881, %v2866
        %v3130 = vpack.c.bf16 %v2911, %v2896
        %v3131 = vpack.c.bf16 %v2941, %v2926
        %v3132 = vpack.c.bf16 %v2971, %v2956
        %v3133 = vpack.c.bf16 %v3001, %v2986
        %v3134 = vpack.c.bf16 %v3031, %v3016
        %v3135 = vpack.c.bf16 %v3061, %v3046
        %v3136 = vpack.c.bf16 %v3091, %v3076
        %v3137 = vpack.c.bf16 %v3121, %v3106
        %v3138 = vld [vmem:[%s3] sm:$0xf]
        %v3139 = vld [vmem:[%s3 + $0x4] sm:$0xf]
        %v3140 = vld [vmem:[%s3 + $0x8] sm:$0xf]
        %v3141 = vld [vmem:[%s3 + $0xc] sm:$0xf]
        %v3142 = vld [vmem:[%s3 + $0x10] sm:$0xf]
        %v3143 = vld [vmem:[%s3 + $0x14] sm:$0xf]
        %v3144 = vld [vmem:[%s3 + $0x18] sm:$0xf]
        %v3145 = vld [vmem:[%s3 + $0x1c] sm:$0xf]
        %v3146 = vld [vmem:[%s3 + $0x20] sm:$0xf]
        %v3147 = vld [vmem:[%s3 + $0x24] sm:$0xf]
        %v3148 = vld [vmem:[%s3 + $0x28] sm:$0xf]
        %v3149 = vld [vmem:[%s3 + $0x2c] sm:$0xf]
        %v3150 = vld [vmem:[%s3 + $0x30] sm:$0xf]
        %v3151 = vld [vmem:[%s3 + $0x34] sm:$0xf]
        %v3152 = vld [vmem:[%s3 + $0x38] sm:$0xf]
        %v3153 = vld [vmem:[%s3 + $0x3c] sm:$0xf]
        %v3154 = vld [vmem:[%s4] sm:$0x1]
        %v3156 = vperm.slane %v3154, 0
        %v3174 = vunpack.c.l.b16 %v3138
        %v3175 = vunpack.c.l.b16 %v3139
        %v3176 = vunpack.c.l.b16 %v3140
        %v3177 = vunpack.c.l.b16 %v3141
        %v3178 = vunpack.c.l.b16 %v3142
        %v3179 = vunpack.c.l.b16 %v3143
        %v3180 = vunpack.c.l.b16 %v3144
        %v3181 = vunpack.c.l.b16 %v3145
        %v3182 = vunpack.c.l.b16 %v3146
        %v3183 = vunpack.c.l.b16 %v3147
        %v3184 = vunpack.c.l.b16 %v3148
        %v3185 = vunpack.c.l.b16 %v3149
        %v3186 = vunpack.c.l.b16 %v3150
        %v3187 = vunpack.c.l.b16 %v3151
        %v3188 = vunpack.c.l.b16 %v3152
        %v3189 = vunpack.c.l.b16 %v3153
        %v3190 = vpack.c.b16 %v3175, %v3174
        %v3191 = vpack.c.b16 %v3177, %v3176
        %v3192 = vpack.c.b16 %v3179, %v3178
        %v3193 = vpack.c.b16 %v3181, %v3180
        %v3194 = vpack.c.b16 %v3183, %v3182
        %v3195 = vpack.c.b16 %v3185, %v3184
        %v3196 = vpack.c.b16 %v3187, %v3186
        %v3197 = vpack.c.b16 %v3189, %v3188
        %3206 = vmatpush.bf16.msra.mxu0 %v3197
        %3207 = vmatpush.bf16.msra.mxu0 %v3196
        %3208 = vmatpush.bf16.msra.mxu0 %v3195
        %3209 = vmatpush.bf16.msra.mxu0 %v3194
        %3210 = vmatpush.bf16.msra.mxu0 %v3193
        %3211 = vmatpush.bf16.msra.mxu0 %v3192
        %3212 = vmatpush.bf16.msra.mxu0 %v3191
        %3213 = vmatpush.bf16.msra.mxu0 %v3190
        %3214 = vmatmul.bf16.gmra.mxu0 %v3122
        %v3215 = vpop.f32.mrf.mxu0
        %v3216 = vadd.f32 %v3156, %v3215
        %v3217 = vpop.f32.mrf.mxu0
        %v3218 = vadd.f32 %v3156, %v3217
        %3219 = vmatmul.bf16.gmra.mxu0 %v3123
        %v3220 = vpop.f32.mrf.mxu0
        %v3221 = vadd.f32 %v3156, %v3220
        %v3222 = vpop.f32.mrf.mxu0
        %v3223 = vadd.f32 %v3156, %v3222
        %3224 = vmatmul.bf16.gmra.mxu0 %v3124
        %v3225 = vpop.f32.mrf.mxu0
        %v3226 = vadd.f32 %v3156, %v3225
        %v3227 = vpop.f32.mrf.mxu0
        %v3228 = vadd.f32 %v3156, %v3227
        %3229 = vmatmul.bf16.gmra.mxu0 %v3125
        %v3230 = vpop.f32.mrf.mxu0
        %v3231 = vadd.f32 %v3156, %v3230
        %v3232 = vpop.f32.mrf.mxu0
        %v3233 = vadd.f32 %v3156, %v3232
        %3234 = vmatmul.bf16.gmra.mxu0 %v3126
        %v3235 = vpop.f32.mrf.mxu0
        %v3236 = vadd.f32 %v3156, %v3235
        %v3237 = vpop.f32.mrf.mxu0
        %v3238 = vadd.f32 %v3156, %v3237
        %3239 = vmatmul.bf16.gmra.mxu0 %v3127
        %v3240 = vpop.f32.mrf.mxu0
        %v3241 = vadd.f32 %v3156, %v3240
        %v3242 = vpop.f32.mrf.mxu0
        %v3243 = vadd.f32 %v3156, %v3242
        %3244 = vmatmul.bf16.gmra.mxu0 %v3128
        %v3245 = vpop.f32.mrf.mxu0
        %v3246 = vadd.f32 %v3156, %v3245
        %v3247 = vpop.f32.mrf.mxu0
        %v3248 = vadd.f32 %v3156, %v3247
        %3249 = vmatmul.bf16.gmra.mxu0 %v3129
        %v3250 = vpop.f32.mrf.mxu0
        %v3251 = vadd.f32 %v3156, %v3250
        %v3252 = vpop.f32.mrf.mxu0
        %v3253 = vadd.f32 %v3156, %v3252
        %3254 = vmatmul.bf16.gmra.mxu0 %v3130
        %v3255 = vpop.f32.mrf.mxu0
        %v3256 = vadd.f32 %v3156, %v3255
        %v3257 = vpop.f32.mrf.mxu0
        %v3258 = vadd.f32 %v3156, %v3257
        %3259 = vmatmul.bf16.gmra.mxu0 %v3131
        %v3260 = vpop.f32.mrf.mxu0
        %v3261 = vadd.f32 %v3156, %v3260
        %v3262 = vpop.f32.mrf.mxu0
        %v3263 = vadd.f32 %v3156, %v3262
        %3264 = vmatmul.bf16.gmra.mxu0 %v3132
        %v3265 = vpop.f32.mrf.mxu0
        %v3266 = vadd.f32 %v3156, %v3265
        %v3267 = vpop.f32.mrf.mxu0
        %v3268 = vadd.f32 %v3156, %v3267
        %3269 = vmatmul.bf16.gmra.mxu0 %v3133
        %v3270 = vpop.f32.mrf.mxu0
        %v3271 = vadd.f32 %v3156, %v3270
        %v3272 = vpop.f32.mrf.mxu0
        %v3273 = vadd.f32 %v3156, %v3272
        %3274 = vmatmul.bf16.gmra.mxu0 %v3134
        %v3275 = vpop.f32.mrf.mxu0
        %v3276 = vadd.f32 %v3156, %v3275
        %v3277 = vpop.f32.mrf.mxu0
        %v3278 = vadd.f32 %v3156, %v3277
        %3279 = vmatmul.bf16.gmra.mxu0 %v3135
        %v3280 = vpop.f32.mrf.mxu0
        %v3281 = vadd.f32 %v3156, %v3280
        %v3282 = vpop.f32.mrf.mxu0
        %v3283 = vadd.f32 %v3156, %v3282
        %3284 = vmatmul.bf16.gmra.mxu0 %v3136
        %v3285 = vpop.f32.mrf.mxu0
        %v3286 = vadd.f32 %v3156, %v3285
        %v3287 = vpop.f32.mrf.mxu0
        %v3288 = vadd.f32 %v3156, %v3287
        %3289 = vmatmul.bf16.gmra.mxu0 %v3137
        %v3290 = vpop.f32.mrf.mxu0
        %v3291 = vadd.f32 %v3156, %v3290
        %v3292 = vpop.f32.mrf.mxu0
        %v3293 = vadd.f32 %v3156, %v3292
        %3294 = vdwg.mxu0
        %v3295 = vpack.c.bf16 %v3216, %v3216
        %v3296 = vpack.c.bf16 %v3218, %v3218
        %v3297 = vpack.c.bf16 %v3221, %v3221
        %v3298 = vpack.c.bf16 %v3223, %v3223
        %v3299 = vpack.c.bf16 %v3226, %v3226
        %v3300 = vpack.c.bf16 %v3228, %v3228
        %v3301 = vpack.c.bf16 %v3231, %v3231
        %v3302 = vpack.c.bf16 %v3233, %v3233
        %v3303 = vpack.c.bf16 %v3236, %v3236
        %v3304 = vpack.c.bf16 %v3238, %v3238
        %v3305 = vpack.c.bf16 %v3241, %v3241
        %v3306 = vpack.c.bf16 %v3243, %v3243
        %v3307 = vpack.c.bf16 %v3246, %v3246
        %v3308 = vpack.c.bf16 %v3248, %v3248
        %v3309 = vpack.c.bf16 %v3251, %v3251
        %v3310 = vpack.c.bf16 %v3253, %v3253
        %v3311 = vpack.c.bf16 %v3256, %v3256
        %v3312 = vpack.c.bf16 %v3258, %v3258
        %v3313 = vpack.c.bf16 %v3261, %v3261
        %v3314 = vpack.c.bf16 %v3263, %v3263
        %v3315 = vpack.c.bf16 %v3266, %v3266
        %v3316 = vpack.c.bf16 %v3268, %v3268
        %v3317 = vpack.c.bf16 %v3271, %v3271
        %v3318 = vpack.c.bf16 %v3273, %v3273
        %v3319 = vpack.c.bf16 %v3276, %v3276
        %v3320 = vpack.c.bf16 %v3278, %v3278
        %v3321 = vpack.c.bf16 %v3281, %v3281
        %v3322 = vpack.c.bf16 %v3283, %v3283
        %v3323 = vpack.c.bf16 %v3286, %v3286
        %v3324 = vpack.c.bf16 %v3288, %v3288
        %v3325 = vpack.c.bf16 %v3291, %v3291
        %v3326 = vpack.c.bf16 %v3293, %v3293
        %3327 = vst [vmem:[%s380] sm:$0xf] %v3295
        %3328 = vst [vmem:[%s380 + $0x4] sm:$0xf] %v3296
        %3329 = vst [vmem:[%s380 + $0x8] sm:$0xf] %v3297
        %3330 = vst [vmem:[%s380 + $0xc] sm:$0xf] %v3298
        %3331 = vst [vmem:[%s380 + $0x10] sm:$0xf] %v3299
        %3332 = vst [vmem:[%s380 + $0x14] sm:$0xf] %v3300
        %3333 = vst [vmem:[%s380 + $0x18] sm:$0xf] %v3301
        %3334 = vst [vmem:[%s380 + $0x1c] sm:$0xf] %v3302
        %3335 = vst [vmem:[%s380 + $0x20] sm:$0xf] %v3303
        %3336 = vst [vmem:[%s380 + $0x24] sm:$0xf] %v3304
        %3337 = vst [vmem:[%s380 + $0x28] sm:$0xf] %v3305
        %3338 = vst [vmem:[%s380 + $0x2c] sm:$0xf] %v3306
        %3339 = vst [vmem:[%s380 + $0x30] sm:$0xf] %v3307
        %3340 = vst [vmem:[%s380 + $0x34] sm:$0xf] %v3308
        %3341 = vst [vmem:[%s380 + $0x38] sm:$0xf] %v3309
        %3342 = vst [vmem:[%s380 + $0x3c] sm:$0xf] %v3310
        %3343 = vst [vmem:[%s380 + $0x40] sm:$0xf] %v3311
        %3344 = vst [vmem:[%s380 + $0x44] sm:$0xf] %v3312
        %3345 = vst [vmem:[%s380 + $0x48] sm:$0xf] %v3313
        %3346 = vst [vmem:[%s380 + $0x4c] sm:$0xf] %v3314
        %3347 = vst [vmem:[%s380 + $0x50] sm:$0xf] %v3315
        %3348 = vst [vmem:[%s380 + $0x54] sm:$0xf] %v3316
        %3349 = vst [vmem:[%s380 + $0x58] sm:$0xf] %v3317
        %3350 = vst [vmem:[%s380 + $0x5c] sm:$0xf] %v3318
        %3351 = vst [vmem:[%s380 + $0x60] sm:$0xf] %v3319
        %3352 = vst [vmem:[%s380 + $0x64] sm:$0xf] %v3320
        %3353 = vst [vmem:[%s380 + $0x68] sm:$0xf] %v3321
        %3354 = vst [vmem:[%s380 + $0x6c] sm:$0xf] %v3322
        %3355 = vst [vmem:[%s380 + $0x70] sm:$0xf] %v3323
        %3356 = vst [vmem:[%s380 + $0x74] sm:$0xf] %v3324
        %3357 = vst [vmem:[%s380 + $0x78] sm:$0xf] %v3325
        %3358 = vst [vmem:[%s380 + $0x7c] sm:$0xf] %v3326
        %v3359 = vadd.f32 %v3216, %v3218
        %v3360 = vadd.f32 %v3359, %v3221
        %v3361 = vadd.f32 %v3360, %v3223
        %v3362 = vadd.f32 %v3361, %v3226
        %v3363 = vadd.f32 %v3362, %v3228
        %v3364 = vadd.f32 %v3363, %v3231
        %v3365 = vadd.f32 %v3364, %v3233
        %v3366 = vadd.f32 %v3365, %v3236
        %v3367 = vadd.f32 %v3366, %v3238
        %v3368 = vadd.f32 %v3367, %v3241
        %v3369 = vadd.f32 %v3368, %v3243
        %v3370 = vadd.f32 %v3369, %v3246
        %v3371 = vadd.f32 %v3370, %v3248
        %v3372 = vadd.f32 %v3371, %v3251
        %v3373 = vadd.f32 %v3372, %v3253
        %v3374 = vadd.f32 %v3373, %v3256
        %v3375 = vadd.f32 %v3374, %v3258
        %v3376 = vadd.f32 %v3375, %v3261
        %v3377 = vadd.f32 %v3376, %v3263
        %v3378 = vadd.f32 %v3377, %v3266
        %v3379 = vadd.f32 %v3378, %v3268
        %v3380 = vadd.f32 %v3379, %v3271
        %v3381 = vadd.f32 %v3380, %v3273
        %v3382 = vadd.f32 %v3381, %v3276
        %v3383 = vadd.f32 %v3382, %v3278
        %v3384 = vadd.f32 %v3383, %v3281
        %v3385 = vadd.f32 %v3384, %v3283
        %v3386 = vadd.f32 %v3385, %v3286
        %v3387 = vadd.f32 %v3386, %v3288
        %v3388 = vadd.f32 %v3387, %v3291
        %v3389 = vadd.f32 %v3388, %v3293
        %v3390 = vrot.slane %v3389, 4
        %v3391 = vadd.f32 %v3389, %v3390
        %v3392 = vrot.slane %v3391, 2
        %v3393 = vadd.f32 %v3391, %v3392
        %v3394 = vrot.slane %v3393, 1
        %v3395 = vadd.f32 %v3393, %v3394
        %v3396 = vmul.f32 %v3216, %v3216
        %v3397 = vmul.f32 %v3218, %v3218
        %v3398 = vmul.f32 %v3221, %v3221
        %v3399 = vmul.f32 %v3223, %v3223
        %v3400 = vmul.f32 %v3226, %v3226
        %v3401 = vmul.f32 %v3228, %v3228
        %v3402 = vmul.f32 %v3231, %v3231
        %v3403 = vmul.f32 %v3233, %v3233
        %v3404 = vmul.f32 %v3236, %v3236
        %v3405 = vmul.f32 %v3238, %v3238
        %v3406 = vmul.f32 %v3241, %v3241
        %v3407 = vmul.f32 %v3243, %v3243
        %v3408 = vmul.f32 %v3246, %v3246
        %v3409 = vmul.f32 %v3248, %v3248
        %v3410 = vmul.f32 %v3251, %v3251
        %v3411 = vmul.f32 %v3253, %v3253
        %v3412 = vmul.f32 %v3256, %v3256
        %v3413 = vmul.f32 %v3258, %v3258
        %v3414 = vmul.f32 %v3261, %v3261
        %v3415 = vmul.f32 %v3263, %v3263
        %v3416 = vmul.f32 %v3266, %v3266
        %v3417 = vmul.f32 %v3268, %v3268
        %v3418 = vmul.f32 %v3271, %v3271
        %v3419 = vmul.f32 %v3273, %v3273
        %v3420 = vmul.f32 %v3276, %v3276
        %v3421 = vmul.f32 %v3278, %v3278
        %v3422 = vmul.f32 %v3281, %v3281
        %v3423 = vmul.f32 %v3283, %v3283
        %v3424 = vmul.f32 %v3286, %v3286
        %v3425 = vmul.f32 %v3288, %v3288
        %v3426 = vmul.f32 %v3291, %v3291
        %v3427 = vmul.f32 %v3293, %v3293
        %v3428 = vadd.f32 %v3396, %v3397
        %v3429 = vadd.f32 %v3428, %v3398
        %v3430 = vadd.f32 %v3429, %v3399
        %v3431 = vadd.f32 %v3430, %v3400
        %v3432 = vadd.f32 %v3431, %v3401
        %v3433 = vadd.f32 %v3432, %v3402
        %v3434 = vadd.f32 %v3433, %v3403
        %v3435 = vadd.f32 %v3434, %v3404
        %v3436 = vadd.f32 %v3435, %v3405
        %v3437 = vadd.f32 %v3436, %v3406
        %v3438 = vadd.f32 %v3437, %v3407
        %v3439 = vadd.f32 %v3438, %v3408
        %v3440 = vadd.f32 %v3439, %v3409
        %v3441 = vadd.f32 %v3440, %v3410
        %v3442 = vadd.f32 %v3441, %v3411
        %v3443 = vadd.f32 %v3442, %v3412
        %v3444 = vadd.f32 %v3443, %v3413
        %v3445 = vadd.f32 %v3444, %v3414
        %v3446 = vadd.f32 %v3445, %v3415
        %v3447 = vadd.f32 %v3446, %v3416
        %v3448 = vadd.f32 %v3447, %v3417
        %v3449 = vadd.f32 %v3448, %v3418
        %v3450 = vadd.f32 %v3449, %v3419
        %v3451 = vadd.f32 %v3450, %v3420
        %v3452 = vadd.f32 %v3451, %v3421
        %v3453 = vadd.f32 %v3452, %v3422
        %v3454 = vadd.f32 %v3453, %v3423
        %v3455 = vadd.f32 %v3454, %v3424
        %v3456 = vadd.f32 %v3455, %v3425
        %v3457 = vadd.f32 %v3456, %v3426
        %v3458 = vadd.f32 %v3457, %v3427
        %v3459 = vrot.slane %v3458, 4
        %v3460 = vadd.f32 %v3458, %v3459
        %v3461 = vrot.slane %v3460, 2
        %v3462 = vadd.f32 %v3460, %v3461
        %v3463 = vrot.slane %v3462, 1
        %v3464 = vadd.f32 %v3462, %v3463
        %vm3465 = vcmask 1040384
        %v3466 = vsel %vm3465, %v3395, %v3464
        %vm3467 = vcmask 1041408
        %v3468 = vsel %vm3467, %v3466, 0.0
        %3469 = vst [vmem:[%s388] sm:$0xff] %v3468
      $region48: #{nonlocal_block.4} parent=39 // pred_fallthru
        _
      %s3470 = smul.u32 32, %s24
      %p3471 = scmp.lt.s32.totalorder %s23, 1
      %s3472 = scalar_select %p3471, %s23, 1
      %p3473 = scmp.lt.s32.totalorder %s3470, 31
      %s3474 = scalar_select %p3473, %s3470, 31
      %s3475 = smul.addr %s3472, 32
      %s3476 = sadd.s32 %s3474, %s3475
      %s3477 = smul.addr %s3476, 4
      %s3478 = scalar_lea.vmem %s5, %s3477
      %p3479 = scmp.lt.s32.totalorder %s23, 1
      %s3480 = scalar_select %p3479, %s23, 1
      %p3481 = scmp.lt.s32.totalorder %s24, 0
      %s3482 = scalar_select %p3481, %s24, 0
      %s3483 = sadd.s32 %s3482, %s3480
      %s3484 = smul.addr %s3483, 8
      %s3485 = scalar_lea.vmem %s6, %s3484
      // Predicated region
      $region49: #{nonlocal_block.4} parent=39 // pred_check
        %p3486 = pneg %p183
      $region50: #{nonlocal_block.4} parent=39 // pred_check_branch
        %3488 = sbr.rel (%p3486) target = $region52
      $region51: #{nonlocal_block.4} parent=39 // pred_region
        %s3489 = smul.u32 32, %s24
      $region52: #{nonlocal_block.4} parent=39 // pred_fallthru
        _
      // Predicated region
      $region53: #{nonlocal_block.4} parent=39 // pred_check
        %p3490 = pneg %p211
      $region54: #{nonlocal_block.4} parent=39 // pred_check_branch
        %3492 = sbr.rel (%p3490) target = $region56
      $region55: #{nonlocal_block.4} parent=39 // pred_region
        _
      $region56: #{nonlocal_block.4} parent=39 // pred_fallthru
        _
    $region40: #{nonlocal_block.4} parent=5 // pred_fallthru
      _
    %p3493 = scmp.le.s32.totalorder 2, %s13
    // Predicated region
    $region57: #{nonlocal_block.4} parent=5 // pred_check
      %p3494 = pneg %p3493
    $region58: #{nonlocal_block.4} parent=5 // pred_check_branch
      %3496 = sbr.rel (%p3494) target = $region60
    $region59: #{nonlocal_block.4} parent=5 // pred_region
      %s3497 = ssub.s32 %s13, 2
      // Predicated region
      $region61: #{nonlocal_block.4} parent=59 // pred_check
        %p3498 = pneg %p189
      $region62: #{nonlocal_block.4} parent=59 // pred_check_branch
        %3500 = sbr.rel (%p3498) target = $region64
      $region63: #{nonlocal_block.4} parent=59 // pred_region
        %s3501 = smul.u32 32, %s27
        %p3502 = scmp.lt.s32.totalorder %s26, 1
        %s3503 = scalar_select %p3502, %s26, 1
        %p3504 = scmp.lt.s32.totalorder %s3501, 31
        %s3505 = scalar_select %p3504, %s3501, 31
        %s3506 = smul.addr %s3503, 32
        %s3507 = sadd.s32 %s3505, %s3506
        %s3508 = smul.addr %s3507, 4
        %s3509 = scalar_lea.vmem %s5, %s3508
      $region64: #{nonlocal_block.4} parent=59 // pred_fallthru
        _
      // Predicated region
      $region65: #{nonlocal_block.4} parent=59 // pred_check
        %p3510 = pneg %p217
      $region66: #{nonlocal_block.4} parent=59 // pred_check_branch
        %3512 = sbr.rel (%p3510) target = $region68
      $region67: #{nonlocal_block.4} parent=59 // pred_region
        %p3513 = scmp.lt.s32.totalorder %s26, 1
        %s3514 = scalar_select %p3513, %s26, 1
        %p3515 = scmp.lt.s32.totalorder %s27, 0
        %s3516 = scalar_select %p3515, %s27, 0
        %s3517 = sadd.s32 %s3516, %s3514
        %s3518 = smul.addr %s3517, 8
        %s3519 = scalar_lea.vmem %s6, %s3518
      $region68: #{nonlocal_block.4} parent=59 // pred_fallthru
        _
    $region60: #{nonlocal_block.4} parent=5 // pred_fallthru
      _
  $region6: #{nonlocal_block.4} parent=0 // loop_footer
    %s17 = sadd.s32 1, %s13
  $region7: #{nonlocal_block.4} parent=0 // loop_footer_branch
    %12 = sbr.rel target = $region3
  $region8: #{nonlocal_block.4} parent=0 // loop_exit
    _

</llo_original>
